<compile_context>
chip_gen: v7x
topology: tpu7x:2x2x1
jax: 0.10.0
libtpu: 0.0.40
codegen_flags: <defaults>
</compile_context>

<pallas_src>
import math
import functools

import numpy as np
import jax
import jax.numpy as jnp
from jax import lax
from jax.experimental import pallas as pl
from jax.experimental.pallas import tpu as pltpu


def _attn_block_kernel(x_ref, grp_ref, gamma_ref, beta_ref,
                       wq_ref, wk_ref, wv_ref, bq_ref, bk_ref, bv_ref,
                       wo_ref, bo_ref, o_ref,
                       *, num_heads, head_dim, group_size, eps):
    nb, c, hw = x_ref.shape
    inv_n = 1.0 / float(group_size * hw)
    attn_scale = 1.0 / math.sqrt(head_dim)

    # Grid-resident weights / per-channel vectors: read once per grid step.
    grp = grp_ref[...]                       # (C, C) f32 0/1 same-group mask
    gamma = gamma_ref[...]                   # (C, 1) f32
    beta = beta_ref[...]                     # (C, 1) f32
    wq, wk, wv, wo = wq_ref[...], wk_ref[...], wv_ref[...], wo_ref[...]  # bf16
    bq, bk, bv, bo = bq_ref[...], bk_ref[...], bv_ref[...], bo_ref[...]  # f32

    # Static loop over the Nb samples in this block (Nb is small, so this is
    # equivalent to lax.fori_loop(..., unroll=True) and fully LLO-visible).
    for i in range(nb):
        x = x_ref[i]                                                     # (C, HW) f32

        # ---- GroupNorm(32): two-pass stats via group-membership matmul -------
        gsum = jnp.dot(grp, x, preferred_element_type=jnp.float32)       # (C, HW)
        cmean = jnp.sum(gsum, axis=1, keepdims=True) * inv_n             # (C, 1)
        xc = x - cmean
        gsq = jnp.dot(grp, xc * xc, preferred_element_type=jnp.float32)  # (C, HW)
        cvar = jnp.sum(gsq, axis=1, keepdims=True) * inv_n               # (C, 1)
        scale = gamma * lax.rsqrt(cvar + eps)
        shift = beta - cmean * scale
        h = (x * scale + shift).astype(jnp.bfloat16)                     # (C, HW)

        # ---- head-major q/k/v projections (1x1 conv), bf16 MXU, f32 accum ----
        q_all = ((jnp.dot(wq, h, preferred_element_type=jnp.float32) + bq)
                 * attn_scale).astype(jnp.bfloat16)                      # (C, HW)
        k_all = (jnp.dot(wk, h, preferred_element_type=jnp.float32)
                 + bk).astype(jnp.bfloat16)                              # (C, HW)
        v_all = (jnp.dot(wv, h, preferred_element_type=jnp.float32)
                 + bv).astype(jnp.bfloat16)                              # (C, HW)

        # ---- per-head scaled dot-product attention ---------------------------
        vals = []
        for hh in range(num_heads):
            s = hh * head_dim                       # sublane offset (mult. of 32)
            q = q_all[s:s + head_dim]               # (hd, HW) bf16
            k = k_all[s:s + head_dim]
            v = v_all[s:s + head_dim]
            # logits[tq, tk] = sum_d q[d, tq] * k[d, tk]   (no explicit .T)
            logits = lax.dot_general(q, k, (((0,), (0,)), ((), ())),
                                     preferred_element_type=jnp.float32)  # (HW, HW)
            m = jnp.max(logits, axis=-1, keepdims=True)
            p = jnp.exp(logits - m)
            denom = jnp.sum(p, axis=-1, keepdims=True)
            p = (p * pl.reciprocal(denom, approx=True)).astype(jnp.bfloat16)
            # vals[d, tq] = sum_tk v[d, tk] * p[tq, tk]
            vals.append(lax.dot_general(v, p, (((1,), (1,)), ((), ())),
                                        preferred_element_type=jnp.float32))  # (hd, HW)

        # sublane-axis concat (cheap) -> single output projection matmul
        hcat = jnp.concatenate(vals, axis=0).astype(jnp.bfloat16)        # (C, HW)

        # ---- NIN_3 output projection + residual -------------------------------
        y = jnp.dot(wo, hcat, preferred_element_type=jnp.float32) + bo   # (C, HW)
        o_ref[i] = x + y


def _pick_block_batch(n):
    # Largest per-step sample batch (<= 8) that divides N and keeps the grid
    # at >= 2 steps so both v7x TensorCores get balanced work.
    for cand in (8, 4, 2):
        if n % cand == 0 and n // cand >= 2:
            return cand
    return 1


def multihead_attn_block(x, params, *, num_heads, num_groups=32, eps=1e-6, nb=None):
    """x: (B, T, C, H, W) float32 -> (B, T, C, H, W) float32."""
    B, T, C, H, W = x.shape
    N, HW = B * T, H * W
    hd = C // num_heads
    cg = C // num_groups

    if nb is None:
        nb = _pick_block_batch(N)
    assert N % nb == 0

    # Channel-major kernel layout (N, C, HW): a free reshape of NCHW -> no
    # wrapper-side HBM transposes on either input or output.
    x3 = x.reshape(N, C, HW).astype(jnp.float32)

    # Same-group membership matrix (C, C): 1.0 where two channels share a group.
    gidx = jnp.arange(C) // cg
    grp = (gidx[:, None] == gidx[None, :]).astype(jnp.float32)

    gamma2 = params["gamma"].reshape(C, 1).astype(jnp.float32)
    beta2 = params["beta"].reshape(C, 1).astype(jnp.float32)

    # Pre-split the interleaved [q|k|v]-per-head qkv projection into head-major
    # Wq/Wk/Wv slabs, transposed to (C_out, C_in) so the kernel computes W @ h.
    wqkv_r = params["wqkv"].astype(jnp.float32).reshape(C, num_heads, 3, hd)
    bqkv_r = params["bqkv"].astype(jnp.float32).reshape(num_heads, 3, hd)

    def slab(j):
        w = wqkv_r[:, :, j, :].reshape(C, C).T          # (C_out head-major, C_in)
        b = bqkv_r[:, j, :].reshape(C, 1)
        return w.astype(jnp.bfloat16), b

    wq, bq = slab(0)
    wk, bk = slab(1)
    wv, bv = slab(2)

    wo = params["wout"].astype(jnp.float32).T.astype(jnp.bfloat16)   # (C_out, C_in)
    bo = params["bout"].reshape(C, 1).astype(jnp.float32)

    kernel = functools.partial(_attn_block_kernel, num_heads=num_heads,
                               head_dim=hd, group_size=cg, eps=eps)

    const = lambda shape: pl.BlockSpec(shape, lambda n: (0, 0))

    out = pl.pallas_call(
        kernel,
        out_shape=jax.ShapeDtypeStruct((N, C, HW), jnp.float32),
        grid_spec=pltpu.PrefetchScalarGridSpec(
            num_scalar_prefetch=0,
            grid=(N // nb,),
            in_specs=[
                pl.BlockSpec((nb, C, HW), lambda n: (n, 0, 0)),   # x
                const((C, C)),        # group membership
                const((C, 1)),        # gamma
                const((C, 1)),        # beta
                const((C, C)),        # Wq^T (bf16)
                const((C, C)),        # Wk^T (bf16)
                const((C, C)),        # Wv^T (bf16)
                const((C, 1)),        # bq
                const((C, 1)),        # bk
                const((C, 1)),        # bv
                const((C, C)),        # Wout^T (bf16)
                const((C, 1)),        # bout
            ],
            out_specs=pl.BlockSpec((nb, C, HW), lambda n: (n, 0, 0)),
        ),
        compiler_params=pltpu.CompilerParams(
            dimension_semantics=("parallel",),
            # Explicit VMEM budget (safe on v7x's 64 MiB; raise toward 128 MiB on
            # v5e/v6e if the block is grown for bigger C/HW).
            vmem_limit_bytes=32 * 1024 * 1024),
    )(x3, grp, gamma2, beta2, wq, wk, wv, bq, bk, bv, wo, bo)

    return out.reshape(B, T, C, H, W)


def reference(x, params, *, num_heads, num_groups=32, eps=1e-6):
    """Pure-JAX f32 reference mirroring the PyTorch forward exactly."""
    B, T, C, H, W = x.shape
    N, HW = B * T, H * W
    hd = C // num_heads
    gamma, beta, wqkv, bqkv, wout, bout = (
        params["gamma"], params["beta"], params["wqkv"], params["bqkv"],
        params["wout"], params["bout"])

    xv = x.reshape(N, C, HW)
    xg = xv.reshape(N, num_groups, (C // num_groups) * HW)
    mean = xg.mean(-1, keepdims=True)
    var = ((xg - mean) ** 2).mean(-1, keepdims=True)
    hn = ((xg - mean) / jnp.sqrt(var + eps)).reshape(N, C, HW)
    hn = hn * gamma[None, :, None] + beta[None, :, None]

    qkv = jnp.einsum('ncl,ck->nkl', hn, wqkv) + bqkv[None, :, None]    # (N, 3C, HW)
    qkv = qkv.reshape(N, num_heads, 3 * hd, HW).transpose(0, 1, 3, 2)  # (N, nh, HW, 3hd)
    q, k, v = qkv[..., :hd], qkv[..., hd:2 * hd], qkv[..., 2 * hd:]
    logits = jnp.einsum('nhqd,nhkd->nhqk', q, k) / math.sqrt(hd)
    attn = jax.nn.softmax(logits, axis=-1)
    vals = jnp.einsum('nhqk,nhkd->nhqd', attn, v)                      # (N, nh, HW, hd)
    vals = vals.transpose(0, 1, 3, 2).reshape(N, C, HW)
    out = jnp.einsum('ncl,ck->nkl', vals, wout) + bout[None, :, None]
    return x + out.reshape(B, T, C, H, W)


if __name__ == "__main__":
    # SMALL but lane-friendly shape: HW = 16*16 = 256 tokens (multiple of 128),
    # C = 64 (GroupNorm needs a multiple of 32), 2 heads -> head_dim = 32.
    B, T, C, H, W = 2, 2, 64, 16, 16
    num_heads = 2
    key = jax.random.PRNGKey(0)
    kx, kg, kb, kw1, kb1, kw2, kb2 = jax.random.split(key, 7)

    x = jax.random.normal(kx, (B, T, C, H, W), dtype=jnp.float32)

    # Deterministic synthetic parameters (NIN weight shapes: (in, out), bias (out,)).
    # NIN_3 has init_scale=0.0 in the original; small nonzero values are used so the
    # output-projection path is actually exercised.
    params = {
        "gamma": 1.0 + 0.1 * jax.random.normal(kg, (C,), dtype=jnp.float32),
        "beta": 0.1 * jax.random.normal(kb, (C,), dtype=jnp.float32),
        "wqkv": 0.1 * jax.random.normal(kw1, (C, 3 * C), dtype=jnp.float32),
        "bqkv": 0.02 * jax.random.normal(kb1, (3 * C,), dtype=jnp.float32),
        "wout": 0.1 * jax.random.normal(kw2, (C, C), dtype=jnp.float32),
        "bout": 0.02 * jax.random.normal(kb2, (C,), dtype=jnp.float32),
    }

    out = multihead_attn_block(x, params, num_heads=num_heads)
    out = jax.block_until_ready(out)

    ref = reference(x, params, num_heads=num_heads)
    assert out.shape == (B, T, C, H, W)
    # Tolerance widened vs the pure-f32 version because matmul operands are bf16
    # (f32 accumulation; GN stats and softmax kept in f32), per the perf review.
    np.testing.assert_allclose(np.asarray(out), np.asarray(ref),
                               rtol=5e-3, atol=5e-3)
    print("KERNEL_OK")
</pallas_src>

<mosaic_0001>
module attributes {stable_mosaic.version = 11 : i64} {
  func.func @_attn_block_kernel(%arg0: i32, %arg1: memref<2x64x256xf32, #tpu.memory_space<vmem>>, %arg2: memref<64x64xf32, #tpu.memory_space<vmem>>, %arg3: memref<64x1xf32, #tpu.memory_space<vmem>>, %arg4: memref<64x1xf32, #tpu.memory_space<vmem>>, %arg5: memref<64x64xbf16, #tpu.memory_space<vmem>>, %arg6: memref<64x64xbf16, #tpu.memory_space<vmem>>, %arg7: memref<64x64xbf16, #tpu.memory_space<vmem>>, %arg8: memref<64x1xf32, #tpu.memory_space<vmem>>, %arg9: memref<64x1xf32, #tpu.memory_space<vmem>>, %arg10: memref<64x1xf32, #tpu.memory_space<vmem>>, %arg11: memref<64x64xbf16, #tpu.memory_space<vmem>>, %arg12: memref<64x1xf32, #tpu.memory_space<vmem>>, %arg13: memref<2x64x256xf32, #tpu.memory_space<vmem>>) attributes {dimension_semantics = [#tpu.dimension_semantics<parallel>], iteration_bounds = array<i64: 2>, scalar_prefetch = 0 : i64, scratch_operands = 0 : i64, tpu.core_type = #tpu.core_type<tc>, window_params = [{transform_indices = @transform_0, window_bounds = array<i64: 2, 64, 256>}, {pipeline_mode = #tpu.pipeline_mode<synchronous>, transform_indices = @transform_1, window_bounds = array<i64: 64, 64>}, {pipeline_mode = #tpu.pipeline_mode<synchronous>, transform_indices = @transform_2, window_bounds = array<i64: 64, 1>}, {pipeline_mode = #tpu.pipeline_mode<synchronous>, transform_indices = @transform_3, window_bounds = array<i64: 64, 1>}, {pipeline_mode = #tpu.pipeline_mode<synchronous>, transform_indices = @transform_4, window_bounds = array<i64: 64, 64>}, {pipeline_mode = #tpu.pipeline_mode<synchronous>, transform_indices = @transform_5, window_bounds = array<i64: 64, 64>}, {pipeline_mode = #tpu.pipeline_mode<synchronous>, transform_indices = @transform_6, window_bounds = array<i64: 64, 64>}, {pipeline_mode = #tpu.pipeline_mode<synchronous>, transform_indices = @transform_7, window_bounds = array<i64: 64, 1>}, {pipeline_mode = #tpu.pipeline_mode<synchronous>, transform_indices = @transform_8, window_bounds = array<i64: 64, 1>}, {pipeline_mode = #tpu.pipeline_mode<synchronous>, transform_indices = @transform_9, window_bounds = array<i64: 64, 1>}, {pipeline_mode = #tpu.pipeline_mode<synchronous>, transform_indices = @transform_10, window_bounds = array<i64: 64, 64>}, {pipeline_mode = #tpu.pipeline_mode<synchronous>, transform_indices = @transform_11, window_bounds = array<i64: 64, 1>}, {transform_indices = @transform_12, window_bounds = array<i64: 2, 64, 256>}]} {
    %c0 = arith.constant 0 : index
    %c0_0 = arith.constant 0 : index
    %0 = vector.load %arg2[%c0, %c0_0] : memref<64x64xf32, #tpu.memory_space<vmem>>, vector<64x64xf32>
    %c0_1 = arith.constant 0 : index
    %c0_2 = arith.constant 0 : index
    %1 = vector.load %arg3[%c0_1, %c0_2] : memref<64x1xf32, #tpu.memory_space<vmem>>, vector<64x1xf32>
    %c0_3 = arith.constant 0 : index
    %c0_4 = arith.constant 0 : index
    %2 = vector.load %arg4[%c0_3, %c0_4] : memref<64x1xf32, #tpu.memory_space<vmem>>, vector<64x1xf32>
    %c0_5 = arith.constant 0 : index
    %c0_6 = arith.constant 0 : index
    %3 = vector.load %arg5[%c0_5, %c0_6] : memref<64x64xbf16, #tpu.memory_space<vmem>>, vector<64x64xbf16>
    %c0_7 = arith.constant 0 : index
    %c0_8 = arith.constant 0 : index
    %4 = vector.load %arg6[%c0_7, %c0_8] : memref<64x64xbf16, #tpu.memory_space<vmem>>, vector<64x64xbf16>
    %c0_9 = arith.constant 0 : index
    %c0_10 = arith.constant 0 : index
    %5 = vector.load %arg7[%c0_9, %c0_10] : memref<64x64xbf16, #tpu.memory_space<vmem>>, vector<64x64xbf16>
    %c0_11 = arith.constant 0 : index
    %c0_12 = arith.constant 0 : index
    %6 = vector.load %arg11[%c0_11, %c0_12] : memref<64x64xbf16, #tpu.memory_space<vmem>>, vector<64x64xbf16>
    %c0_13 = arith.constant 0 : index
    %c0_14 = arith.constant 0 : index
    %7 = vector.load %arg8[%c0_13, %c0_14] : memref<64x1xf32, #tpu.memory_space<vmem>>, vector<64x1xf32>
    %c0_15 = arith.constant 0 : index
    %c0_16 = arith.constant 0 : index
    %8 = vector.load %arg9[%c0_15, %c0_16] : memref<64x1xf32, #tpu.memory_space<vmem>>, vector<64x1xf32>
    %c0_17 = arith.constant 0 : index
    %c0_18 = arith.constant 0 : index
    %9 = vector.load %arg10[%c0_17, %c0_18] : memref<64x1xf32, #tpu.memory_space<vmem>>, vector<64x1xf32>
    %c0_19 = arith.constant 0 : index
    %c0_20 = arith.constant 0 : index
    %10 = vector.load %arg12[%c0_19, %c0_20] : memref<64x1xf32, #tpu.memory_space<vmem>>, vector<64x1xf32>
    %c0_21 = arith.constant 0 : index
    %c0_22 = arith.constant 0 : index
    %c0_23 = arith.constant 0 : index
    %11 = vector.load %arg1[%c0_21, %c0_22, %c0_23] : memref<2x64x256xf32, #tpu.memory_space<vmem>>, vector<1x64x256xf32>
    %12 = vector.shape_cast %11 : vector<1x64x256xf32> to vector<64x256xf32>
    %cst = arith.constant dense<0.000000e+00> : vector<64x256xf32>
    %13 = tpu.matmul %0, %12, %cst {dimension_numbers = #tpu.dot_dimension_numbers<[1], [0], [0], [1], [0, 0, 1, 1], [], []>} : vector<64x64xf32>, vector<64x256xf32>, vector<64x256xf32> -> vector<64x256xf32>
    %cst_24 = arith.constant dense<0.000000e+00> : vector<64xf32>
    %14 = vector.multi_reduction <add>, %13, %cst_24 [1] : vector<64x256xf32> to vector<64xf32>
    %15 = vector.shape_cast %14 : vector<64xf32> to vector<64x1xf32>
    %cst_25 = arith.constant 0.001953125 : f32
    %16 = vector.broadcast %cst_25 : f32 to vector<64x1xf32>
    %17 = arith.mulf %15, %16 : vector<64x1xf32>
    %18 = vector.broadcast %17 : vector<64x1xf32> to vector<64x256xf32>
    %19 = arith.subf %12, %18 : vector<64x256xf32>
    %20 = arith.mulf %19, %19 : vector<64x256xf32>
    %cst_26 = arith.constant dense<0.000000e+00> : vector<64x256xf32>
    %21 = tpu.matmul %0, %20, %cst_26 {dimension_numbers = #tpu.dot_dimension_numbers<[1], [0], [0], [1], [0, 0, 1, 1], [], []>} : vector<64x64xf32>, vector<64x256xf32>, vector<64x256xf32> -> vector<64x256xf32>
    %cst_27 = arith.constant dense<0.000000e+00> : vector<64xf32>
    %22 = vector.multi_reduction <add>, %21, %cst_27 [1] : vector<64x256xf32> to vector<64xf32>
    %23 = vector.shape_cast %22 : vector<64xf32> to vector<64x1xf32>
    %cst_28 = arith.constant 0.001953125 : f32
    %24 = vector.broadcast %cst_28 : f32 to vector<64x1xf32>
    %25 = arith.mulf %23, %24 : vector<64x1xf32>
    %cst_29 = arith.constant 9.99999997E-7 : f32
    %26 = vector.broadcast %cst_29 : f32 to vector<64x1xf32>
    %27 = arith.addf %25, %26 : vector<64x1xf32>
    %28 = math.rsqrt %27 : vector<64x1xf32>
    %29 = arith.mulf %1, %28 : vector<64x1xf32>
    %30 = arith.mulf %17, %29 : vector<64x1xf32>
    %31 = arith.subf %2, %30 : vector<64x1xf32>
    %32 = vector.broadcast %29 : vector<64x1xf32> to vector<64x256xf32>
    %33 = arith.mulf %12, %32 : vector<64x256xf32>
    %34 = vector.broadcast %31 : vector<64x1xf32> to vector<64x256xf32>
    %35 = arith.addf %33, %34 : vector<64x256xf32>
    %36 = arith.truncf %35 : vector<64x256xf32> to vector<64x256xbf16>
    %cst_30 = arith.constant dense<0.000000e+00> : vector<64x256xf32>
    %37 = tpu.matmul %3, %36, %cst_30 {dimension_numbers = #tpu.dot_dimension_numbers<[1], [0], [0], [1], [0, 0, 1, 1], [], []>} : vector<64x64xbf16>, vector<64x256xbf16>, vector<64x256xf32> -> vector<64x256xf32>
    %38 = vector.broadcast %7 : vector<64x1xf32> to vector<64x256xf32>
    %39 = arith.addf %37, %38 : vector<64x256xf32>
    %cst_31 = arith.constant 0.176776692 : f32
    %40 = vector.broadcast %cst_31 : f32 to vector<64x256xf32>
    %41 = arith.mulf %39, %40 : vector<64x256xf32>
    %42 = arith.truncf %41 : vector<64x256xf32> to vector<64x256xbf16>
    %cst_32 = arith.constant dense<0.000000e+00> : vector<64x256xf32>
    %43 = tpu.matmul %4, %36, %cst_32 {dimension_numbers = #tpu.dot_dimension_numbers<[1], [0], [0], [1], [0, 0, 1, 1], [], []>} : vector<64x64xbf16>, vector<64x256xbf16>, vector<64x256xf32> -> vector<64x256xf32>
    %44 = vector.broadcast %8 : vector<64x1xf32> to vector<64x256xf32>
    %45 = arith.addf %43, %44 : vector<64x256xf32>
    %46 = arith.truncf %45 : vector<64x256xf32> to vector<64x256xbf16>
    %cst_33 = arith.constant dense<0.000000e+00> : vector<64x256xf32>
    %47 = tpu.matmul %5, %36, %cst_33 {dimension_numbers = #tpu.dot_dimension_numbers<[1], [0], [0], [1], [0, 0, 1, 1], [], []>} : vector<64x64xbf16>, vector<64x256xbf16>, vector<64x256xf32> -> vector<64x256xf32>
    %48 = vector.broadcast %9 : vector<64x1xf32> to vector<64x256xf32>
    %49 = arith.addf %47, %48 : vector<64x256xf32>
    %50 = arith.truncf %49 : vector<64x256xf32> to vector<64x256xbf16>
    %51 = vector.extract_strided_slice %42 {offsets = [0, 0], sizes = [32, 256], strides = [1, 1]} : vector<64x256xbf16> to vector<32x256xbf16>
    %52 = vector.extract_strided_slice %46 {offsets = [0, 0], sizes = [32, 256], strides = [1, 1]} : vector<64x256xbf16> to vector<32x256xbf16>
    %53 = vector.extract_strided_slice %50 {offsets = [0, 0], sizes = [32, 256], strides = [1, 1]} : vector<64x256xbf16> to vector<32x256xbf16>
    %cst_34 = arith.constant dense<0.000000e+00> : vector<256x256xf32>
    %54 = tpu.matmul %51, %52, %cst_34 {dimension_numbers = #tpu.dot_dimension_numbers<[0], [0], [1], [1], [0, 1, 1, 1], [], []>} : vector<32x256xbf16>, vector<32x256xbf16>, vector<256x256xf32> -> vector<256x256xf32>
    %cst_35 = arith.constant dense<0xFF800000> : vector<256xf32>
    %55 = vector.multi_reduction <maximumf>, %54, %cst_35 [1] : vector<256x256xf32> to vector<256xf32>
    %56 = vector.shape_cast %55 : vector<256xf32> to vector<256x1xf32>
    %57 = vector.broadcast %56 : vector<256x1xf32> to vector<256x256xf32>
    %58 = arith.subf %54, %57 : vector<256x256xf32>
    %59 = math.exp %58 : vector<256x256xf32>
    %cst_36 = arith.constant dense<0.000000e+00> : vector<256xf32>
    %60 = vector.multi_reduction <add>, %59, %cst_36 [1] : vector<256x256xf32> to vector<256xf32>
    %61 = vector.shape_cast %60 : vector<256xf32> to vector<256x1xf32>
    %62 = tpu.reciprocal %61 {approx = true} : vector<256x1xf32> -> vector<256x1xf32>
    %63 = vector.broadcast %62 : vector<256x1xf32> to vector<256x256xf32>
    %64 = arith.mulf %59, %63 : vector<256x256xf32>
    %65 = arith.truncf %64 : vector<256x256xf32> to vector<256x256xbf16>
    %cst_37 = arith.constant dense<0.000000e+00> : vector<32x256xf32>
    %66 = tpu.matmul %53, %65, %cst_37 {dimension_numbers = #tpu.dot_dimension_numbers<[1], [1], [0], [0], [0, 0, 1, 0], [], []>} : vector<32x256xbf16>, vector<256x256xbf16>, vector<32x256xf32> -> vector<32x256xf32>
    %67 = vector.extract_strided_slice %42 {offsets = [32, 0], sizes = [32, 256], strides = [1, 1]} : vector<64x256xbf16> to vector<32x256xbf16>
    %68 = vector.extract_strided_slice %46 {offsets = [32, 0], sizes = [32, 256], strides = [1, 1]} : vector<64x256xbf16> to vector<32x256xbf16>
    %69 = vector.extract_strided_slice %50 {offsets = [32, 0], sizes = [32, 256], strides = [1, 1]} : vector<64x256xbf16> to vector<32x256xbf16>
    %cst_38 = arith.constant dense<0.000000e+00> : vector<256x256xf32>
    %70 = tpu.matmul %67, %68, %cst_38 {dimension_numbers = #tpu.dot_dimension_numbers<[0], [0], [1], [1], [0, 1, 1, 1], [], []>} : vector<32x256xbf16>, vector<32x256xbf16>, vector<256x256xf32> -> vector<256x256xf32>
    %cst_39 = arith.constant dense<0xFF800000> : vector<256xf32>
    %71 = vector.multi_reduction <maximumf>, %70, %cst_39 [1] : vector<256x256xf32> to vector<256xf32>
    %72 = vector.shape_cast %71 : vector<256xf32> to vector<256x1xf32>
    %73 = vector.broadcast %72 : vector<256x1xf32> to vector<256x256xf32>
    %74 = arith.subf %70, %73 : vector<256x256xf32>
    %75 = math.exp %74 : vector<256x256xf32>
    %cst_40 = arith.constant dense<0.000000e+00> : vector<256xf32>
    %76 = vector.multi_reduction <add>, %75, %cst_40 [1] : vector<256x256xf32> to vector<256xf32>
    %77 = vector.shape_cast %76 : vector<256xf32> to vector<256x1xf32>
    %78 = tpu.reciprocal %77 {approx = true} : vector<256x1xf32> -> vector<256x1xf32>
    %79 = vector.broadcast %78 : vector<256x1xf32> to vector<256x256xf32>
    %80 = arith.mulf %75, %79 : vector<256x256xf32>
    %81 = arith.truncf %80 : vector<256x256xf32> to vector<256x256xbf16>
    %cst_41 = arith.constant dense<0.000000e+00> : vector<32x256xf32>
    %82 = tpu.matmul %69, %81, %cst_41 {dimension_numbers = #tpu.dot_dimension_numbers<[1], [1], [0], [0], [0, 0, 1, 0], [], []>} : vector<32x256xbf16>, vector<256x256xbf16>, vector<32x256xf32> -> vector<32x256xf32>
    %83 = tpu.concatenate %66, %82 in 0 : vector<32x256xf32>, vector<32x256xf32> -> vector<64x256xf32>
    %84 = arith.truncf %83 : vector<64x256xf32> to vector<64x256xbf16>
    %cst_42 = arith.constant dense<0.000000e+00> : vector<64x256xf32>
    %85 = tpu.matmul %6, %84, %cst_42 {dimension_numbers = #tpu.dot_dimension_numbers<[1], [0], [0], [1], [0, 0, 1, 1], [], []>} : vector<64x64xbf16>, vector<64x256xbf16>, vector<64x256xf32> -> vector<64x256xf32>
    %86 = vector.broadcast %10 : vector<64x1xf32> to vector<64x256xf32>
    %87 = arith.addf %85, %86 : vector<64x256xf32>
    %88 = arith.addf %12, %87 : vector<64x256xf32>
    %c0_43 = arith.constant 0 : index
    %c0_44 = arith.constant 0 : index
    %c0_45 = arith.constant 0 : index
    %89 = vector.load %arg13[%c0_43, %c0_44, %c0_45] : memref<2x64x256xf32, #tpu.memory_space<vmem>>, vector<1x64x256xf32>
    %90 = vector.shape_cast %89 : vector<1x64x256xf32> to vector<64x256xf32>
    %91 = vector.shape_cast %88 : vector<64x256xf32> to vector<1x64x256xf32>
    tpu.vector_store %arg13[%c0_43, %c0_44, %c0_45], %91 {strides = array<i32>} : memref<2x64x256xf32, #tpu.memory_space<vmem>>, vector<1x64x256xf32>,
    %c1 = arith.constant 1 : index
    %c0_46 = arith.constant 0 : index
    %c0_47 = arith.constant 0 : index
    %92 = vector.load %arg1[%c1, %c0_46, %c0_47] : memref<2x64x256xf32, #tpu.memory_space<vmem>>, vector<1x64x256xf32>
    %93 = vector.shape_cast %92 : vector<1x64x256xf32> to vector<64x256xf32>
    %cst_48 = arith.constant dense<0.000000e+00> : vector<64x256xf32>
    %94 = tpu.matmul %0, %93, %cst_48 {dimension_numbers = #tpu.dot_dimension_numbers<[1], [0], [0], [1], [0, 0, 1, 1], [], []>} : vector<64x64xf32>, vector<64x256xf32>, vector<64x256xf32> -> vector<64x256xf32>
    %cst_49 = arith.constant dense<0.000000e+00> : vector<64xf32>
    %95 = vector.multi_reduction <add>, %94, %cst_49 [1] : vector<64x256xf32> to vector<64xf32>
    %96 = vector.shape_cast %95 : vector<64xf32> to vector<64x1xf32>
    %cst_50 = arith.constant 0.001953125 : f32
    %97 = vector.broadcast %cst_50 : f32 to vector<64x1xf32>
    %98 = arith.mulf %96, %97 : vector<64x1xf32>
    %99 = vector.broadcast %98 : vector<64x1xf32> to vector<64x256xf32>
    %100 = arith.subf %93, %99 : vector<64x256xf32>
    %101 = arith.mulf %100, %100 : vector<64x256xf32>
    %cst_51 = arith.constant dense<0.000000e+00> : vector<64x256xf32>
    %102 = tpu.matmul %0, %101, %cst_51 {dimension_numbers = #tpu.dot_dimension_numbers<[1], [0], [0], [1], [0, 0, 1, 1], [], []>} : vector<64x64xf32>, vector<64x256xf32>, vector<64x256xf32> -> vector<64x256xf32>
    %cst_52 = arith.constant dense<0.000000e+00> : vector<64xf32>
    %103 = vector.multi_reduction <add>, %102, %cst_52 [1] : vector<64x256xf32> to vector<64xf32>
    %104 = vector.shape_cast %103 : vector<64xf32> to vector<64x1xf32>
    %cst_53 = arith.constant 0.001953125 : f32
    %105 = vector.broadcast %cst_53 : f32 to vector<64x1xf32>
    %106 = arith.mulf %104, %105 : vector<64x1xf32>
    %cst_54 = arith.constant 9.99999997E-7 : f32
    %107 = vector.broadcast %cst_54 : f32 to vector<64x1xf32>
    %108 = arith.addf %106, %107 : vector<64x1xf32>
    %109 = math.rsqrt %108 : vector<64x1xf32>
    %110 = arith.mulf %1, %109 : vector<64x1xf32>
    %111 = arith.mulf %98, %110 : vector<64x1xf32>
    %112 = arith.subf %2, %111 : vector<64x1xf32>
    %113 = vector.broadcast %110 : vector<64x1xf32> to vector<64x256xf32>
    %114 = arith.mulf %93, %113 : vector<64x256xf32>
    %115 = vector.broadcast %112 : vector<64x1xf32> to vector<64x256xf32>
    %116 = arith.addf %114, %115 : vector<64x256xf32>
    %117 = arith.truncf %116 : vector<64x256xf32> to vector<64x256xbf16>
    %cst_55 = arith.constant dense<0.000000e+00> : vector<64x256xf32>
    %118 = tpu.matmul %3, %117, %cst_55 {dimension_numbers = #tpu.dot_dimension_numbers<[1], [0], [0], [1], [0, 0, 1, 1], [], []>} : vector<64x64xbf16>, vector<64x256xbf16>, vector<64x256xf32> -> vector<64x256xf32>
    %119 = vector.broadcast %7 : vector<64x1xf32> to vector<64x256xf32>
    %120 = arith.addf %118, %119 : vector<64x256xf32>
    %cst_56 = arith.constant 0.176776692 : f32
    %121 = vector.broadcast %cst_56 : f32 to vector<64x256xf32>
    %122 = arith.mulf %120, %121 : vector<64x256xf32>
    %123 = arith.truncf %122 : vector<64x256xf32> to vector<64x256xbf16>
    %cst_57 = arith.constant dense<0.000000e+00> : vector<64x256xf32>
    %124 = tpu.matmul %4, %117, %cst_57 {dimension_numbers = #tpu.dot_dimension_numbers<[1], [0], [0], [1], [0, 0, 1, 1], [], []>} : vector<64x64xbf16>, vector<64x256xbf16>, vector<64x256xf32> -> vector<64x256xf32>
    %125 = vector.broadcast %8 : vector<64x1xf32> to vector<64x256xf32>
    %126 = arith.addf %124, %125 : vector<64x256xf32>
    %127 = arith.truncf %126 : vector<64x256xf32> to vector<64x256xbf16>
    %cst_58 = arith.constant dense<0.000000e+00> : vector<64x256xf32>
    %128 = tpu.matmul %5, %117, %cst_58 {dimension_numbers = #tpu.dot_dimension_numbers<[1], [0], [0], [1], [0, 0, 1, 1], [], []>} : vector<64x64xbf16>, vector<64x256xbf16>, vector<64x256xf32> -> vector<64x256xf32>
    %129 = vector.broadcast %9 : vector<64x1xf32> to vector<64x256xf32>
    %130 = arith.addf %128, %129 : vector<64x256xf32>
    %131 = arith.truncf %130 : vector<64x256xf32> to vector<64x256xbf16>
    %132 = vector.extract_strided_slice %123 {offsets = [0, 0], sizes = [32, 256], strides = [1, 1]} : vector<64x256xbf16> to vector<32x256xbf16>
    %133 = vector.extract_strided_slice %127 {offsets = [0, 0], sizes = [32, 256], strides = [1, 1]} : vector<64x256xbf16> to vector<32x256xbf16>
    %134 = vector.extract_strided_slice %131 {offsets = [0, 0], sizes = [32, 256], strides = [1, 1]} : vector<64x256xbf16> to vector<32x256xbf16>
    %cst_59 = arith.constant dense<0.000000e+00> : vector<256x256xf32>
    %135 = tpu.matmul %132, %133, %cst_59 {dimension_numbers = #tpu.dot_dimension_numbers<[0], [0], [1], [1], [0, 1, 1, 1], [], []>} : vector<32x256xbf16>, vector<32x256xbf16>, vector<256x256xf32> -> vector<256x256xf32>
    %cst_60 = arith.constant dense<0xFF800000> : vector<256xf32>
    %136 = vector.multi_reduction <maximumf>, %135, %cst_60 [1] : vector<256x256xf32> to vector<256xf32>
    %137 = vector.shape_cast %136 : vector<256xf32> to vector<256x1xf32>
    %138 = vector.broadcast %137 : vector<256x1xf32> to vector<256x256xf32>
    %139 = arith.subf %135, %138 : vector<256x256xf32>
    %140 = math.exp %139 : vector<256x256xf32>
    %cst_61 = arith.constant dense<0.000000e+00> : vector<256xf32>
    %141 = vector.multi_reduction <add>, %140, %cst_61 [1] : vector<256x256xf32> to vector<256xf32>
    %142 = vector.shape_cast %141 : vector<256xf32> to vector<256x1xf32>
    %143 = tpu.reciprocal %142 {approx = true} : vector<256x1xf32> -> vector<256x1xf32>
    %144 = vector.broadcast %143 : vector<256x1xf32> to vector<256x256xf32>
    %145 = arith.mulf %140, %144 : vector<256x256xf32>
    %146 = arith.truncf %145 : vector<256x256xf32> to vector<256x256xbf16>
    %cst_62 = arith.constant dense<0.000000e+00> : vector<32x256xf32>
    %147 = tpu.matmul %134, %146, %cst_62 {dimension_numbers = #tpu.dot_dimension_numbers<[1], [1], [0], [0], [0, 0, 1, 0], [], []>} : vector<32x256xbf16>, vector<256x256xbf16>, vector<32x256xf32> -> vector<32x256xf32>
    %148 = vector.extract_strided_slice %123 {offsets = [32, 0], sizes = [32, 256], strides = [1, 1]} : vector<64x256xbf16> to vector<32x256xbf16>
    %149 = vector.extract_strided_slice %127 {offsets = [32, 0], sizes = [32, 256], strides = [1, 1]} : vector<64x256xbf16> to vector<32x256xbf16>
    %150 = vector.extract_strided_slice %131 {offsets = [32, 0], sizes = [32, 256], strides = [1, 1]} : vector<64x256xbf16> to vector<32x256xbf16>
    %cst_63 = arith.constant dense<0.000000e+00> : vector<256x256xf32>
    %151 = tpu.matmul %148, %149, %cst_63 {dimension_numbers = #tpu.dot_dimension_numbers<[0], [0], [1], [1], [0, 1, 1, 1], [], []>} : vector<32x256xbf16>, vector<32x256xbf16>, vector<256x256xf32> -> vector<256x256xf32>
    %cst_64 = arith.constant dense<0xFF800000> : vector<256xf32>
    %152 = vector.multi_reduction <maximumf>, %151, %cst_64 [1] : vector<256x256xf32> to vector<256xf32>
    %153 = vector.shape_cast %152 : vector<256xf32> to vector<256x1xf32>
    %154 = vector.broadcast %153 : vector<256x1xf32> to vector<256x256xf32>
    %155 = arith.subf %151, %154 : vector<256x256xf32>
    %156 = math.exp %155 : vector<256x256xf32>
    %cst_65 = arith.constant dense<0.000000e+00> : vector<256xf32>
    %157 = vector.multi_reduction <add>, %156, %cst_65 [1] : vector<256x256xf32> to vector<256xf32>
    %158 = vector.shape_cast %157 : vector<256xf32> to vector<256x1xf32>
    %159 = tpu.reciprocal %158 {approx = true} : vector<256x1xf32> -> vector<256x1xf32>
    %160 = vector.broadcast %159 : vector<256x1xf32> to vector<256x256xf32>
    %161 = arith.mulf %156, %160 : vector<256x256xf32>
    %162 = arith.truncf %161 : vector<256x256xf32> to vector<256x256xbf16>
    %cst_66 = arith.constant dense<0.000000e+00> : vector<32x256xf32>
    %163 = tpu.matmul %150, %162, %cst_66 {dimension_numbers = #tpu.dot_dimension_numbers<[1], [1], [0], [0], [0, 0, 1, 0], [], []>} : vector<32x256xbf16>, vector<256x256xbf16>, vector<32x256xf32> -> vector<32x256xf32>
    %164 = tpu.concatenate %147, %163 in 0 : vector<32x256xf32>, vector<32x256xf32> -> vector<64x256xf32>
    %165 = arith.truncf %164 : vector<64x256xf32> to vector<64x256xbf16>
    %cst_67 = arith.constant dense<0.000000e+00> : vector<64x256xf32>
    %166 = tpu.matmul %6, %165, %cst_67 {dimension_numbers = #tpu.dot_dimension_numbers<[1], [0], [0], [1], [0, 0, 1, 1], [], []>} : vector<64x64xbf16>, vector<64x256xbf16>, vector<64x256xf32> -> vector<64x256xf32>
    %167 = vector.broadcast %10 : vector<64x1xf32> to vector<64x256xf32>
    %168 = arith.addf %166, %167 : vector<64x256xf32>
    %169 = arith.addf %93, %168 : vector<64x256xf32>
    %c1_68 = arith.constant 1 : index
    %c0_69 = arith.constant 0 : index
    %c0_70 = arith.constant 0 : index
    %170 = vector.load %arg13[%c1_68, %c0_69, %c0_70] : memref<2x64x256xf32, #tpu.memory_space<vmem>>, vector<1x64x256xf32>
    %171 = vector.shape_cast %170 : vector<1x64x256xf32> to vector<64x256xf32>
    %172 = vector.shape_cast %169 : vector<64x256xf32> to vector<1x64x256xf32>
    tpu.vector_store %arg13[%c1_68, %c0_69, %c0_70], %172 {strides = array<i32>} : memref<2x64x256xf32, #tpu.memory_space<vmem>>, vector<1x64x256xf32>,
    return
  }
  func.func @transform_0(%arg0: i32) -> (i32, i32, i32) {
    %c0_i32 = arith.constant 0 : i32
    %c0_i32_0 = arith.constant 0 : i32
    %c0_i32_1 = arith.constant 0 : i32
    return %arg0, %c0_i32, %c0_i32_0 : i32, i32, i32
  }
  func.func @transform_1(%arg0: i32) -> (i32, i32) {
    %c0_i32 = arith.constant 0 : i32
    %c0_i32_0 = arith.constant 0 : i32
    %c0_i32_1 = arith.constant 0 : i32
    return %c0_i32, %c0_i32_0 : i32, i32
  }
  func.func @transform_2(%arg0: i32) -> (i32, i32) {
    %c0_i32 = arith.constant 0 : i32
    %c0_i32_0 = arith.constant 0 : i32
    %c0_i32_1 = arith.constant 0 : i32
    return %c0_i32, %c0_i32_0 : i32, i32
  }
  func.func @transform_3(%arg0: i32) -> (i32, i32) {
    %c0_i32 = arith.constant 0 : i32
    %c0_i32_0 = arith.constant 0 : i32
    %c0_i32_1 = arith.constant 0 : i32
    return %c0_i32, %c0_i32_0 : i32, i32
  }
  func.func @transform_4(%arg0: i32) -> (i32, i32) {
    %c0_i32 = arith.constant 0 : i32
    %c0_i32_0 = arith.constant 0 : i32
    %c0_i32_1 = arith.constant 0 : i32
    return %c0_i32, %c0_i32_0 : i32, i32
  }
  func.func @transform_5(%arg0: i32) -> (i32, i32) {
    %c0_i32 = arith.constant 0 : i32
    %c0_i32_0 = arith.constant 0 : i32
    %c0_i32_1 = arith.constant 0 : i32
    return %c0_i32, %c0_i32_0 : i32, i32
  }
  func.func @transform_6(%arg0: i32) -> (i32, i32) {
    %c0_i32 = arith.constant 0 : i32
    %c0_i32_0 = arith.constant 0 : i32
    %c0_i32_1 = arith.constant 0 : i32
    return %c0_i32, %c0_i32_0 : i32, i32
  }
  func.func @transform_7(%arg0: i32) -> (i32, i32) {
    %c0_i32 = arith.constant 0 : i32
    %c0_i32_0 = arith.constant 0 : i32
    %c0_i32_1 = arith.constant 0 : i32
    return %c0_i32, %c0_i32_0 : i32, i32
  }
  func.func @transform_8(%arg0: i32) -> (i32, i32) {
    %c0_i32 = arith.constant 0 : i32
    %c0_i32_0 = arith.constant 0 : i32
    %c0_i32_1 = arith.constant 0 : i32
    return %c0_i32, %c0_i32_0 : i32, i32
  }
  func.func @transform_9(%arg0: i32) -> (i32, i32) {
    %c0_i32 = arith.constant 0 : i32
    %c0_i32_0 = arith.constant 0 : i32
    %c0_i32_1 = arith.constant 0 : i32
    return %c0_i32, %c0_i32_0 : i32, i32
  }
  func.func @transform_10(%arg0: i32) -> (i32, i32) {
    %c0_i32 = arith.constant 0 : i32
    %c0_i32_0 = arith.constant 0 : i32
    %c0_i32_1 = arith.constant 0 : i32
    return %c0_i32, %c0_i32_0 : i32, i32
  }
  func.func @transform_11(%arg0: i32) -> (i32, i32) {
    %c0_i32 = arith.constant 0 : i32
    %c0_i32_0 = arith.constant 0 : i32
    %c0_i32_1 = arith.constant 0 : i32
    return %c0_i32, %c0_i32_0 : i32, i32
  }
  func.func @transform_12(%arg0: i32) -> (i32, i32, i32) {
    %c0_i32 = arith.constant 0 : i32
    %c0_i32_0 = arith.constant 0 : i32
    %c0_i32_1 = arith.constant 0 : i32
    return %arg0, %c0_i32, %c0_i32_0 : i32, i32, i32
  }
}

</mosaic_0001>

<llo_original>
// kernel: tpu_custom_call.1
$region0: #{tpu_custom_call.1}
  #allocation0 [shape = 'u32[]', space=smem, size = 0x4, offset = 0x4, fixed_abs, tag = 'smem constant byte address 0x4 - core index']
  #allocation1 [shape = 'u32[144,128]{1,0:T(1,128)}', space=vmem, size = 0x12000, scoped, tag = 'internal scratch']
  %s0 = inlined_call_operand.hbm [shape: f32[4,64,256], index: 0, kind: input, shape index: {}]
  %s1 = inlined_call_operand.vmem [shape: f32[64,64], index: 1, kind: input, shape index: {}]
  %s2 = inlined_call_operand.vmem [shape: f32[64,1], index: 2, kind: input, shape index: {}]
  %s3 = inlined_call_operand.vmem [shape: f32[64,1], index: 3, kind: input, shape index: {}]
  %s4 = inlined_call_operand.vmem [shape: bf16[64,64], index: 4, kind: input, shape index: {}]
  %s5 = inlined_call_operand.vmem [shape: bf16[64,64], index: 5, kind: input, shape index: {}]
  %s6 = inlined_call_operand.vmem [shape: bf16[64,64], index: 6, kind: input, shape index: {}]
  %s7 = inlined_call_operand.vmem [shape: f32[64,1], index: 7, kind: input, shape index: {}]
  %s8 = inlined_call_operand.vmem [shape: f32[64,1], index: 8, kind: input, shape index: {}]
  %s9 = inlined_call_operand.vmem [shape: f32[64,1], index: 9, kind: input, shape index: {}]
  %s10 = inlined_call_operand.vmem [shape: bf16[64,64], index: 10, kind: input, shape index: {}]
  %s11 = inlined_call_operand.vmem [shape: f32[64,1], index: 11, kind: input, shape index: {}]
  %s12 = inlined_call_operand.hbm [shape: f32[4,64,256], index: 12, kind: output, shape index: {}]
  %s13 = sld [smem:[#allocation0]]
  $region85: #{tpu_custom_call.1} parent=0
    _
  %s15 = ssub.s32 1, %s13
  %s16 = scalar_select 0, %s15, %s13
  $region1: #{tpu_custom_call.1} parent=0
    #allocation2 [shape = 'u8[262144]{0}', space=vmem, size = 0x40000, scoped, tag = 'input window, operand 0']
    #allocation3 [shape = 's32[2]{0}', space=sflag, size = 0x8, scoped, tag = 'scoped memory for tpu_custom_call.1']
    #allocation4 [shape = 's32[2]{0}', space=sflag, size = 0x8, scoped, tag = 'scoped memory for tpu_custom_call.1']
    #allocation5 [shape = 'u8[262144]{0}', space=vmem, size = 0x40000, scoped, tag = 'output window, operand 0']
    %17 = vsyncpa [#allocation3], 0
    %s18 = scalar_lea.sflag [#allocation3], 1
    %19 = vsyncpa %s18, 0
    %20 = vsyncpa [#allocation4], 0
    %s21 = scalar_lea.sflag [#allocation4], 1
    %22 = vsyncpa %s21, 0
    loop: start=0, step=1, limit=4
    $region2: #{tpu_custom_call.1} parent=1 // loop_pre_header
      _
    $region3: #{tpu_custom_call.1} parent=1 // loop_header
      %s24 = sphi 0, %s28
      %p25 = scmp.ge.s32.totalorder %s24, 4
      %s34 = sphi 0, %s36
      %s37 = sphi 0, %s34
      %s38 = sphi 0, %s37
      %s54 = sphi 0, %s38
      %s58 = sphi 0, %s58
      %s60 = sphi 0, %s58
      %s61 = sphi 0, %s60
      %s75 = sphi 0, %s61
      %s79 = sphi 0, %s79
      %s81 = sphi 0, %s79
      %s82 = sphi 0, %s81
      %s96 = sphi 0, %s82
      %s100 = sphi 0, %s100
      %s102 = sphi 0, %s100
      %s103 = sphi 0, %s102
      %s117 = sphi 0, %s103
      %s121 = sphi 0, %s121
      %s123 = sphi 0, %s121
      %s124 = sphi 0, %s123
      %s138 = sphi 0, %s124
      %s142 = sphi 0, %s142
      %s144 = sphi 0, %s142
      %s145 = sphi 0, %s144
      %s159 = sphi 0, %s145
      %s163 = sphi 0, %s163
      %s165 = sphi 0, %s163
      %s166 = sphi 0, %s165
      %s180 = sphi 0, %s166
      %s184 = sphi 0, %s184
      %s186 = sphi 0, %s184
      %s187 = sphi 0, %s186
      %s201 = sphi 0, %s187
      %s205 = sphi 0, %s205
      %s207 = sphi 0, %s205
      %s208 = sphi 0, %s207
      %s222 = sphi 0, %s208
      %s226 = sphi 0, %s226
      %s228 = sphi 0, %s226
      %s229 = sphi 0, %s228
      %s243 = sphi 0, %s229
      %s247 = sphi 0, %s247
      %s249 = sphi 0, %s247
      %s250 = sphi 0, %s249
      %s264 = sphi 0, %s250
      %s268 = sphi 0, %s268
      %s270 = sphi 0, %s268
      %s271 = sphi 0, %s270
      %s285 = sphi 0, %s271
      %s291 = sphi 0, %s293
      %s294 = sphi 0, %s291
      %s295 = sphi 0, %s294
      %s311 = sphi 0, %s295
    $region4: #{tpu_custom_call.1} parent=1 // loop_header_branch
      %27 = sbr.rel (%p25) target = $region8
    $region5: #{tpu_custom_call.1} parent=1 // loop_body
      %s29 = ssub.s32 %s24, 1
      %s30 = ssub.s32 %s24, 2
      %s31 = sadd.s32 %s24, 1
      %s32 = ssub.s32 %s24, %s31
      %p33 = scmp.eq.s32.totalorder %s32, 0
      %s35 = sadd.s32 %s34, 1
      %s36 = scalar_select %p33, %s34, %s35
      %p39 = pneg %p33
      %p40 = scmp.eq.s32.totalorder %s24, 1
      %p41 = por %p39, %p40
      %p42 = scmp.ne.s32.totalorder %s34, %s37
      %p43 = scmp.eq.s32.totalorder %s24, 0
      %p44 = por %p42, %p43
      %p45 = scmp.ne.s32.totalorder %s34, %s37
      %p46 = scmp.eq.s32.totalorder %s29, 1
      %p47 = por %p45, %p46
      %p48 = scmp.ne.s32.totalorder %s37, %s38
      %p49 = scmp.eq.s32.totalorder %s29, 0
      %p50 = por %p48, %p49
      %p51 = scmp.ne.s32.totalorder %s37, %s38
      %p52 = scmp.eq.s32.totalorder %s30, 1
      %p53 = por %p51, %p52
      %p55 = scmp.ne.s32.totalorder %s38, %s54
      %p56 = scmp.eq.s32.totalorder %s30, 0
      %p57 = por %p55, %p56
      %s59 = sadd.s32 %s58, 1
      %p62 = scmp.eq.s32.totalorder %s24, 1
      %p63 = scmp.ne.s32.totalorder %s58, %s60
      %p64 = scmp.eq.s32.totalorder %s24, 0
      %p65 = por %p63, %p64
      %p66 = scmp.ne.s32.totalorder %s58, %s60
      %p67 = scmp.eq.s32.totalorder %s29, 1
      %p68 = por %p66, %p67
      %p69 = scmp.ne.s32.totalorder %s60, %s61
      %p70 = scmp.eq.s32.totalorder %s29, 0
      %p71 = por %p69, %p70
      %p72 = scmp.ne.s32.totalorder %s60, %s61
      %p73 = scmp.eq.s32.totalorder %s30, 1
      %p74 = por %p72, %p73
      %p76 = scmp.ne.s32.totalorder %s61, %s75
      %p77 = scmp.eq.s32.totalorder %s30, 0
      %p78 = por %p76, %p77
      %s80 = sadd.s32 %s79, 1
      %p83 = scmp.eq.s32.totalorder %s24, 1
      %p84 = scmp.ne.s32.totalorder %s79, %s81
      %p85 = scmp.eq.s32.totalorder %s24, 0
      %p86 = por %p84, %p85
      %p87 = scmp.ne.s32.totalorder %s79, %s81
      %p88 = scmp.eq.s32.totalorder %s29, 1
      %p89 = por %p87, %p88
      %p90 = scmp.ne.s32.totalorder %s81, %s82
      %p91 = scmp.eq.s32.totalorder %s29, 0
      %p92 = por %p90, %p91
      %p93 = scmp.ne.s32.totalorder %s81, %s82
      %p94 = scmp.eq.s32.totalorder %s30, 1
      %p95 = por %p93, %p94
      %p97 = scmp.ne.s32.totalorder %s82, %s96
      %p98 = scmp.eq.s32.totalorder %s30, 0
      %p99 = por %p97, %p98
      %s101 = sadd.s32 %s100, 1
      %p104 = scmp.eq.s32.totalorder %s24, 1
      %p105 = scmp.ne.s32.totalorder %s100, %s102
      %p106 = scmp.eq.s32.totalorder %s24, 0
      %p107 = por %p105, %p106
      %p108 = scmp.ne.s32.totalorder %s100, %s102
      %p109 = scmp.eq.s32.totalorder %s29, 1
      %p110 = por %p108, %p109
      %p111 = scmp.ne.s32.totalorder %s102, %s103
      %p112 = scmp.eq.s32.totalorder %s29, 0
      %p113 = por %p111, %p112
      %p114 = scmp.ne.s32.totalorder %s102, %s103
      %p115 = scmp.eq.s32.totalorder %s30, 1
      %p116 = por %p114, %p115
      %p118 = scmp.ne.s32.totalorder %s103, %s117
      %p119 = scmp.eq.s32.totalorder %s30, 0
      %p120 = por %p118, %p119
      %s122 = sadd.s32 %s121, 1
      %p125 = scmp.eq.s32.totalorder %s24, 1
      %p126 = scmp.ne.s32.totalorder %s121, %s123
      %p127 = scmp.eq.s32.totalorder %s24, 0
      %p128 = por %p126, %p127
      %p129 = scmp.ne.s32.totalorder %s121, %s123
      %p130 = scmp.eq.s32.totalorder %s29, 1
      %p131 = por %p129, %p130
      %p132 = scmp.ne.s32.totalorder %s123, %s124
      %p133 = scmp.eq.s32.totalorder %s29, 0
      %p134 = por %p132, %p133
      %p135 = scmp.ne.s32.totalorder %s123, %s124
      %p136 = scmp.eq.s32.totalorder %s30, 1
      %p137 = por %p135, %p136
      %p139 = scmp.ne.s32.totalorder %s124, %s138
      %p140 = scmp.eq.s32.totalorder %s30, 0
      %p141 = por %p139, %p140
      %s143 = sadd.s32 %s142, 1
      %p146 = scmp.eq.s32.totalorder %s24, 1
      %p147 = scmp.ne.s32.totalorder %s142, %s144
      %p148 = scmp.eq.s32.totalorder %s24, 0
      %p149 = por %p147, %p148
      %p150 = scmp.ne.s32.totalorder %s142, %s144
      %p151 = scmp.eq.s32.totalorder %s29, 1
      %p152 = por %p150, %p151
      %p153 = scmp.ne.s32.totalorder %s144, %s145
      %p154 = scmp.eq.s32.totalorder %s29, 0
      %p155 = por %p153, %p154
      %p156 = scmp.ne.s32.totalorder %s144, %s145
      %p157 = scmp.eq.s32.totalorder %s30, 1
      %p158 = por %p156, %p157
      %p160 = scmp.ne.s32.totalorder %s145, %s159
      %p161 = scmp.eq.s32.totalorder %s30, 0
      %p162 = por %p160, %p161
      %s164 = sadd.s32 %s163, 1
      %p167 = scmp.eq.s32.totalorder %s24, 1
      %p168 = scmp.ne.s32.totalorder %s163, %s165
      %p169 = scmp.eq.s32.totalorder %s24, 0
      %p170 = por %p168, %p169
      %p171 = scmp.ne.s32.totalorder %s163, %s165
      %p172 = scmp.eq.s32.totalorder %s29, 1
      %p173 = por %p171, %p172
      %p174 = scmp.ne.s32.totalorder %s165, %s166
      %p175 = scmp.eq.s32.totalorder %s29, 0
      %p176 = por %p174, %p175
      %p177 = scmp.ne.s32.totalorder %s165, %s166
      %p178 = scmp.eq.s32.totalorder %s30, 1
      %p179 = por %p177, %p178
      %p181 = scmp.ne.s32.totalorder %s166, %s180
      %p182 = scmp.eq.s32.totalorder %s30, 0
      %p183 = por %p181, %p182
      %s185 = sadd.s32 %s184, 1
      %p188 = scmp.eq.s32.totalorder %s24, 1
      %p189 = scmp.ne.s32.totalorder %s184, %s186
      %p190 = scmp.eq.s32.totalorder %s24, 0
      %p191 = por %p189, %p190
      %p192 = scmp.ne.s32.totalorder %s184, %s186
      %p193 = scmp.eq.s32.totalorder %s29, 1
      %p194 = por %p192, %p193
      %p195 = scmp.ne.s32.totalorder %s186, %s187
      %p196 = scmp.eq.s32.totalorder %s29, 0
      %p197 = por %p195, %p196
      %p198 = scmp.ne.s32.totalorder %s186, %s187
      %p199 = scmp.eq.s32.totalorder %s30, 1
      %p200 = por %p198, %p199
      %p202 = scmp.ne.s32.totalorder %s187, %s201
      %p203 = scmp.eq.s32.totalorder %s30, 0
      %p204 = por %p202, %p203
      %s206 = sadd.s32 %s205, 1
      %p209 = scmp.eq.s32.totalorder %s24, 1
      %p210 = scmp.ne.s32.totalorder %s205, %s207
      %p211 = scmp.eq.s32.totalorder %s24, 0
      %p212 = por %p210, %p211
      %p213 = scmp.ne.s32.totalorder %s205, %s207
      %p214 = scmp.eq.s32.totalorder %s29, 1
      %p215 = por %p213, %p214
      %p216 = scmp.ne.s32.totalorder %s207, %s208
      %p217 = scmp.eq.s32.totalorder %s29, 0
      %p218 = por %p216, %p217
      %p219 = scmp.ne.s32.totalorder %s207, %s208
      %p220 = scmp.eq.s32.totalorder %s30, 1
      %p221 = por %p219, %p220
      %p223 = scmp.ne.s32.totalorder %s208, %s222
      %p224 = scmp.eq.s32.totalorder %s30, 0
      %p225 = por %p223, %p224
      %s227 = sadd.s32 %s226, 1
      %p230 = scmp.eq.s32.totalorder %s24, 1
      %p231 = scmp.ne.s32.totalorder %s226, %s228
      %p232 = scmp.eq.s32.totalorder %s24, 0
      %p233 = por %p231, %p232
      %p234 = scmp.ne.s32.totalorder %s226, %s228
      %p235 = scmp.eq.s32.totalorder %s29, 1
      %p236 = por %p234, %p235
      %p237 = scmp.ne.s32.totalorder %s228, %s229
      %p238 = scmp.eq.s32.totalorder %s29, 0
      %p239 = por %p237, %p238
      %p240 = scmp.ne.s32.totalorder %s228, %s229
      %p241 = scmp.eq.s32.totalorder %s30, 1
      %p242 = por %p240, %p241
      %p244 = scmp.ne.s32.totalorder %s229, %s243
      %p245 = scmp.eq.s32.totalorder %s30, 0
      %p246 = por %p244, %p245
      %s248 = sadd.s32 %s247, 1
      %p251 = scmp.eq.s32.totalorder %s24, 1
      %p252 = scmp.ne.s32.totalorder %s247, %s249
      %p253 = scmp.eq.s32.totalorder %s24, 0
      %p254 = por %p252, %p253
      %p255 = scmp.ne.s32.totalorder %s247, %s249
      %p256 = scmp.eq.s32.totalorder %s29, 1
      %p257 = por %p255, %p256
      %p258 = scmp.ne.s32.totalorder %s249, %s250
      %p259 = scmp.eq.s32.totalorder %s29, 0
      %p260 = por %p258, %p259
      %p261 = scmp.ne.s32.totalorder %s249, %s250
      %p262 = scmp.eq.s32.totalorder %s30, 1
      %p263 = por %p261, %p262
      %p265 = scmp.ne.s32.totalorder %s250, %s264
      %p266 = scmp.eq.s32.totalorder %s30, 0
      %p267 = por %p265, %p266
      %s269 = sadd.s32 %s268, 1
      %p272 = scmp.eq.s32.totalorder %s24, 1
      %p273 = scmp.ne.s32.totalorder %s268, %s270
      %p274 = scmp.eq.s32.totalorder %s24, 0
      %p275 = por %p273, %p274
      %p276 = scmp.ne.s32.totalorder %s268, %s270
      %p277 = scmp.eq.s32.totalorder %s29, 1
      %p278 = por %p276, %p277
      %p279 = scmp.ne.s32.totalorder %s270, %s271
      %p280 = scmp.eq.s32.totalorder %s29, 0
      %p281 = por %p279, %p280
      %p282 = scmp.ne.s32.totalorder %s270, %s271
      %p283 = scmp.eq.s32.totalorder %s30, 1
      %p284 = por %p282, %p283
      %p286 = scmp.ne.s32.totalorder %s271, %s285
      %p287 = scmp.eq.s32.totalorder %s30, 0
      %p288 = por %p286, %p287
      %s289 = ssub.s32 %s24, %s31
      %p290 = scmp.eq.s32.totalorder %s289, 0
      %s292 = sadd.s32 %s291, 1
      %s293 = scalar_select %p290, %s291, %s292
      %p296 = pneg %p290
      %p297 = scmp.eq.s32.totalorder %s24, 1
      %p298 = por %p296, %p297
      %p299 = scmp.ne.s32.totalorder %s291, %s294
      %p300 = scmp.eq.s32.totalorder %s24, 0
      %p301 = por %p299, %p300
      %p302 = scmp.ne.s32.totalorder %s291, %s294
      %p303 = scmp.eq.s32.totalorder %s29, 1
      %p304 = por %p302, %p303
      %p305 = scmp.ne.s32.totalorder %s294, %s295
      %p306 = scmp.eq.s32.totalorder %s29, 0
      %p307 = por %p305, %p306
      %p308 = scmp.ne.s32.totalorder %s294, %s295
      %p309 = scmp.eq.s32.totalorder %s30, 1
      %p310 = por %p308, %p309
      %p312 = scmp.ne.s32.totalorder %s295, %s311
      %p313 = scmp.eq.s32.totalorder %s30, 0
      %p314 = por %p312, %p313
      %p315 = scmp.le.s32.totalorder 1, %s24
      %p316 = scmp.lt.s32.totalorder %s24, 3
      %p317 = pnand %p315, %p316
      %p318 = pneg %p317
      // Predicated region
      $region9: #{tpu_custom_call.1} parent=5 // pred_check
        _
      $region10: #{tpu_custom_call.1} parent=5 // pred_check_branch
        %320 = sbr.rel (%p317) target = $region12
      $region11: #{tpu_custom_call.1} parent=5 // pred_region
        %s321 = ssub.s32 %s24, 1
        // Predicated region
        $region13: #{tpu_custom_call.1} parent=11 // pred_check
          %p322 = pneg %p71
        $region14: #{tpu_custom_call.1} parent=11 // pred_check_branch
          %324 = sbr.rel (%p322) target = $region16
        $region15: #{tpu_custom_call.1} parent=11 // pred_region
          _
        $region16: #{tpu_custom_call.1} parent=11 // pred_fallthru
          _
        // Predicated region
        $region17: #{tpu_custom_call.1} parent=11 // pred_check
          %p325 = pneg %p92
        $region18: #{tpu_custom_call.1} parent=11 // pred_check_branch
          %327 = sbr.rel (%p325) target = $region20
        $region19: #{tpu_custom_call.1} parent=11 // pred_region
          _
        $region20: #{tpu_custom_call.1} parent=11 // pred_fallthru
          _
        // Predicated region
        $region21: #{tpu_custom_call.1} parent=11 // pred_check
          %p328 = pneg %p113
        $region22: #{tpu_custom_call.1} parent=11 // pred_check_branch
          %330 = sbr.rel (%p328) target = $region24
        $region23: #{tpu_custom_call.1} parent=11 // pred_region
          _
        $region24: #{tpu_custom_call.1} parent=11 // pred_fallthru
          _
        // Predicated region
        $region25: #{tpu_custom_call.1} parent=11 // pred_check
          %p331 = pneg %p134
        $region26: #{tpu_custom_call.1} parent=11 // pred_check_branch
          %333 = sbr.rel (%p331) target = $region28
        $region27: #{tpu_custom_call.1} parent=11 // pred_region
          _
        $region28: #{tpu_custom_call.1} parent=11 // pred_fallthru
          _
        // Predicated region
        $region29: #{tpu_custom_call.1} parent=11 // pred_check
          %p334 = pneg %p155
        $region30: #{tpu_custom_call.1} parent=11 // pred_check_branch
          %336 = sbr.rel (%p334) target = $region32
        $region31: #{tpu_custom_call.1} parent=11 // pred_region
          _
        $region32: #{tpu_custom_call.1} parent=11 // pred_fallthru
          _
        // Predicated region
        $region33: #{tpu_custom_call.1} parent=11 // pred_check
          %p337 = pneg %p176
        $region34: #{tpu_custom_call.1} parent=11 // pred_check_branch
          %339 = sbr.rel (%p337) target = $region36
        $region35: #{tpu_custom_call.1} parent=11 // pred_region
          _
        $region36: #{tpu_custom_call.1} parent=11 // pred_fallthru
          _
        // Predicated region
        $region37: #{tpu_custom_call.1} parent=11 // pred_check
          %p340 = pneg %p197
        $region38: #{tpu_custom_call.1} parent=11 // pred_check_branch
          %342 = sbr.rel (%p340) target = $region40
        $region39: #{tpu_custom_call.1} parent=11 // pred_region
          _
        $region40: #{tpu_custom_call.1} parent=11 // pred_fallthru
          _
        // Predicated region
        $region41: #{tpu_custom_call.1} parent=11 // pred_check
          %p343 = pneg %p218
        $region42: #{tpu_custom_call.1} parent=11 // pred_check_branch
          %345 = sbr.rel (%p343) target = $region44
        $region43: #{tpu_custom_call.1} parent=11 // pred_region
          _
        $region44: #{tpu_custom_call.1} parent=11 // pred_fallthru
          _
        // Predicated region
        $region45: #{tpu_custom_call.1} parent=11 // pred_check
          %p346 = pneg %p239
        $region46: #{tpu_custom_call.1} parent=11 // pred_check_branch
          %348 = sbr.rel (%p346) target = $region48
        $region47: #{tpu_custom_call.1} parent=11 // pred_region
          _
        $region48: #{tpu_custom_call.1} parent=11 // pred_fallthru
          _
        // Predicated region
        $region49: #{tpu_custom_call.1} parent=11 // pred_check
          %p349 = pneg %p260
        $region50: #{tpu_custom_call.1} parent=11 // pred_check_branch
          %351 = sbr.rel (%p349) target = $region52
        $region51: #{tpu_custom_call.1} parent=11 // pred_region
          _
        $region52: #{tpu_custom_call.1} parent=11 // pred_fallthru
          _
        // Predicated region
        $region53: #{tpu_custom_call.1} parent=11 // pred_check
          %p352 = pneg %p281
        $region54: #{tpu_custom_call.1} parent=11 // pred_check_branch
          %354 = sbr.rel (%p352) target = $region56
        $region55: #{tpu_custom_call.1} parent=11 // pred_region
          _
        $region56: #{tpu_custom_call.1} parent=11 // pred_fallthru
          _
      $region12: #{tpu_custom_call.1} parent=5 // pred_fallthru
        _
      %p355 = scmp.lt.s32.totalorder %s24, 2
      // Predicated region
      $region57: #{tpu_custom_call.1} parent=5 // pred_check
        %p356 = pneg %p355
      $region58: #{tpu_custom_call.1} parent=5 // pred_check_branch
        %358 = sbr.rel (%p356) target = $region60
      $region59: #{tpu_custom_call.1} parent=5 // pred_region
        // Predicated region
        $region61: #{tpu_custom_call.1} parent=59 // pred_check
          %p359 = pneg %p44
        $region62: #{tpu_custom_call.1} parent=59 // pred_check_branch
          %361 = sbr.rel (%p359) target = $region64
        $region63: #{tpu_custom_call.1} parent=59 // pred_region
          %s362 = sand.u32 %s34, 1
          %s363 = scalar_lea.sflag [#allocation3], %s362
          %s364 = sand.u32 %s34, 1
          %s365 = smul.addr %s364, 256
          %s366 = scalar_lea.vmem [#allocation2], %s365
          %s367 = smul.u32 2, %s24
          %s369 = ssub.s32 4096, 4096
          %370 = vsyncadd %s363, %s369
          %s371 = smul.addr %s367, 16
          %s372 = smul.addr %s371, 128
          %s373 = scalar_lea.hbm %s0, %s372
          %s374 = sshll.u32 %s366, 4
          %s375 = int_to_ptr.vmem [resolvable:$true] %s374
          %380 = dma.hbm_to_vmem [thread:$0]  %s373, 4096, %s375, %s363, 256, 256, 16
        $region64: #{tpu_custom_call.1} parent=59 // pred_fallthru
          _
      $region60: #{tpu_custom_call.1} parent=5 // pred_fallthru
        _
      %p381 = scmp.le.s32.totalorder 1, %s24
      %p382 = scmp.lt.s32.totalorder %s24, 3
      %p383 = pnand %p381, %p382
      %p384 = pneg %p383
      // Predicated region
      $region65: #{tpu_custom_call.1} parent=5 // pred_check
        _
      $region66: #{tpu_custom_call.1} parent=5 // pred_check_branch
        %386 = sbr.rel (%p383) target = $region68
      $region67: #{tpu_custom_call.1} parent=5 // pred_region
        %s387 = ssub.s32 %s24, 1
        %s388 = sand.u32 %s37, 1
        %s389 = scalar_lea.sflag [#allocation3], %s388
        %s390 = sand.u32 %s37, 1
        %s391 = smul.addr %s390, 256
        %s392 = scalar_lea.vmem [#allocation2], %s391
        // Predicated region
        $region69: #{tpu_custom_call.1} parent=67 // pred_check
          %p393 = pneg %p50
        $region70: #{tpu_custom_call.1} parent=67 // pred_check_branch
          %395 = sbr.rel (%p393) target = $region72
        $region71: #{tpu_custom_call.1} parent=67 // pred_region
          %396 = dma.done %s389, 4096
        $region72: #{tpu_custom_call.1} parent=67 // pred_fallthru
          _
        %s397 = sand.u32 %s37, 1
        %s398 = scalar_lea.sflag [#allocation3], %s397
        %s399 = sand.u32 %s37, 1
        %s400 = smul.addr %s399, 256
        %s401 = scalar_lea.vmem [#allocation2], %s400
        %p402 = pneg %p50
        %p403 = pneg %p47
        %p404 = pneg %p71
        %p405 = pneg %p68
        %p406 = pneg %p92
        %p407 = pneg %p89
        %p408 = pneg %p113
        %p409 = pneg %p110
        %p410 = pneg %p134
        %p411 = pneg %p131
        %p412 = pneg %p155
        %p413 = pneg %p152
        %p414 = pneg %p176
        %p415 = pneg %p173
        %p416 = pneg %p197
        %p417 = pneg %p194
        %p418 = pneg %p218
        %p419 = pneg %p215
        %p420 = pneg %p239
        %p421 = pneg %p236
        %p422 = pneg %p260
        %p423 = pneg %p257
        %p424 = pneg %p281
        %p425 = pneg %p278
        %p426 = pneg %p307
        %p427 = pneg %p304
        %s428 = sand.u32 %s294, 1
        %s429 = scalar_lea.sflag [#allocation4], %s428
        %s430 = sand.u32 %s294, 1
        %s431 = smul.addr %s430, 256
        %s432 = scalar_lea.vmem [#allocation5], %s431
        %s433 = smul.u32 2, %s29
        %s434 = smul.u32 2, %s29
        %v436 = vld [vmem:[%s1] sm:$0xff]
        %v437 = vld [vmem:[%s1 + $0x8] sm:$0xff]
        %v438 = vld [vmem:[%s1 + $0x10] sm:$0xff]
        %v439 = vld [vmem:[%s1 + $0x18] sm:$0xff]
        %v440 = vld [vmem:[%s1 + $0x20] sm:$0xff]
        %v441 = vld [vmem:[%s1 + $0x28] sm:$0xff]
        %v442 = vld [vmem:[%s1 + $0x30] sm:$0xff]
        %v443 = vld [vmem:[%s1 + $0x38] sm:$0xff]
        %v444 = vld [vmem:[%s2] sm:$0xff]
        %v445 = vld [vmem:[%s2 + $0x8] sm:$0xff]
        %v446 = vld [vmem:[%s2 + $0x10] sm:$0xff]
        %v447 = vld [vmem:[%s2 + $0x18] sm:$0xff]
        %v448 = vld [vmem:[%s2 + $0x20] sm:$0xff]
        %v449 = vld [vmem:[%s2 + $0x28] sm:$0xff]
        %v450 = vld [vmem:[%s2 + $0x30] sm:$0xff]
        %v451 = vld [vmem:[%s2 + $0x38] sm:$0xff]
        %v452 = vld [vmem:[%s3] sm:$0xff]
        %v453 = vld [vmem:[%s3 + $0x8] sm:$0xff]
        %v454 = vld [vmem:[%s3 + $0x10] sm:$0xff]
        %v455 = vld [vmem:[%s3 + $0x18] sm:$0xff]
        %v456 = vld [vmem:[%s3 + $0x20] sm:$0xff]
        %v457 = vld [vmem:[%s3 + $0x28] sm:$0xff]
        %v458 = vld [vmem:[%s3 + $0x30] sm:$0xff]
        %v459 = vld [vmem:[%s3 + $0x38] sm:$0xff]
        %v460 = vld [vmem:[%s4] sm:$0xf]
        %v461 = vld [vmem:[%s4 + $0x4] sm:$0xf]
        %v462 = vld [vmem:[%s4 + $0x8] sm:$0xf]
        %v463 = vld [vmem:[%s4 + $0xc] sm:$0xf]
        %v464 = vld [vmem:[%s4 + $0x10] sm:$0xf]
        %v465 = vld [vmem:[%s4 + $0x14] sm:$0xf]
        %v466 = vld [vmem:[%s4 + $0x18] sm:$0xf]
        %v467 = vld [vmem:[%s4 + $0x1c] sm:$0xf]
        %v468 = vld [vmem:[%s5] sm:$0xf]
        %v469 = vld [vmem:[%s5 + $0x4] sm:$0xf]
        %v470 = vld [vmem:[%s5 + $0x8] sm:$0xf]
        %v471 = vld [vmem:[%s5 + $0xc] sm:$0xf]
        %v472 = vld [vmem:[%s5 + $0x10] sm:$0xf]
        %v473 = vld [vmem:[%s5 + $0x14] sm:$0xf]
        %v474 = vld [vmem:[%s5 + $0x18] sm:$0xf]
        %v475 = vld [vmem:[%s5 + $0x1c] sm:$0xf]
        %v476 = vld [vmem:[%s6] sm:$0xf]
        %v477 = vld [vmem:[%s6 + $0x4] sm:$0xf]
        %v478 = vld [vmem:[%s6 + $0x8] sm:$0xf]
        %v479 = vld [vmem:[%s6 + $0xc] sm:$0xf]
        %v480 = vld [vmem:[%s6 + $0x10] sm:$0xf]
        %v481 = vld [vmem:[%s6 + $0x14] sm:$0xf]
        %v482 = vld [vmem:[%s6 + $0x18] sm:$0xf]
        %v483 = vld [vmem:[%s6 + $0x1c] sm:$0xf]
        %v484 = vld [vmem:[%s10] sm:$0xf]
        %v485 = vld [vmem:[%s10 + $0x4] sm:$0xf]
        %v486 = vld [vmem:[%s10 + $0x8] sm:$0xf]
        %v487 = vld [vmem:[%s10 + $0xc] sm:$0xf]
        %v488 = vld [vmem:[%s10 + $0x10] sm:$0xf]
        %v489 = vld [vmem:[%s10 + $0x14] sm:$0xf]
        %v490 = vld [vmem:[%s10 + $0x18] sm:$0xf]
        %v491 = vld [vmem:[%s10 + $0x1c] sm:$0xf]
        %v492 = vld [vmem:[%s7] sm:$0xff]
        %v493 = vld [vmem:[%s7 + $0x8] sm:$0xff]
        %v494 = vld [vmem:[%s7 + $0x10] sm:$0xff]
        %v495 = vld [vmem:[%s7 + $0x18] sm:$0xff]
        %v496 = vld [vmem:[%s7 + $0x20] sm:$0xff]
        %v497 = vld [vmem:[%s7 + $0x28] sm:$0xff]
        %v498 = vld [vmem:[%s7 + $0x30] sm:$0xff]
        %v499 = vld [vmem:[%s7 + $0x38] sm:$0xff]
        %v500 = vld [vmem:[%s8] sm:$0xff]
        %v501 = vld [vmem:[%s8 + $0x8] sm:$0xff]
        %v502 = vld [vmem:[%s8 + $0x10] sm:$0xff]
        %v503 = vld [vmem:[%s8 + $0x18] sm:$0xff]
        %v504 = vld [vmem:[%s8 + $0x20] sm:$0xff]
        %v505 = vld [vmem:[%s8 + $0x28] sm:$0xff]
        %v506 = vld [vmem:[%s8 + $0x30] sm:$0xff]
        %v507 = vld [vmem:[%s8 + $0x38] sm:$0xff]
        %v508 = vld [vmem:[%s9] sm:$0xff]
        %v509 = vld [vmem:[%s9 + $0x8] sm:$0xff]
        %v510 = vld [vmem:[%s9 + $0x10] sm:$0xff]
        %v511 = vld [vmem:[%s9 + $0x18] sm:$0xff]
        %v512 = vld [vmem:[%s9 + $0x20] sm:$0xff]
        %v513 = vld [vmem:[%s9 + $0x28] sm:$0xff]
        %v514 = vld [vmem:[%s9 + $0x30] sm:$0xff]
        %v515 = vld [vmem:[%s9 + $0x38] sm:$0xff]
        %v516 = vld [vmem:[%s11] sm:$0xff]
        %v517 = vld [vmem:[%s11 + $0x8] sm:$0xff]
        %v518 = vld [vmem:[%s11 + $0x10] sm:$0xff]
        %v519 = vld [vmem:[%s11 + $0x18] sm:$0xff]
        %v520 = vld [vmem:[%s11 + $0x20] sm:$0xff]
        %v521 = vld [vmem:[%s11 + $0x28] sm:$0xff]
        %v522 = vld [vmem:[%s11 + $0x30] sm:$0xff]
        %v523 = vld [vmem:[%s11 + $0x38] sm:$0xff]
        %v524 = vld [vmem:[%s392] sm:$0xff]
        %v525 = vld [vmem:[%s392 + $0x8] sm:$0xff]
        %v526 = vld [vmem:[%s392 + $0x10] sm:$0xff]
        %v527 = vld [vmem:[%s392 + $0x18] sm:$0xff]
        %v528 = vld [vmem:[%s392 + $0x20] sm:$0xff]
        %v529 = vld [vmem:[%s392 + $0x28] sm:$0xff]
        %v530 = vld [vmem:[%s392 + $0x30] sm:$0xff]
        %v531 = vld [vmem:[%s392 + $0x38] sm:$0xff]
        %v532 = vld [vmem:[%s392 + $0x40] sm:$0xff]
        %v533 = vld [vmem:[%s392 + $0x48] sm:$0xff]
        %v534 = vld [vmem:[%s392 + $0x50] sm:$0xff]
        %v535 = vld [vmem:[%s392 + $0x58] sm:$0xff]
        %v536 = vld [vmem:[%s392 + $0x60] sm:$0xff]
        %v537 = vld [vmem:[%s392 + $0x68] sm:$0xff]
        %v538 = vld [vmem:[%s392 + $0x70] sm:$0xff]
        %v539 = vld [vmem:[%s392 + $0x78] sm:$0xff]
        %vm540 = vcmask 523264
        %v542 = vsel %vm540, %v436, 0
        %v545 = vsel %vm540, %v437, 0
        %v548 = vsel %vm540, %v438, 0
        %v551 = vsel %vm540, %v439, 0
        %v554 = vsel %vm540, %v440, 0
        %v557 = vsel %vm540, %v441, 0
        %v560 = vsel %vm540, %v442, 0
        %v563 = vsel %vm540, %v443, 0
        %565 = vmatprep.subr.mxu0 %v525
        %566 = vmatpush1.msra.mxu0 %v524
        %567 = vmatprep.subr.mxu0 %v527
        %568 = vmatpush1.msra.mxu0 %v526
        %569 = vmatprep.subr.mxu0 %v529
        %570 = vmatpush1.msra.mxu0 %v528
        %571 = vmatprep.subr.mxu0 %v531
        %572 = vmatpush1.msra.mxu0 %v530
        %573 = vmatprep.subr.mxu0 %v533
        %574 = vmatpush1.msra.mxu0 %v532
        %575 = vmatprep.subr.mxu0 %v535
        %576 = vmatpush1.msra.mxu0 %v534
        %577 = vmatprep.subr.mxu0 %v537
        %578 = vmatpush1.msra.mxu0 %v536
        %579 = vmatprep.subr.mxu0 %v539
        %580 = vmatpush1.msra.mxu0 %v538
        %581 = vmatprep.subr.mxu0 0.0
        %582 = vmatpush1.msra.mxu0 0.0
        %583 = vmatprep.subr.mxu0 0.0
        %584 = vmatpush1.msra.mxu0 0.0
        %585 = vmatprep.subr.mxu0 0.0
        %586 = vmatpush1.msra.mxu0 0.0
        %587 = vmatprep.subr.mxu0 0.0
        %588 = vmatpush1.msra.mxu0 0.0
        %589 = vmatprep.subr.mxu0 0.0
        %590 = vmatpush1.msra.mxu0 0.0
        %591 = vmatprep.subr.mxu0 0.0
        %592 = vmatpush1.msra.mxu0 0.0
        %593 = vmatprep.subr.mxu0 0.0
        %594 = vmatpush1.msra.mxu0 0.0
        %595 = vmatprep.subr.mxu0 0.0
        %596 = vmatpush1.msra.mxu0 0.0
        %597 = vmatprep.subr.mxu0 0.0
        %598 = vmatpush1.msra.mxu0 0.0
        %599 = vmatprep.subr.mxu0 0.0
        %600 = vmatpush1.msra.mxu0 0.0
        %601 = vmatprep.subr.mxu0 0.0
        %602 = vmatpush1.msra.mxu0 0.0
        %603 = vmatprep.subr.mxu0 0.0
        %604 = vmatpush1.msra.mxu0 0.0
        %605 = vmatprep.subr.mxu0 0.0
        %606 = vmatpush1.msra.mxu0 0.0
        %607 = vmatprep.subr.mxu0 0.0
        %608 = vmatpush1.msra.mxu0 0.0
        %609 = vmatprep.subr.mxu0 0.0
        %610 = vmatpush1.msra.mxu0 0.0
        %611 = vmatprep.subr.mxu0 0.0
        %612 = vmatpush1.msra.mxu0 0.0
        %613 = vmatprep.subr.mxu0 0.0
        %614 = vmatpush1.msra.mxu0 0.0
        %615 = vmatprep.subr.mxu0 0.0
        %616 = vmatpush1.msra.mxu0 0.0
        %617 = vmatprep.subr.mxu0 0.0
        %618 = vmatpush1.msra.mxu0 0.0
        %619 = vmatprep.subr.mxu0 0.0
        %620 = vmatpush1.msra.mxu0 0.0
        %621 = vmatprep.subr.mxu0 0.0
        %622 = vmatpush1.msra.mxu0 0.0
        %623 = vmatprep.subr.mxu0 0.0
        %624 = vmatpush1.msra.mxu0 0.0
        %625 = vmatprep.subr.mxu0 0.0
        %626 = vmatpush1.msra.mxu0 0.0
        %627 = vmatprep.subr.mxu0 0.0
        %628 = vmatpush1.msra.mxu0 0.0
        %629 = vmatprep.mubr.f32.mxu0 0.0
        %630 = vmatmul.mubr.f32.gmra.mrb[0].mxu0 %v542
        %v631 = vpop.f32.mrb[0].mxu0
        %v632 = vadd.f32 0.0, %v631
        %v633 = vpop.f32.mrb[0].mxu0
        %v634 = vadd.f32 0.0, %v633
        %635 = vmatprep.mubr.f32.mxu0 0.0
        %636 = vmatmul.mubr.f32.gmra.mrb[0].mxu0 %v545
        %v637 = vpop.f32.mrb[0].mxu0
        %v638 = vadd.f32 0.0, %v637
        %v639 = vpop.f32.mrb[0].mxu0
        %v640 = vadd.f32 0.0, %v639
        %641 = vmatprep.mubr.f32.mxu0 0.0
        %642 = vmatmul.mubr.f32.gmra.mrb[0].mxu0 %v548
        %v643 = vpop.f32.mrb[0].mxu0
        %v644 = vadd.f32 0.0, %v643
        %v645 = vpop.f32.mrb[0].mxu0
        %v646 = vadd.f32 0.0, %v645
        %647 = vmatprep.mubr.f32.mxu0 0.0
        %648 = vmatmul.mubr.f32.gmra.mrb[0].mxu0 %v551
        %v649 = vpop.f32.mrb[0].mxu0
        %v650 = vadd.f32 0.0, %v649
        %v651 = vpop.f32.mrb[0].mxu0
        %v652 = vadd.f32 0.0, %v651
        %653 = vmatprep.mubr.f32.mxu0 0.0
        %654 = vmatmul.mubr.f32.gmra.mrb[0].mxu0 %v554
        %v655 = vpop.f32.mrb[0].mxu0
        %v656 = vadd.f32 0.0, %v655
        %v657 = vpop.f32.mrb[0].mxu0
        %v658 = vadd.f32 0.0, %v657
        %659 = vmatprep.mubr.f32.mxu0 0.0
        %660 = vmatmul.mubr.f32.gmra.mrb[0].mxu0 %v557
        %v661 = vpop.f32.mrb[0].mxu0
        %v662 = vadd.f32 0.0, %v661
        %v663 = vpop.f32.mrb[0].mxu0
        %v664 = vadd.f32 0.0, %v663
        %665 = vmatprep.mubr.f32.mxu0 0.0
        %666 = vmatmul.mubr.f32.gmra.mrb[0].mxu0 %v560
        %v667 = vpop.f32.mrb[0].mxu0
        %v668 = vadd.f32 0.0, %v667
        %v669 = vpop.f32.mrb[0].mxu0
        %v670 = vadd.f32 0.0, %v669
        %671 = vmatprep.mubr.f32.mxu0 0.0
        %672 = vmatmul.mubr.f32.gmra.mrb[0].mxu0 %v563
        %v673 = vpop.f32.mrb[0].mxu0
        %v674 = vadd.f32 0.0, %v673
        %v675 = vpop.f32.mrb[0].mxu0
        %v676 = vadd.f32 0.0, %v675
        %677 = vdwg.mxu0
        %v678 = vadd.f32 %v632, %v634
        %679 = vadd.xlane.f32.xlu0 %v678
        %v680 = vpop.xlane.xlu0 %679
        %v681 = vadd.f32 %v638, %v640
        %682 = vadd.xlane.f32.xlu0 %v681
        %v683 = vpop.xlane.xlu0 %682
        %v684 = vadd.f32 %v644, %v646
        %685 = vadd.xlane.f32.xlu0 %v684
        %v686 = vpop.xlane.xlu0 %685
        %v687 = vadd.f32 %v650, %v652
        %688 = vadd.xlane.f32.xlu0 %v687
        %v689 = vpop.xlane.xlu0 %688
        %v690 = vadd.f32 %v656, %v658
        %691 = vadd.xlane.f32.xlu0 %v690
        %v692 = vpop.xlane.xlu0 %691
        %v693 = vadd.f32 %v662, %v664
        %694 = vadd.xlane.f32.xlu0 %v693
        %v695 = vpop.xlane.xlu0 %694
        %v696 = vadd.f32 %v668, %v670
        %697 = vadd.xlane.f32.xlu0 %v696
        %v698 = vpop.xlane.xlu0 %697
        %v699 = vadd.f32 %v674, %v676
        %700 = vadd.xlane.f32.xlu0 %v699
        %v701 = vpop.xlane.xlu0 %700
        %v702 = vmul.f32 %v680, 0.001953125
        %v703 = vmul.f32 %v683, 0.001953125
        %v704 = vmul.f32 %v686, 0.001953125
        %v705 = vmul.f32 %v689, 0.001953125
        %v706 = vmul.f32 %v692, 0.001953125
        %v707 = vmul.f32 %v695, 0.001953125
        %v708 = vmul.f32 %v698, 0.001953125
        %v709 = vmul.f32 %v701, 0.001953125
        %v710 = vsub.f32 %v524, %v702
        %v711 = vsub.f32 %v525, %v702
        %v712 = vsub.f32 %v526, %v703
        %v713 = vsub.f32 %v527, %v703
        %v714 = vsub.f32 %v528, %v704
        %v715 = vsub.f32 %v529, %v704
        %v716 = vsub.f32 %v530, %v705
        %v717 = vsub.f32 %v531, %v705
        %v718 = vsub.f32 %v532, %v706
        %v719 = vsub.f32 %v533, %v706
        %v720 = vsub.f32 %v534, %v707
        %v721 = vsub.f32 %v535, %v707
        %v722 = vsub.f32 %v536, %v708
        %v723 = vsub.f32 %v537, %v708
        %v724 = vsub.f32 %v538, %v709
        %v725 = vsub.f32 %v539, %v709
        %v726 = vmul.f32 %v710, %v710
        %v727 = vmul.f32 %v711, %v711
        %v728 = vmul.f32 %v712, %v712
        %v729 = vmul.f32 %v713, %v713
        %v730 = vmul.f32 %v714, %v714
        %v731 = vmul.f32 %v715, %v715
        %v732 = vmul.f32 %v716, %v716
        %v733 = vmul.f32 %v717, %v717
        %v734 = vmul.f32 %v718, %v718
        %v735 = vmul.f32 %v719, %v719
        %v736 = vmul.f32 %v720, %v720
        %v737 = vmul.f32 %v721, %v721
        %v738 = vmul.f32 %v722, %v722
        %v739 = vmul.f32 %v723, %v723
        %v740 = vmul.f32 %v724, %v724
        %v741 = vmul.f32 %v725, %v725
        %742 = vmatprep.subr.mxu0 %v727
        %743 = vmatpush1.msra.mxu0 %v726
        %744 = vmatprep.subr.mxu0 %v729
        %745 = vmatpush1.msra.mxu0 %v728
        %746 = vmatprep.subr.mxu0 %v731
        %747 = vmatpush1.msra.mxu0 %v730
        %748 = vmatprep.subr.mxu0 %v733
        %749 = vmatpush1.msra.mxu0 %v732
        %750 = vmatprep.subr.mxu0 %v735
        %751 = vmatpush1.msra.mxu0 %v734
        %752 = vmatprep.subr.mxu0 %v737
        %753 = vmatpush1.msra.mxu0 %v736
        %754 = vmatprep.subr.mxu0 %v739
        %755 = vmatpush1.msra.mxu0 %v738
        %756 = vmatprep.subr.mxu0 %v741
        %757 = vmatpush1.msra.mxu0 %v740
        %758 = vmatprep.subr.mxu0 0.0
        %759 = vmatpush1.msra.mxu0 0.0
        %760 = vmatprep.subr.mxu0 0.0
        %761 = vmatpush1.msra.mxu0 0.0
        %762 = vmatprep.subr.mxu0 0.0
        %763 = vmatpush1.msra.mxu0 0.0
        %764 = vmatprep.subr.mxu0 0.0
        %765 = vmatpush1.msra.mxu0 0.0
        %766 = vmatprep.subr.mxu0 0.0
        %767 = vmatpush1.msra.mxu0 0.0
        %768 = vmatprep.subr.mxu0 0.0
        %769 = vmatpush1.msra.mxu0 0.0
        %770 = vmatprep.subr.mxu0 0.0
        %771 = vmatpush1.msra.mxu0 0.0
        %772 = vmatprep.subr.mxu0 0.0
        %773 = vmatpush1.msra.mxu0 0.0
        %774 = vmatprep.subr.mxu0 0.0
        %775 = vmatpush1.msra.mxu0 0.0
        %776 = vmatprep.subr.mxu0 0.0
        %777 = vmatpush1.msra.mxu0 0.0
        %778 = vmatprep.subr.mxu0 0.0
        %779 = vmatpush1.msra.mxu0 0.0
        %780 = vmatprep.subr.mxu0 0.0
        %781 = vmatpush1.msra.mxu0 0.0
        %782 = vmatprep.subr.mxu0 0.0
        %783 = vmatpush1.msra.mxu0 0.0
        %784 = vmatprep.subr.mxu0 0.0
        %785 = vmatpush1.msra.mxu0 0.0
        %786 = vmatprep.subr.mxu0 0.0
        %787 = vmatpush1.msra.mxu0 0.0
        %788 = vmatprep.subr.mxu0 0.0
        %789 = vmatpush1.msra.mxu0 0.0
        %790 = vmatprep.subr.mxu0 0.0
        %791 = vmatpush1.msra.mxu0 0.0
        %792 = vmatprep.subr.mxu0 0.0
        %793 = vmatpush1.msra.mxu0 0.0
        %794 = vmatprep.subr.mxu0 0.0
        %795 = vmatpush1.msra.mxu0 0.0
        %796 = vmatprep.subr.mxu0 0.0
        %797 = vmatpush1.msra.mxu0 0.0
        %798 = vmatprep.subr.mxu0 0.0
        %799 = vmatpush1.msra.mxu0 0.0
        %800 = vmatprep.subr.mxu0 0.0
        %801 = vmatpush1.msra.mxu0 0.0
        %802 = vmatprep.subr.mxu0 0.0
        %803 = vmatpush1.msra.mxu0 0.0
        %804 = vmatprep.subr.mxu0 0.0
        %805 = vmatpush1.msra.mxu0 0.0
        %806 = vmatprep.mubr.f32.mxu0 0.0
        %807 = vmatmul.mubr.f32.gmra.mrb[0].mxu0 %v542
        %v808 = vpop.f32.mrb[0].mxu0
        %v809 = vadd.f32 0.0, %v808
        %v810 = vpop.f32.mrb[0].mxu0
        %v811 = vadd.f32 0.0, %v810
        %812 = vmatprep.mubr.f32.mxu0 0.0
        %813 = vmatmul.mubr.f32.gmra.mrb[0].mxu0 %v545
        %v814 = vpop.f32.mrb[0].mxu0
        %v815 = vadd.f32 0.0, %v814
        %v816 = vpop.f32.mrb[0].mxu0
        %v817 = vadd.f32 0.0, %v816
        %818 = vmatprep.mubr.f32.mxu0 0.0
        %819 = vmatmul.mubr.f32.gmra.mrb[0].mxu0 %v548
        %v820 = vpop.f32.mrb[0].mxu0
        %v821 = vadd.f32 0.0, %v820
        %v822 = vpop.f32.mrb[0].mxu0
        %v823 = vadd.f32 0.0, %v822
        %824 = vmatprep.mubr.f32.mxu0 0.0
        %825 = vmatmul.mubr.f32.gmra.mrb[0].mxu0 %v551
        %v826 = vpop.f32.mrb[0].mxu0
        %v827 = vadd.f32 0.0, %v826
        %v828 = vpop.f32.mrb[0].mxu0
        %v829 = vadd.f32 0.0, %v828
        %830 = vmatprep.mubr.f32.mxu0 0.0
        %831 = vmatmul.mubr.f32.gmra.mrb[0].mxu0 %v554
        %v832 = vpop.f32.mrb[0].mxu0
        %v833 = vadd.f32 0.0, %v832
        %v834 = vpop.f32.mrb[0].mxu0
        %v835 = vadd.f32 0.0, %v834
        %836 = vmatprep.mubr.f32.mxu0 0.0
        %837 = vmatmul.mubr.f32.gmra.mrb[0].mxu0 %v557
        %v838 = vpop.f32.mrb[0].mxu0
        %v839 = vadd.f32 0.0, %v838
        %v840 = vpop.f32.mrb[0].mxu0
        %v841 = vadd.f32 0.0, %v840
        %842 = vmatprep.mubr.f32.mxu0 0.0
        %843 = vmatmul.mubr.f32.gmra.mrb[0].mxu0 %v560
        %v844 = vpop.f32.mrb[0].mxu0
        %v845 = vadd.f32 0.0, %v844
        %v846 = vpop.f32.mrb[0].mxu0
        %v847 = vadd.f32 0.0, %v846
        %848 = vmatprep.mubr.f32.mxu0 0.0
        %849 = vmatmul.mubr.f32.gmra.mrb[0].mxu0 %v563
        %v850 = vpop.f32.mrb[0].mxu0
        %v851 = vadd.f32 0.0, %v850
        %v852 = vpop.f32.mrb[0].mxu0
        %v853 = vadd.f32 0.0, %v852
        %854 = vdwg.mxu0
        %v855 = vadd.f32 %v809, %v811
        %856 = vadd.xlane.f32.xlu0 %v855
        %v857 = vpop.xlane.xlu0 %856
        %v858 = vadd.f32 %v815, %v817
        %859 = vadd.xlane.f32.xlu0 %v858
        %v860 = vpop.xlane.xlu0 %859
        %v861 = vadd.f32 %v821, %v823
        %862 = vadd.xlane.f32.xlu0 %v861
        %v863 = vpop.xlane.xlu0 %862
        %v864 = vadd.f32 %v827, %v829
        %865 = vadd.xlane.f32.xlu0 %v864
        %v866 = vpop.xlane.xlu0 %865
        %v867 = vadd.f32 %v833, %v835
        %868 = vadd.xlane.f32.xlu0 %v867
        %v869 = vpop.xlane.xlu0 %868
        %v870 = vadd.f32 %v839, %v841
        %871 = vadd.xlane.f32.xlu0 %v870
        %v872 = vpop.xlane.xlu0 %871
        %v873 = vadd.f32 %v845, %v847
        %874 = vadd.xlane.f32.xlu0 %v873
        %v875 = vpop.xlane.xlu0 %874
        %v876 = vadd.f32 %v851, %v853
        %877 = vadd.xlane.f32.xlu0 %v876
        %v878 = vpop.xlane.xlu0 %877
        %v879 = vmul.f32 %v857, 0.001953125
        %v880 = vmul.f32 %v860, 0.001953125
        %v881 = vmul.f32 %v863, 0.001953125
        %v882 = vmul.f32 %v866, 0.001953125
        %v883 = vmul.f32 %v869, 0.001953125
        %v884 = vmul.f32 %v872, 0.001953125
        %v885 = vmul.f32 %v875, 0.001953125
        %v886 = vmul.f32 %v878, 0.001953125
        %v887 = vadd.f32 %v879, 1e-06
        %v888 = vadd.f32 %v880, 1e-06
        %v889 = vadd.f32 %v881, 1e-06
        %v890 = vadd.f32 %v882, 1e-06
        %v891 = vadd.f32 %v883, 1e-06
        %v892 = vadd.f32 %v884, 1e-06
        %v893 = vadd.f32 %v885, 1e-06
        %v894 = vadd.f32 %v886, 1e-06
        %v895 = vrsqrt.pop %v887
        %v896 = vrsqrt.pop %v888
        %v897 = vrsqrt.pop %v889
        %v898 = vrsqrt.pop %v890
        %v899 = vrsqrt.pop %v891
        %v900 = vrsqrt.pop %v892
        %v901 = vrsqrt.pop %v893
        %v902 = vrsqrt.pop %v894
        %v903 = vmul.f32 %v444, %v895
        %v904 = vmul.f32 %v445, %v896
        %v905 = vmul.f32 %v446, %v897
        %v906 = vmul.f32 %v447, %v898
        %v907 = vmul.f32 %v448, %v899
        %v908 = vmul.f32 %v449, %v900
        %v909 = vmul.f32 %v450, %v901
        %v910 = vmul.f32 %v451, %v902
        %v911 = vmul.f32 %v702, %v903
        %v912 = vmul.f32 %v703, %v904
        %v913 = vmul.f32 %v704, %v905
        %v914 = vmul.f32 %v705, %v906
        %v915 = vmul.f32 %v706, %v907
        %v916 = vmul.f32 %v707, %v908
        %v917 = vmul.f32 %v708, %v909
        %v918 = vmul.f32 %v709, %v910
        %v919 = vsub.f32 %v452, %v911
        %v920 = vsub.f32 %v453, %v912
        %v921 = vsub.f32 %v454, %v913
        %v922 = vsub.f32 %v455, %v914
        %v923 = vsub.f32 %v456, %v915
        %v924 = vsub.f32 %v457, %v916
        %v925 = vsub.f32 %v458, %v917
        %v926 = vsub.f32 %v459, %v918
        %928 = vset.pattern.permute.xlu0 0
        %929 = vperm.xlu0 %928, %v903
        %v930 = vpop.permute.xlu0 %929
        %933 = vset.pattern.permute.xlu0 0
        %934 = vperm.xlu0 %933, %v904
        %v935 = vpop.permute.xlu0 %934
        %938 = vset.pattern.permute.xlu0 0
        %939 = vperm.xlu0 %938, %v905
        %v940 = vpop.permute.xlu0 %939
        %943 = vset.pattern.permute.xlu0 0
        %944 = vperm.xlu0 %943, %v906
        %v945 = vpop.permute.xlu0 %944
        %948 = vset.pattern.permute.xlu0 0
        %949 = vperm.xlu0 %948, %v907
        %v950 = vpop.permute.xlu0 %949
        %953 = vset.pattern.permute.xlu0 0
        %954 = vperm.xlu0 %953, %v908
        %v955 = vpop.permute.xlu0 %954
        %958 = vset.pattern.permute.xlu0 0
        %959 = vperm.xlu0 %958, %v909
        %v960 = vpop.permute.xlu0 %959
        %963 = vset.pattern.permute.xlu0 0
        %964 = vperm.xlu0 %963, %v910
        %v965 = vpop.permute.xlu0 %964
        %v967 = vmul.f32 %v524, %v930
        %v968 = vmul.f32 %v525, %v930
        %v969 = vmul.f32 %v526, %v935
        %v970 = vmul.f32 %v527, %v935
        %v971 = vmul.f32 %v528, %v940
        %v972 = vmul.f32 %v529, %v940
        %v973 = vmul.f32 %v530, %v945
        %v974 = vmul.f32 %v531, %v945
        %v975 = vmul.f32 %v532, %v950
        %v976 = vmul.f32 %v533, %v950
        %v977 = vmul.f32 %v534, %v955
        %v978 = vmul.f32 %v535, %v955
        %v979 = vmul.f32 %v536, %v960
        %v980 = vmul.f32 %v537, %v960
        %v981 = vmul.f32 %v538, %v965
        %v982 = vmul.f32 %v539, %v965
        %984 = vset.pattern.permute.xlu0 0
        %985 = vperm.xlu0 %984, %v919
        %v986 = vpop.permute.xlu0 %985
        %989 = vset.pattern.permute.xlu0 0
        %990 = vperm.xlu0 %989, %v920
        %v991 = vpop.permute.xlu0 %990
        %994 = vset.pattern.permute.xlu0 0
        %995 = vperm.xlu0 %994, %v921
        %v996 = vpop.permute.xlu0 %995
        %999 = vset.pattern.permute.xlu0 0
        %1000 = vperm.xlu0 %999, %v922
        %v1001 = vpop.permute.xlu0 %1000
        %1004 = vset.pattern.permute.xlu0 0
        %1005 = vperm.xlu0 %1004, %v923
        %v1006 = vpop.permute.xlu0 %1005
        %1009 = vset.pattern.permute.xlu0 0
        %1010 = vperm.xlu0 %1009, %v924
        %v1011 = vpop.permute.xlu0 %1010
        %1014 = vset.pattern.permute.xlu0 0
        %1015 = vperm.xlu0 %1014, %v925
        %v1016 = vpop.permute.xlu0 %1015
        %1019 = vset.pattern.permute.xlu0 0
        %1020 = vperm.xlu0 %1019, %v926
        %v1021 = vpop.permute.xlu0 %1020
        %v1023 = vadd.f32 %v967, %v986
        %v1024 = vadd.f32 %v968, %v986
        %v1025 = vadd.f32 %v969, %v991
        %v1026 = vadd.f32 %v970, %v991
        %v1027 = vadd.f32 %v971, %v996
        %v1028 = vadd.f32 %v972, %v996
        %v1029 = vadd.f32 %v973, %v1001
        %v1030 = vadd.f32 %v974, %v1001
        %v1031 = vadd.f32 %v975, %v1006
        %v1032 = vadd.f32 %v976, %v1006
        %v1033 = vadd.f32 %v977, %v1011
        %v1034 = vadd.f32 %v978, %v1011
        %v1035 = vadd.f32 %v979, %v1016
        %v1036 = vadd.f32 %v980, %v1016
        %v1037 = vadd.f32 %v981, %v1021
        %v1038 = vadd.f32 %v982, %v1021
        %v1039 = vpack.c.bf16 %v1025, %v1023
        %v1040 = vpack.c.bf16 %v1026, %v1024
        %v1041 = vpack.c.bf16 %v1029, %v1027
        %v1042 = vpack.c.bf16 %v1030, %v1028
        %v1043 = vpack.c.bf16 %v1033, %v1031
        %v1044 = vpack.c.bf16 %v1034, %v1032
        %v1045 = vpack.c.bf16 %v1037, %v1035
        %v1046 = vpack.c.bf16 %v1038, %v1036
        %1048 = vset.pattern.permute.xlu0 0
        %1049 = vperm.xlu0 %1048, %v492
        %v1050 = vpop.permute.xlu0 %1049
        %1053 = vset.pattern.permute.xlu0 0
        %1054 = vperm.xlu0 %1053, %v493
        %v1055 = vpop.permute.xlu0 %1054
        %1058 = vset.pattern.permute.xlu0 0
        %1059 = vperm.xlu0 %1058, %v494
        %v1060 = vpop.permute.xlu0 %1059
        %1063 = vset.pattern.permute.xlu0 0
        %1064 = vperm.xlu0 %1063, %v495
        %v1065 = vpop.permute.xlu0 %1064
        %1068 = vset.pattern.permute.xlu0 0
        %1069 = vperm.xlu0 %1068, %v496
        %v1070 = vpop.permute.xlu0 %1069
        %1073 = vset.pattern.permute.xlu0 0
        %1074 = vperm.xlu0 %1073, %v497
        %v1075 = vpop.permute.xlu0 %1074
        %1078 = vset.pattern.permute.xlu0 0
        %1079 = vperm.xlu0 %1078, %v498
        %v1080 = vpop.permute.xlu0 %1079
        %1083 = vset.pattern.permute.xlu0 0
        %1084 = vperm.xlu0 %1083, %v499
        %v1085 = vpop.permute.xlu0 %1084
        %v1095 = vunpack.c.l.b16 %v460
        %v1096 = vunpack.c.l.b16 %v461
        %v1097 = vunpack.c.l.b16 %v462
        %v1098 = vunpack.c.l.b16 %v463
        %v1099 = vunpack.c.l.b16 %v464
        %v1100 = vunpack.c.l.b16 %v465
        %v1101 = vunpack.c.l.b16 %v466
        %v1102 = vunpack.c.l.b16 %v467
        %v1103 = vpack.c.b16 %v1096, %v1095
        %v1104 = vpack.c.b16 %v1098, %v1097
        %v1105 = vpack.c.b16 %v1100, %v1099
        %v1106 = vpack.c.b16 %v1102, %v1101
        %v1108 = vsel %vm540, %v1103, 0
        %v1111 = vsel %vm540, %v1104, 0
        %v1114 = vsel %vm540, %v1105, 0
        %v1117 = vsel %vm540, %v1106, 0
        %1119 = vmatprep.subr.bf16.mxu0 %v1040
        %1120 = vmatpush1.bf16.msra.mxu0 %v1039
        %1121 = vmatprep.subr.bf16.mxu0 %v1042
        %1122 = vmatpush1.bf16.msra.mxu0 %v1041
        %1123 = vmatprep.subr.bf16.mxu0 %v1044
        %1124 = vmatpush1.bf16.msra.mxu0 %v1043
        %1125 = vmatprep.subr.bf16.mxu0 %v1046
        %1126 = vmatpush1.bf16.msra.mxu0 %v1045
        %1127 = vmatprep.subr.bf16.mxu0 0
        %1128 = vmatpush1.bf16.msra.mxu0 0
        %1129 = vmatprep.subr.bf16.mxu0 0
        %1130 = vmatpush1.bf16.msra.mxu0 0
        %1131 = vmatprep.subr.bf16.mxu0 0
        %1132 = vmatpush1.bf16.msra.mxu0 0
        %1133 = vmatprep.subr.bf16.mxu0 0
        %1134 = vmatpush1.bf16.msra.mxu0 0
        %1135 = vmatprep.subr.bf16.mxu0 0
        %1136 = vmatpush1.bf16.msra.mxu0 0
        %1137 = vmatprep.subr.bf16.mxu0 0
        %1138 = vmatpush1.bf16.msra.mxu0 0
        %1139 = vmatprep.subr.bf16.mxu0 0
        %1140 = vmatpush1.bf16.msra.mxu0 0
        %1141 = vmatprep.subr.bf16.mxu0 0
        %1142 = vmatpush1.bf16.msra.mxu0 0
        %1143 = vmatprep.subr.bf16.mxu0 0
        %1144 = vmatpush1.bf16.msra.mxu0 0
        %1145 = vmatprep.subr.bf16.mxu0 0
        %1146 = vmatpush1.bf16.msra.mxu0 0
        %1147 = vmatprep.subr.bf16.mxu0 0
        %1148 = vmatpush1.bf16.msra.mxu0 0
        %1149 = vmatprep.subr.bf16.mxu0 0
        %1150 = vmatpush1.bf16.msra.mxu0 0
        %1151 = vmatprep.mubr.bf16.mxu0 0
        %1152 = vmatmul.mubr.bf16.gmra.mrb[0].mxu0 %v1108
        %v1153 = vpop.f32.mrb[0].mxu0
        %v1154 = vadd.f32 %v1050, %v1153
        %v1155 = vpop.f32.mrb[0].mxu0
        %v1156 = vadd.f32 %v1050, %v1155
        %v1157 = vpop.f32.mrb[0].mxu0
        %v1158 = vadd.f32 %v1055, %v1157
        %v1159 = vpop.f32.mrb[0].mxu0
        %v1160 = vadd.f32 %v1055, %v1159
        %1161 = vmatprep.mubr.bf16.mxu0 0
        %1162 = vmatmul.mubr.bf16.gmra.mrb[0].mxu0 %v1111
        %v1163 = vpop.f32.mrb[0].mxu0
        %v1164 = vadd.f32 %v1060, %v1163
        %v1165 = vpop.f32.mrb[0].mxu0
        %v1166 = vadd.f32 %v1060, %v1165
        %v1167 = vpop.f32.mrb[0].mxu0
        %v1168 = vadd.f32 %v1065, %v1167
        %v1169 = vpop.f32.mrb[0].mxu0
        %v1170 = vadd.f32 %v1065, %v1169
        %1171 = vmatprep.mubr.bf16.mxu0 0
        %1172 = vmatmul.mubr.bf16.gmra.mrb[0].mxu0 %v1114
        %v1173 = vpop.f32.mrb[0].mxu0
        %v1174 = vadd.f32 %v1070, %v1173
        %v1175 = vpop.f32.mrb[0].mxu0
        %v1176 = vadd.f32 %v1070, %v1175
        %v1177 = vpop.f32.mrb[0].mxu0
        %v1178 = vadd.f32 %v1075, %v1177
        %v1179 = vpop.f32.mrb[0].mxu0
        %v1180 = vadd.f32 %v1075, %v1179
        %1181 = vmatprep.mubr.bf16.mxu0 0
        %1182 = vmatmul.mubr.bf16.gmra.mrb[0].mxu0 %v1117
        %v1183 = vpop.f32.mrb[0].mxu0
        %v1184 = vadd.f32 %v1080, %v1183
        %v1185 = vpop.f32.mrb[0].mxu0
        %v1186 = vadd.f32 %v1080, %v1185
        %v1187 = vpop.f32.mrb[0].mxu0
        %v1188 = vadd.f32 %v1085, %v1187
        %v1189 = vpop.f32.mrb[0].mxu0
        %v1190 = vadd.f32 %v1085, %v1189
        %1191 = vdwg.mxu0
        %v1192 = vmul.f32 %v1154, 0.17677669
        %v1193 = vmul.f32 %v1156, 0.17677669
        %v1194 = vmul.f32 %v1158, 0.17677669
        %v1195 = vmul.f32 %v1160, 0.17677669
        %v1196 = vmul.f32 %v1164, 0.17677669
        %v1197 = vmul.f32 %v1166, 0.17677669
        %v1198 = vmul.f32 %v1168, 0.17677669
        %v1199 = vmul.f32 %v1170, 0.17677669
        %v1200 = vmul.f32 %v1174, 0.17677669
        %v1201 = vmul.f32 %v1176, 0.17677669
        %v1202 = vmul.f32 %v1178, 0.17677669
        %v1203 = vmul.f32 %v1180, 0.17677669
        %v1204 = vmul.f32 %v1184, 0.17677669
        %v1205 = vmul.f32 %v1186, 0.17677669
        %v1206 = vmul.f32 %v1188, 0.17677669
        %v1207 = vmul.f32 %v1190, 0.17677669
        %v1208 = vpack.c.bf16 %v1194, %v1192
        %v1209 = vpack.c.bf16 %v1195, %v1193
        %v1210 = vpack.c.bf16 %v1198, %v1196
        %v1211 = vpack.c.bf16 %v1199, %v1197
        %v1212 = vpack.c.bf16 %v1202, %v1200
        %v1213 = vpack.c.bf16 %v1203, %v1201
        %v1214 = vpack.c.bf16 %v1206, %v1204
        %v1215 = vpack.c.bf16 %v1207, %v1205
        %1217 = vset.pattern.permute.xlu0 0
        %1218 = vperm.xlu0 %1217, %v500
        %v1219 = vpop.permute.xlu0 %1218
        %1222 = vset.pattern.permute.xlu0 0
        %1223 = vperm.xlu0 %1222, %v501
        %v1224 = vpop.permute.xlu0 %1223
        %1227 = vset.pattern.permute.xlu0 0
        %1228 = vperm.xlu0 %1227, %v502
        %v1229 = vpop.permute.xlu0 %1228
        %1232 = vset.pattern.permute.xlu0 0
        %1233 = vperm.xlu0 %1232, %v503
        %v1234 = vpop.permute.xlu0 %1233
        %1237 = vset.pattern.permute.xlu0 0
        %1238 = vperm.xlu0 %1237, %v504
        %v1239 = vpop.permute.xlu0 %1238
        %1242 = vset.pattern.permute.xlu0 0
        %1243 = vperm.xlu0 %1242, %v505
        %v1244 = vpop.permute.xlu0 %1243
        %1247 = vset.pattern.permute.xlu0 0
        %1248 = vperm.xlu0 %1247, %v506
        %v1249 = vpop.permute.xlu0 %1248
        %1252 = vset.pattern.permute.xlu0 0
        %1253 = vperm.xlu0 %1252, %v507
        %v1254 = vpop.permute.xlu0 %1253
        %v1264 = vunpack.c.l.b16 %v468
        %v1265 = vunpack.c.l.b16 %v469
        %v1266 = vunpack.c.l.b16 %v470
        %v1267 = vunpack.c.l.b16 %v471
        %v1268 = vunpack.c.l.b16 %v472
        %v1269 = vunpack.c.l.b16 %v473
        %v1270 = vunpack.c.l.b16 %v474
        %v1271 = vunpack.c.l.b16 %v475
        %v1272 = vpack.c.b16 %v1265, %v1264
        %v1273 = vpack.c.b16 %v1267, %v1266
        %v1274 = vpack.c.b16 %v1269, %v1268
        %v1275 = vpack.c.b16 %v1271, %v1270
        %v1277 = vsel %vm540, %v1272, 0
        %v1280 = vsel %vm540, %v1273, 0
        %v1283 = vsel %vm540, %v1274, 0
        %v1286 = vsel %vm540, %v1275, 0
        %1288 = vmatprep.subr.bf16.mxu0 %v1040
        %1289 = vmatpush1.bf16.msra.mxu0 %v1039
        %1290 = vmatprep.subr.bf16.mxu0 %v1042
        %1291 = vmatpush1.bf16.msra.mxu0 %v1041
        %1292 = vmatprep.subr.bf16.mxu0 %v1044
        %1293 = vmatpush1.bf16.msra.mxu0 %v1043
        %1294 = vmatprep.subr.bf16.mxu0 %v1046
        %1295 = vmatpush1.bf16.msra.mxu0 %v1045
        %1296 = vmatprep.subr.bf16.mxu0 0
        %1297 = vmatpush1.bf16.msra.mxu0 0
        %1298 = vmatprep.subr.bf16.mxu0 0
        %1299 = vmatpush1.bf16.msra.mxu0 0
        %1300 = vmatprep.subr.bf16.mxu0 0
        %1301 = vmatpush1.bf16.msra.mxu0 0
        %1302 = vmatprep.subr.bf16.mxu0 0
        %1303 = vmatpush1.bf16.msra.mxu0 0
        %1304 = vmatprep.subr.bf16.mxu0 0
        %1305 = vmatpush1.bf16.msra.mxu0 0
        %1306 = vmatprep.subr.bf16.mxu0 0
        %1307 = vmatpush1.bf16.msra.mxu0 0
        %1308 = vmatprep.subr.bf16.mxu0 0
        %1309 = vmatpush1.bf16.msra.mxu0 0
        %1310 = vmatprep.subr.bf16.mxu0 0
        %1311 = vmatpush1.bf16.msra.mxu0 0
        %1312 = vmatprep.subr.bf16.mxu0 0
        %1313 = vmatpush1.bf16.msra.mxu0 0
        %1314 = vmatprep.subr.bf16.mxu0 0
        %1315 = vmatpush1.bf16.msra.mxu0 0
        %1316 = vmatprep.subr.bf16.mxu0 0
        %1317 = vmatpush1.bf16.msra.mxu0 0
        %1318 = vmatprep.subr.bf16.mxu0 0
        %1319 = vmatpush1.bf16.msra.mxu0 0
        %1320 = vmatprep.mubr.bf16.mxu0 0
        %1321 = vmatmul.mubr.bf16.gmra.mrb[0].mxu0 %v1277
        %v1322 = vpop.f32.mrb[0].mxu0
        %v1323 = vadd.f32 %v1219, %v1322
        %v1324 = vpop.f32.mrb[0].mxu0
        %v1325 = vadd.f32 %v1219, %v1324
        %v1326 = vpop.f32.mrb[0].mxu0
        %v1327 = vadd.f32 %v1224, %v1326
        %v1328 = vpop.f32.mrb[0].mxu0
        %v1329 = vadd.f32 %v1224, %v1328
        %1330 = vmatprep.mubr.bf16.mxu0 0
        %1331 = vmatmul.mubr.bf16.gmra.mrb[0].mxu0 %v1280
        %v1332 = vpop.f32.mrb[0].mxu0
        %v1333 = vadd.f32 %v1229, %v1332
        %v1334 = vpop.f32.mrb[0].mxu0
        %v1335 = vadd.f32 %v1229, %v1334
        %v1336 = vpop.f32.mrb[0].mxu0
        %v1337 = vadd.f32 %v1234, %v1336
        %v1338 = vpop.f32.mrb[0].mxu0
        %v1339 = vadd.f32 %v1234, %v1338
        %1340 = vmatprep.mubr.bf16.mxu0 0
        %1341 = vmatmul.mubr.bf16.gmra.mrb[0].mxu0 %v1283
        %v1342 = vpop.f32.mrb[0].mxu0
        %v1343 = vadd.f32 %v1239, %v1342
        %v1344 = vpop.f32.mrb[0].mxu0
        %v1345 = vadd.f32 %v1239, %v1344
        %v1346 = vpop.f32.mrb[0].mxu0
        %v1347 = vadd.f32 %v1244, %v1346
        %v1348 = vpop.f32.mrb[0].mxu0
        %v1349 = vadd.f32 %v1244, %v1348
        %1350 = vmatprep.mubr.bf16.mxu0 0
        %1351 = vmatmul.mubr.bf16.gmra.mrb[0].mxu0 %v1286
        %v1352 = vpop.f32.mrb[0].mxu0
        %v1353 = vadd.f32 %v1249, %v1352
        %v1354 = vpop.f32.mrb[0].mxu0
        %v1355 = vadd.f32 %v1249, %v1354
        %v1356 = vpop.f32.mrb[0].mxu0
        %v1357 = vadd.f32 %v1254, %v1356
        %v1358 = vpop.f32.mrb[0].mxu0
        %v1359 = vadd.f32 %v1254, %v1358
        %1360 = vdwg.mxu0
        %v1361 = vpack.c.bf16 %v1327, %v1323
        %v1362 = vpack.c.bf16 %v1329, %v1325
        %v1363 = vpack.c.bf16 %v1337, %v1333
        %v1364 = vpack.c.bf16 %v1339, %v1335
        %v1365 = vpack.c.bf16 %v1347, %v1343
        %v1366 = vpack.c.bf16 %v1349, %v1345
        %v1367 = vpack.c.bf16 %v1357, %v1353
        %v1368 = vpack.c.bf16 %v1359, %v1355
        %1370 = vset.pattern.permute.xlu0 0
        %1371 = vperm.xlu0 %1370, %v508
        %v1372 = vpop.permute.xlu0 %1371
        %1375 = vset.pattern.permute.xlu0 0
        %1376 = vperm.xlu0 %1375, %v509
        %v1377 = vpop.permute.xlu0 %1376
        %1380 = vset.pattern.permute.xlu0 0
        %1381 = vperm.xlu0 %1380, %v510
        %v1382 = vpop.permute.xlu0 %1381
        %1385 = vset.pattern.permute.xlu0 0
        %1386 = vperm.xlu0 %1385, %v511
        %v1387 = vpop.permute.xlu0 %1386
        %1390 = vset.pattern.permute.xlu0 0
        %1391 = vperm.xlu0 %1390, %v512
        %v1392 = vpop.permute.xlu0 %1391
        %1395 = vset.pattern.permute.xlu0 0
        %1396 = vperm.xlu0 %1395, %v513
        %v1397 = vpop.permute.xlu0 %1396
        %1400 = vset.pattern.permute.xlu0 0
        %1401 = vperm.xlu0 %1400, %v514
        %v1402 = vpop.permute.xlu0 %1401
        %1405 = vset.pattern.permute.xlu0 0
        %1406 = vperm.xlu0 %1405, %v515
        %v1407 = vpop.permute.xlu0 %1406
        %v1417 = vunpack.c.l.b16 %v476
        %v1418 = vunpack.c.l.b16 %v477
        %v1419 = vunpack.c.l.b16 %v478
        %v1420 = vunpack.c.l.b16 %v479
        %v1421 = vunpack.c.l.b16 %v480
        %v1422 = vunpack.c.l.b16 %v481
        %v1423 = vunpack.c.l.b16 %v482
        %v1424 = vunpack.c.l.b16 %v483
        %v1425 = vpack.c.b16 %v1418, %v1417
        %v1426 = vpack.c.b16 %v1420, %v1419
        %v1427 = vpack.c.b16 %v1422, %v1421
        %v1428 = vpack.c.b16 %v1424, %v1423
        %v1430 = vsel %vm540, %v1425, 0
        %v1433 = vsel %vm540, %v1426, 0
        %v1436 = vsel %vm540, %v1427, 0
        %v1439 = vsel %vm540, %v1428, 0
        %1441 = vmatprep.subr.bf16.mxu0 %v1040
        %1442 = vmatpush1.bf16.msra.mxu0 %v1039
        %1443 = vmatprep.subr.bf16.mxu0 %v1042
        %1444 = vmatpush1.bf16.msra.mxu0 %v1041
        %1445 = vmatprep.subr.bf16.mxu0 %v1044
        %1446 = vmatpush1.bf16.msra.mxu0 %v1043
        %1447 = vmatprep.subr.bf16.mxu0 %v1046
        %1448 = vmatpush1.bf16.msra.mxu0 %v1045
        %1449 = vmatprep.subr.bf16.mxu0 0
        %1450 = vmatpush1.bf16.msra.mxu0 0
        %1451 = vmatprep.subr.bf16.mxu0 0
        %1452 = vmatpush1.bf16.msra.mxu0 0
        %1453 = vmatprep.subr.bf16.mxu0 0
        %1454 = vmatpush1.bf16.msra.mxu0 0
        %1455 = vmatprep.subr.bf16.mxu0 0
        %1456 = vmatpush1.bf16.msra.mxu0 0
        %1457 = vmatprep.subr.bf16.mxu0 0
        %1458 = vmatpush1.bf16.msra.mxu0 0
        %1459 = vmatprep.subr.bf16.mxu0 0
        %1460 = vmatpush1.bf16.msra.mxu0 0
        %1461 = vmatprep.subr.bf16.mxu0 0
        %1462 = vmatpush1.bf16.msra.mxu0 0
        %1463 = vmatprep.subr.bf16.mxu0 0
        %1464 = vmatpush1.bf16.msra.mxu0 0
        %1465 = vmatprep.subr.bf16.mxu0 0
        %1466 = vmatpush1.bf16.msra.mxu0 0
        %1467 = vmatprep.subr.bf16.mxu0 0
        %1468 = vmatpush1.bf16.msra.mxu0 0
        %1469 = vmatprep.subr.bf16.mxu0 0
        %1470 = vmatpush1.bf16.msra.mxu0 0
        %1471 = vmatprep.subr.bf16.mxu0 0
        %1472 = vmatpush1.bf16.msra.mxu0 0
        %1473 = vmatprep.mubr.bf16.mxu0 0
        %1474 = vmatmul.mubr.bf16.gmra.mrb[0].mxu0 %v1430
        %v1475 = vpop.f32.mrb[0].mxu0
        %v1476 = vadd.f32 %v1372, %v1475
        %v1477 = vpop.f32.mrb[0].mxu0
        %v1478 = vadd.f32 %v1372, %v1477
        %v1479 = vpop.f32.mrb[0].mxu0
        %v1480 = vadd.f32 %v1377, %v1479
        %v1481 = vpop.f32.mrb[0].mxu0
        %v1482 = vadd.f32 %v1377, %v1481
        %1483 = vmatprep.mubr.bf16.mxu0 0
        %1484 = vmatmul.mubr.bf16.gmra.mrb[0].mxu0 %v1433
        %v1485 = vpop.f32.mrb[0].mxu0
        %v1486 = vadd.f32 %v1382, %v1485
        %v1487 = vpop.f32.mrb[0].mxu0
        %v1488 = vadd.f32 %v1382, %v1487
        %v1489 = vpop.f32.mrb[0].mxu0
        %v1490 = vadd.f32 %v1387, %v1489
        %v1491 = vpop.f32.mrb[0].mxu0
        %v1492 = vadd.f32 %v1387, %v1491
        %1493 = vmatprep.mubr.bf16.mxu0 0
        %1494 = vmatmul.mubr.bf16.gmra.mrb[0].mxu0 %v1436
        %v1495 = vpop.f32.mrb[0].mxu0
        %v1496 = vadd.f32 %v1392, %v1495
        %v1497 = vpop.f32.mrb[0].mxu0
        %v1498 = vadd.f32 %v1392, %v1497
        %v1499 = vpop.f32.mrb[0].mxu0
        %v1500 = vadd.f32 %v1397, %v1499
        %v1501 = vpop.f32.mrb[0].mxu0
        %v1502 = vadd.f32 %v1397, %v1501
        %1503 = vmatprep.mubr.bf16.mxu0 0
        %1504 = vmatmul.mubr.bf16.gmra.mrb[0].mxu0 %v1439
        %v1505 = vpop.f32.mrb[0].mxu0
        %v1506 = vadd.f32 %v1402, %v1505
        %v1507 = vpop.f32.mrb[0].mxu0
        %v1508 = vadd.f32 %v1402, %v1507
        %v1509 = vpop.f32.mrb[0].mxu0
        %v1510 = vadd.f32 %v1407, %v1509
        %v1511 = vpop.f32.mrb[0].mxu0
        %v1512 = vadd.f32 %v1407, %v1511
        %1513 = vdwg.mxu0
        %v1514 = vpack.c.bf16 %v1480, %v1476
        %v1515 = vpack.c.bf16 %v1482, %v1478
        %v1516 = vpack.c.bf16 %v1490, %v1486
        %v1517 = vpack.c.bf16 %v1492, %v1488
        %v1518 = vpack.c.bf16 %v1500, %v1496
        %v1519 = vpack.c.bf16 %v1502, %v1498
        %v1520 = vpack.c.bf16 %v1510, %v1506
        %v1521 = vpack.c.bf16 %v1512, %v1508
        %1522 = vxpose.xlu0.c.b16.start [1/8] %v1208, 128
        %1523 = vxpose.xlu0.c.b16.cont [2/8] %v1210, 128
        %1524 = vxpose.xlu0.c.b16.cont [3/8] 0, 128
        %1525 = vxpose.xlu0.c.b16.cont [4/8] 0, 128
        %1526 = vxpose.xlu0.c.b16.cont [5/8] 0, 128
        %1527 = vxpose.xlu0.c.b16.cont [6/8] 0, 128
        %1528 = vxpose.xlu0.c.b16.cont [7/8] 0, 128
        %1529 = vxpose.xlu0.c.b16.end [8/8] 0, 128
        %v1530 = vpop.trf.xlu0
        %v1531 = vpop.trf.xlu0
        %v1532 = vpop.trf.xlu0
        %v1533 = vpop.trf.xlu0
        %v1534 = vpop.trf.xlu0
        %v1535 = vpop.trf.xlu0
        %v1536 = vpop.trf.xlu0
        %v1537 = vpop.trf.xlu0
        %1538 = vxpose.xlu0.c.b16.start [1/8] %v1209, 128
        %1539 = vxpose.xlu0.c.b16.cont [2/8] %v1211, 128
        %1540 = vxpose.xlu0.c.b16.cont [3/8] 0, 128
        %1541 = vxpose.xlu0.c.b16.cont [4/8] 0, 128
        %1542 = vxpose.xlu0.c.b16.cont [5/8] 0, 128
        %1543 = vxpose.xlu0.c.b16.cont [6/8] 0, 128
        %1544 = vxpose.xlu0.c.b16.cont [7/8] 0, 128
        %1545 = vxpose.xlu0.c.b16.end [8/8] 0, 128
        %v1546 = vpop.trf.xlu0
        %v1547 = vpop.trf.xlu0
        %v1548 = vpop.trf.xlu0
        %v1549 = vpop.trf.xlu0
        %v1550 = vpop.trf.xlu0
        %v1551 = vpop.trf.xlu0
        %v1552 = vpop.trf.xlu0
        %v1553 = vpop.trf.xlu0
        %vm1554 = vcmask 261120
        %v1556 = vsel %vm1554, %v1530, 0
        %v1559 = vsel %vm1554, %v1531, 0
        %v1562 = vsel %vm1554, %v1532, 0
        %v1565 = vsel %vm1554, %v1533, 0
        %v1568 = vsel %vm1554, %v1534, 0
        %v1571 = vsel %vm1554, %v1535, 0
        %v1574 = vsel %vm1554, %v1536, 0
        %v1577 = vsel %vm1554, %v1537, 0
        %v1580 = vsel %vm1554, %v1546, 0
        %v1583 = vsel %vm1554, %v1547, 0
        %v1586 = vsel %vm1554, %v1548, 0
        %v1589 = vsel %vm1554, %v1549, 0
        %v1592 = vsel %vm1554, %v1550, 0
        %v1595 = vsel %vm1554, %v1551, 0
        %v1598 = vsel %vm1554, %v1552, 0
        %v1601 = vsel %vm1554, %v1553, 0
        %1603 = vmatprep.subr.bf16.mxu0 %v1362
        %1604 = vmatpush1.bf16.msra.mxu0 %v1361
        %1605 = vmatprep.subr.bf16.mxu0 %v1364
        %1606 = vmatpush1.bf16.msra.mxu0 %v1363
        %1607 = vmatprep.subr.bf16.mxu0 0
        %1608 = vmatpush1.bf16.msra.mxu0 0
        %1609 = vmatprep.subr.bf16.mxu0 0
        %1610 = vmatpush1.bf16.msra.mxu0 0
        %1611 = vmatprep.subr.bf16.mxu0 0
        %1612 = vmatpush1.bf16.msra.mxu0 0
        %1613 = vmatprep.subr.bf16.mxu0 0
        %1614 = vmatpush1.bf16.msra.mxu0 0
        %1615 = vmatprep.subr.bf16.mxu0 0
        %1616 = vmatpush1.bf16.msra.mxu0 0
        %1617 = vmatprep.subr.bf16.mxu0 0
        %1618 = vmatpush1.bf16.msra.mxu0 0
        %1619 = vmatprep.subr.bf16.mxu0 0
        %1620 = vmatpush1.bf16.msra.mxu0 0
        %1621 = vmatprep.subr.bf16.mxu0 0
        %1622 = vmatpush1.bf16.msra.mxu0 0
        %1623 = vmatprep.subr.bf16.mxu0 0
        %1624 = vmatpush1.bf16.msra.mxu0 0
        %1625 = vmatprep.subr.bf16.mxu0 0
        %1626 = vmatpush1.bf16.msra.mxu0 0
        %1627 = vmatprep.subr.bf16.mxu0 0
        %1628 = vmatpush1.bf16.msra.mxu0 0
        %1629 = vmatprep.subr.bf16.mxu0 0
        %1630 = vmatpush1.bf16.msra.mxu0 0
        %1631 = vmatprep.subr.bf16.mxu0 0
        %1632 = vmatpush1.bf16.msra.mxu0 0
        %1633 = vmatprep.subr.bf16.mxu0 0
        %1634 = vmatpush1.bf16.msra.mxu0 0
        %1635 = vmatprep.mubr.bf16.mxu0 0
        %1636 = vmatmul.mubr.bf16.gmra.mrb[0].mxu0 %v1556
        %v1637 = vpop.f32.mrb[0].mxu0
        %v1638 = vadd.f32 0.0, %v1637
        %v1639 = vpop.f32.mrb[0].mxu0
        %v1640 = vadd.f32 0.0, %v1639
        %v1641 = vpop.f32.mrb[0].mxu0
        %v1642 = vadd.f32 0.0, %v1641
        %v1643 = vpop.f32.mrb[0].mxu0
        %v1644 = vadd.f32 0.0, %v1643
        %1645 = vmatprep.mubr.bf16.mxu0 0
        %1646 = vmatmul.mubr.bf16.gmra.mrb[0].mxu0 %v1559
        %v1647 = vpop.f32.mrb[0].mxu0
        %v1648 = vadd.f32 0.0, %v1647
        %v1649 = vpop.f32.mrb[0].mxu0
        %v1650 = vadd.f32 0.0, %v1649
        %v1651 = vpop.f32.mrb[0].mxu0
        %v1652 = vadd.f32 0.0, %v1651
        %v1653 = vpop.f32.mrb[0].mxu0
        %v1654 = vadd.f32 0.0, %v1653
        %1655 = vmatprep.mubr.bf16.mxu0 0
        %1656 = vmatmul.mubr.bf16.gmra.mrb[0].mxu0 %v1562
        %v1657 = vpop.f32.mrb[0].mxu0
        %v1658 = vadd.f32 0.0, %v1657
        %v1659 = vpop.f32.mrb[0].mxu0
        %v1660 = vadd.f32 0.0, %v1659
        %v1661 = vpop.f32.mrb[0].mxu0
        %v1662 = vadd.f32 0.0, %v1661
        %v1663 = vpop.f32.mrb[0].mxu0
        %v1664 = vadd.f32 0.0, %v1663
        %1665 = vmatprep.mubr.bf16.mxu0 0
        %1666 = vmatmul.mubr.bf16.gmra.mrb[0].mxu0 %v1565
        %v1667 = vpop.f32.mrb[0].mxu0
        %v1668 = vadd.f32 0.0, %v1667
        %v1669 = vpop.f32.mrb[0].mxu0
        %v1670 = vadd.f32 0.0, %v1669
        %v1671 = vpop.f32.mrb[0].mxu0
        %v1672 = vadd.f32 0.0, %v1671
        %v1673 = vpop.f32.mrb[0].mxu0
        %v1674 = vadd.f32 0.0, %v1673
        %1675 = vmatprep.mubr.bf16.mxu0 0
        %1676 = vmatmul.mubr.bf16.gmra.mrb[0].mxu0 %v1568
        %v1677 = vpop.f32.mrb[0].mxu0
        %v1678 = vadd.f32 0.0, %v1677
        %v1679 = vpop.f32.mrb[0].mxu0
        %v1680 = vadd.f32 0.0, %v1679
        %v1681 = vpop.f32.mrb[0].mxu0
        %v1682 = vadd.f32 0.0, %v1681
        %v1683 = vpop.f32.mrb[0].mxu0
        %v1684 = vadd.f32 0.0, %v1683
        %1685 = vmatprep.mubr.bf16.mxu0 0
        %1686 = vmatmul.mubr.bf16.gmra.mrb[0].mxu0 %v1571
        %v1687 = vpop.f32.mrb[0].mxu0
        %v1688 = vadd.f32 0.0, %v1687
        %v1689 = vpop.f32.mrb[0].mxu0
        %v1690 = vadd.f32 0.0, %v1689
        %v1691 = vpop.f32.mrb[0].mxu0
        %v1692 = vadd.f32 0.0, %v1691
        %v1693 = vpop.f32.mrb[0].mxu0
        %v1694 = vadd.f32 0.0, %v1693
        %1695 = vmatprep.mubr.bf16.mxu0 0
        %1696 = vmatmul.mubr.bf16.gmra.mrb[0].mxu0 %v1574
        %v1697 = vpop.f32.mrb[0].mxu0
        %v1698 = vadd.f32 0.0, %v1697
        %v1699 = vpop.f32.mrb[0].mxu0
        %v1700 = vadd.f32 0.0, %v1699
        %v1701 = vpop.f32.mrb[0].mxu0
        %v1702 = vadd.f32 0.0, %v1701
        %v1703 = vpop.f32.mrb[0].mxu0
        %v1704 = vadd.f32 0.0, %v1703
        %1705 = vmatprep.mubr.bf16.mxu0 0
        %1706 = vmatmul.mubr.bf16.gmra.mrb[0].mxu0 %v1577
        %v1707 = vpop.f32.mrb[0].mxu0
        %v1708 = vadd.f32 0.0, %v1707
        %v1709 = vpop.f32.mrb[0].mxu0
        %v1710 = vadd.f32 0.0, %v1709
        %v1711 = vpop.f32.mrb[0].mxu0
        %v1712 = vadd.f32 0.0, %v1711
        %v1713 = vpop.f32.mrb[0].mxu0
        %v1714 = vadd.f32 0.0, %v1713
        %1715 = vmatprep.mubr.bf16.mxu0 0
        %1716 = vmatmul.mubr.bf16.gmra.mrb[0].mxu0 %v1580
        %v1717 = vpop.f32.mrb[0].mxu0
        %v1718 = vadd.f32 0.0, %v1717
        %v1719 = vpop.f32.mrb[0].mxu0
        %v1720 = vadd.f32 0.0, %v1719
        %v1721 = vpop.f32.mrb[0].mxu0
        %v1722 = vadd.f32 0.0, %v1721
        %v1723 = vpop.f32.mrb[0].mxu0
        %v1724 = vadd.f32 0.0, %v1723
        %1725 = vmatprep.mubr.bf16.mxu0 0
        %1726 = vmatmul.mubr.bf16.gmra.mrb[0].mxu0 %v1583
        %v1727 = vpop.f32.mrb[0].mxu0
        %v1728 = vadd.f32 0.0, %v1727
        %v1729 = vpop.f32.mrb[0].mxu0
        %v1730 = vadd.f32 0.0, %v1729
        %v1731 = vpop.f32.mrb[0].mxu0
        %v1732 = vadd.f32 0.0, %v1731
        %v1733 = vpop.f32.mrb[0].mxu0
        %v1734 = vadd.f32 0.0, %v1733
        %1735 = vmatprep.mubr.bf16.mxu0 0
        %1736 = vmatmul.mubr.bf16.gmra.mrb[0].mxu0 %v1586
        %v1737 = vpop.f32.mrb[0].mxu0
        %v1738 = vadd.f32 0.0, %v1737
        %v1739 = vpop.f32.mrb[0].mxu0
        %v1740 = vadd.f32 0.0, %v1739
        %v1741 = vpop.f32.mrb[0].mxu0
        %v1742 = vadd.f32 0.0, %v1741
        %v1743 = vpop.f32.mrb[0].mxu0
        %v1744 = vadd.f32 0.0, %v1743
        %1745 = vmatprep.mubr.bf16.mxu0 0
        %1746 = vmatmul.mubr.bf16.gmra.mrb[0].mxu0 %v1589
        %v1747 = vpop.f32.mrb[0].mxu0
        %v1748 = vadd.f32 0.0, %v1747
        %v1749 = vpop.f32.mrb[0].mxu0
        %v1750 = vadd.f32 0.0, %v1749
        %v1751 = vpop.f32.mrb[0].mxu0
        %v1752 = vadd.f32 0.0, %v1751
        %v1753 = vpop.f32.mrb[0].mxu0
        %v1754 = vadd.f32 0.0, %v1753
        %1755 = vmatprep.mubr.bf16.mxu0 0
        %1756 = vmatmul.mubr.bf16.gmra.mrb[0].mxu0 %v1592
        %v1757 = vpop.f32.mrb[0].mxu0
        %v1758 = vadd.f32 0.0, %v1757
        %v1759 = vpop.f32.mrb[0].mxu0
        %v1760 = vadd.f32 0.0, %v1759
        %v1761 = vpop.f32.mrb[0].mxu0
        %v1762 = vadd.f32 0.0, %v1761
        %v1763 = vpop.f32.mrb[0].mxu0
        %v1764 = vadd.f32 0.0, %v1763
        %1765 = vmatprep.mubr.bf16.mxu0 0
        %1766 = vmatmul.mubr.bf16.gmra.mrb[0].mxu0 %v1595
        %v1767 = vpop.f32.mrb[0].mxu0
        %v1768 = vadd.f32 0.0, %v1767
        %v1769 = vpop.f32.mrb[0].mxu0
        %v1770 = vadd.f32 0.0, %v1769
        %v1771 = vpop.f32.mrb[0].mxu0
        %v1772 = vadd.f32 0.0, %v1771
        %v1773 = vpop.f32.mrb[0].mxu0
        %v1774 = vadd.f32 0.0, %v1773
        %1775 = vmatprep.mubr.bf16.mxu0 0
        %1776 = vmatmul.mubr.bf16.gmra.mrb[0].mxu0 %v1598
        %v1777 = vpop.f32.mrb[0].mxu0
        %v1778 = vadd.f32 0.0, %v1777
        %v1779 = vpop.f32.mrb[0].mxu0
        %v1780 = vadd.f32 0.0, %v1779
        %v1781 = vpop.f32.mrb[0].mxu0
        %v1782 = vadd.f32 0.0, %v1781
        %v1783 = vpop.f32.mrb[0].mxu0
        %v1784 = vadd.f32 0.0, %v1783
        %1785 = vmatprep.mubr.bf16.mxu0 0
        %1786 = vmatmul.mubr.bf16.gmra.mrb[0].mxu0 %v1601
        %v1787 = vpop.f32.mrb[0].mxu0
        %v1788 = vadd.f32 0.0, %v1787
        %v1789 = vpop.f32.mrb[0].mxu0
        %v1790 = vadd.f32 0.0, %v1789
        %v1791 = vpop.f32.mrb[0].mxu0
        %v1792 = vadd.f32 0.0, %v1791
        %v1793 = vpop.f32.mrb[0].mxu0
        %v1794 = vadd.f32 0.0, %v1793
        %1795 = vdwg.mxu0
        %v1796 = vmax.f32 %v1638, %v1640
        %1797 = vmax.xlane.f32.xlu0 %v1796
        %v1798 = vpop.xlane.xlu0 %1797
        %v1799 = vmax.f32 %v1642, %v1644
        %1800 = vmax.xlane.f32.xlu0 %v1799
        %v1801 = vpop.xlane.xlu0 %1800
        %v1802 = vmax.f32 %v1648, %v1650
        %1803 = vmax.xlane.f32.xlu0 %v1802
        %v1804 = vpop.xlane.xlu0 %1803
        %v1805 = vmax.f32 %v1652, %v1654
        %1806 = vmax.xlane.f32.xlu0 %v1805
        %v1807 = vpop.xlane.xlu0 %1806
        %v1808 = vmax.f32 %v1658, %v1660
        %1809 = vmax.xlane.f32.xlu0 %v1808
        %v1810 = vpop.xlane.xlu0 %1809
        %v1811 = vmax.f32 %v1662, %v1664
        %1812 = vmax.xlane.f32.xlu0 %v1811
        %v1813 = vpop.xlane.xlu0 %1812
        %v1814 = vmax.f32 %v1668, %v1670
        %1815 = vmax.xlane.f32.xlu0 %v1814
        %v1816 = vpop.xlane.xlu0 %1815
        %v1817 = vmax.f32 %v1672, %v1674
        %1818 = vmax.xlane.f32.xlu0 %v1817
        %v1819 = vpop.xlane.xlu0 %1818
        %v1820 = vmax.f32 %v1678, %v1680
        %1821 = vmax.xlane.f32.xlu0 %v1820
        %v1822 = vpop.xlane.xlu0 %1821
        %v1823 = vmax.f32 %v1682, %v1684
        %1824 = vmax.xlane.f32.xlu0 %v1823
        %v1825 = vpop.xlane.xlu0 %1824
        %v1826 = vmax.f32 %v1688, %v1690
        %1827 = vmax.xlane.f32.xlu0 %v1826
        %v1828 = vpop.xlane.xlu0 %1827
        %v1829 = vmax.f32 %v1692, %v1694
        %1830 = vmax.xlane.f32.xlu0 %v1829
        %v1831 = vpop.xlane.xlu0 %1830
        %v1832 = vmax.f32 %v1698, %v1700
        %1833 = vmax.xlane.f32.xlu0 %v1832
        %v1834 = vpop.xlane.xlu0 %1833
        %v1835 = vmax.f32 %v1702, %v1704
        %1836 = vmax.xlane.f32.xlu0 %v1835
        %v1837 = vpop.xlane.xlu0 %1836
        %v1838 = vmax.f32 %v1708, %v1710
        %1839 = vmax.xlane.f32.xlu0 %v1838
        %v1840 = vpop.xlane.xlu0 %1839
        %v1841 = vmax.f32 %v1712, %v1714
        %1842 = vmax.xlane.f32.xlu0 %v1841
        %v1843 = vpop.xlane.xlu0 %1842
        %v1844 = vmax.f32 %v1718, %v1720
        %1845 = vmax.xlane.f32.xlu0 %v1844
        %v1846 = vpop.xlane.xlu0 %1845
        %v1847 = vmax.f32 %v1722, %v1724
        %1848 = vmax.xlane.f32.xlu0 %v1847
        %v1849 = vpop.xlane.xlu0 %1848
        %v1850 = vmax.f32 %v1728, %v1730
        %1851 = vmax.xlane.f32.xlu0 %v1850
        %v1852 = vpop.xlane.xlu0 %1851
        %v1853 = vmax.f32 %v1732, %v1734
        %1854 = vmax.xlane.f32.xlu0 %v1853
        %v1855 = vpop.xlane.xlu0 %1854
        %v1856 = vmax.f32 %v1738, %v1740
        %1857 = vmax.xlane.f32.xlu0 %v1856
        %v1858 = vpop.xlane.xlu0 %1857
        %v1859 = vmax.f32 %v1742, %v1744
        %1860 = vmax.xlane.f32.xlu0 %v1859
        %v1861 = vpop.xlane.xlu0 %1860
        %v1862 = vmax.f32 %v1748, %v1750
        %1863 = vmax.xlane.f32.xlu0 %v1862
        %v1864 = vpop.xlane.xlu0 %1863
        %v1865 = vmax.f32 %v1752, %v1754
        %1866 = vmax.xlane.f32.xlu0 %v1865
        %v1867 = vpop.xlane.xlu0 %1866
        %v1868 = vmax.f32 %v1758, %v1760
        %1869 = vmax.xlane.f32.xlu0 %v1868
        %v1870 = vpop.xlane.xlu0 %1869
        %v1871 = vmax.f32 %v1762, %v1764
        %1872 = vmax.xlane.f32.xlu0 %v1871
        %v1873 = vpop.xlane.xlu0 %1872
        %v1874 = vmax.f32 %v1768, %v1770
        %1875 = vmax.xlane.f32.xlu0 %v1874
        %v1876 = vpop.xlane.xlu0 %1875
        %v1877 = vmax.f32 %v1772, %v1774
        %1878 = vmax.xlane.f32.xlu0 %v1877
        %v1879 = vpop.xlane.xlu0 %1878
        %v1880 = vmax.f32 %v1778, %v1780
        %1881 = vmax.xlane.f32.xlu0 %v1880
        %v1882 = vpop.xlane.xlu0 %1881
        %v1883 = vmax.f32 %v1782, %v1784
        %1884 = vmax.xlane.f32.xlu0 %v1883
        %v1885 = vpop.xlane.xlu0 %1884
        %v1886 = vmax.f32 %v1788, %v1790
        %1887 = vmax.xlane.f32.xlu0 %v1886
        %v1888 = vpop.xlane.xlu0 %1887
        %v1889 = vmax.f32 %v1792, %v1794
        %1890 = vmax.xlane.f32.xlu0 %v1889
        %v1891 = vpop.xlane.xlu0 %1890
        %v1892 = vsub.f32 %v1638, %v1798
        %v1893 = vsub.f32 %v1640, %v1798
        %v1894 = vsub.f32 %v1642, %v1801
        %v1895 = vsub.f32 %v1644, %v1801
        %v1896 = vsub.f32 %v1648, %v1804
        %v1897 = vsub.f32 %v1650, %v1804
        %v1898 = vsub.f32 %v1652, %v1807
        %v1899 = vsub.f32 %v1654, %v1807
        %v1900 = vsub.f32 %v1658, %v1810
        %v1901 = vsub.f32 %v1660, %v1810
        %v1902 = vsub.f32 %v1662, %v1813
        %v1903 = vsub.f32 %v1664, %v1813
        %v1904 = vsub.f32 %v1668, %v1816
        %v1905 = vsub.f32 %v1670, %v1816
        %v1906 = vsub.f32 %v1672, %v1819
        %v1907 = vsub.f32 %v1674, %v1819
        %v1908 = vsub.f32 %v1678, %v1822
        %v1909 = vsub.f32 %v1680, %v1822
        %v1910 = vsub.f32 %v1682, %v1825
        %v1911 = vsub.f32 %v1684, %v1825
        %v1912 = vsub.f32 %v1688, %v1828
        %v1913 = vsub.f32 %v1690, %v1828
        %v1914 = vsub.f32 %v1692, %v1831
        %v1915 = vsub.f32 %v1694, %v1831
        %v1916 = vsub.f32 %v1698, %v1834
        %v1917 = vsub.f32 %v1700, %v1834
        %v1918 = vsub.f32 %v1702, %v1837
        %v1919 = vsub.f32 %v1704, %v1837
        %v1920 = vsub.f32 %v1708, %v1840
        %v1921 = vsub.f32 %v1710, %v1840
        %v1922 = vsub.f32 %v1712, %v1843
        %v1923 = vsub.f32 %v1714, %v1843
        %v1924 = vsub.f32 %v1718, %v1846
        %v1925 = vsub.f32 %v1720, %v1846
        %v1926 = vsub.f32 %v1722, %v1849
        %v1927 = vsub.f32 %v1724, %v1849
        %v1928 = vsub.f32 %v1728, %v1852
        %v1929 = vsub.f32 %v1730, %v1852
        %v1930 = vsub.f32 %v1732, %v1855
        %v1931 = vsub.f32 %v1734, %v1855
        %v1932 = vsub.f32 %v1738, %v1858
        %v1933 = vsub.f32 %v1740, %v1858
        %v1934 = vsub.f32 %v1742, %v1861
        %v1935 = vsub.f32 %v1744, %v1861
        %v1936 = vsub.f32 %v1748, %v1864
        %v1937 = vsub.f32 %v1750, %v1864
        %v1938 = vsub.f32 %v1752, %v1867
        %v1939 = vsub.f32 %v1754, %v1867
        %v1940 = vsub.f32 %v1758, %v1870
        %v1941 = vsub.f32 %v1760, %v1870
        %v1942 = vsub.f32 %v1762, %v1873
        %v1943 = vsub.f32 %v1764, %v1873
        %v1944 = vsub.f32 %v1768, %v1876
        %v1945 = vsub.f32 %v1770, %v1876
        %v1946 = vsub.f32 %v1772, %v1879
        %v1947 = vsub.f32 %v1774, %v1879
        %v1948 = vsub.f32 %v1778, %v1882
        %v1949 = vsub.f32 %v1780, %v1882
        %v1950 = vsub.f32 %v1782, %v1885
        %v1951 = vsub.f32 %v1784, %v1885
        %v1952 = vsub.f32 %v1788, %v1888
        %v1953 = vsub.f32 %v1790, %v1888
        %v1954 = vsub.f32 %v1792, %v1891
        %v1955 = vsub.f32 %v1794, %v1891
        %v1956 = vmul.f32 %v1892, 1.442695
        %v1957 = vpow.pop %v1956
        %v1958 = vmul.f32 %v1893, 1.442695
        %v1959 = vpow.pop %v1958
        %v1960 = vmul.f32 %v1894, 1.442695
        %v1961 = vpow.pop %v1960
        %v1962 = vmul.f32 %v1895, 1.442695
        %v1963 = vpow.pop %v1962
        %v1964 = vmul.f32 %v1896, 1.442695
        %v1965 = vpow.pop %v1964
        %v1966 = vmul.f32 %v1897, 1.442695
        %v1967 = vpow.pop %v1966
        %v1968 = vmul.f32 %v1898, 1.442695
        %v1969 = vpow.pop %v1968
        %v1970 = vmul.f32 %v1899, 1.442695
        %v1971 = vpow.pop %v1970
        %v1972 = vmul.f32 %v1900, 1.442695
        %v1973 = vpow.pop %v1972
        %v1974 = vmul.f32 %v1901, 1.442695
        %v1975 = vpow.pop %v1974
        %v1976 = vmul.f32 %v1902, 1.442695
        %v1977 = vpow.pop %v1976
        %v1978 = vmul.f32 %v1903, 1.442695
        %v1979 = vpow.pop %v1978
        %v1980 = vmul.f32 %v1904, 1.442695
        %v1981 = vpow.pop %v1980
        %v1982 = vmul.f32 %v1905, 1.442695
        %v1983 = vpow.pop %v1982
        %v1984 = vmul.f32 %v1906, 1.442695
        %v1985 = vpow.pop %v1984
        %v1986 = vmul.f32 %v1907, 1.442695
        %v1987 = vpow.pop %v1986
        %v1988 = vmul.f32 %v1908, 1.442695
        %v1989 = vpow.pop %v1988
        %v1990 = vmul.f32 %v1909, 1.442695
        %v1991 = vpow.pop %v1990
        %v1992 = vmul.f32 %v1910, 1.442695
        %v1993 = vpow.pop %v1992
        %v1994 = vmul.f32 %v1911, 1.442695
        %v1995 = vpow.pop %v1994
        %v1996 = vmul.f32 %v1912, 1.442695
        %v1997 = vpow.pop %v1996
        %v1998 = vmul.f32 %v1913, 1.442695
        %v1999 = vpow.pop %v1998
        %v2000 = vmul.f32 %v1914, 1.442695
        %v2001 = vpow.pop %v2000
        %v2002 = vmul.f32 %v1915, 1.442695
        %v2003 = vpow.pop %v2002
        %v2004 = vmul.f32 %v1916, 1.442695
        %v2005 = vpow.pop %v2004
        %v2006 = vmul.f32 %v1917, 1.442695
        %v2007 = vpow.pop %v2006
        %v2008 = vmul.f32 %v1918, 1.442695
        %v2009 = vpow.pop %v2008
        %v2010 = vmul.f32 %v1919, 1.442695
        %v2011 = vpow.pop %v2010
        %v2012 = vmul.f32 %v1920, 1.442695
        %v2013 = vpow.pop %v2012
        %v2014 = vmul.f32 %v1921, 1.442695
        %v2015 = vpow.pop %v2014
        %v2016 = vmul.f32 %v1922, 1.442695
        %v2017 = vpow.pop %v2016
        %v2018 = vmul.f32 %v1923, 1.442695
        %v2019 = vpow.pop %v2018
        %v2020 = vmul.f32 %v1924, 1.442695
        %v2021 = vpow.pop %v2020
        %v2022 = vmul.f32 %v1925, 1.442695
        %v2023 = vpow.pop %v2022
        %v2024 = vmul.f32 %v1926, 1.442695
        %v2025 = vpow.pop %v2024
        %v2026 = vmul.f32 %v1927, 1.442695
        %v2027 = vpow.pop %v2026
        %v2028 = vmul.f32 %v1928, 1.442695
        %v2029 = vpow.pop %v2028
        %v2030 = vmul.f32 %v1929, 1.442695
        %v2031 = vpow.pop %v2030
        %v2032 = vmul.f32 %v1930, 1.442695
        %v2033 = vpow.pop %v2032
        %v2034 = vmul.f32 %v1931, 1.442695
        %v2035 = vpow.pop %v2034
        %v2036 = vmul.f32 %v1932, 1.442695
        %v2037 = vpow.pop %v2036
        %v2038 = vmul.f32 %v1933, 1.442695
        %v2039 = vpow.pop %v2038
        %v2040 = vmul.f32 %v1934, 1.442695
        %v2041 = vpow.pop %v2040
        %v2042 = vmul.f32 %v1935, 1.442695
        %v2043 = vpow.pop %v2042
        %v2044 = vmul.f32 %v1936, 1.442695
        %v2045 = vpow.pop %v2044
        %v2046 = vmul.f32 %v1937, 1.442695
        %v2047 = vpow.pop %v2046
        %v2048 = vmul.f32 %v1938, 1.442695
        %v2049 = vpow.pop %v2048
        %v2050 = vmul.f32 %v1939, 1.442695
        %v2051 = vpow.pop %v2050
        %v2052 = vmul.f32 %v1940, 1.442695
        %v2053 = vpow.pop %v2052
        %v2054 = vmul.f32 %v1941, 1.442695
        %v2055 = vpow.pop %v2054
        %v2056 = vmul.f32 %v1942, 1.442695
        %v2057 = vpow.pop %v2056
        %v2058 = vmul.f32 %v1943, 1.442695
        %v2059 = vpow.pop %v2058
        %v2060 = vmul.f32 %v1944, 1.442695
        %v2061 = vpow.pop %v2060
        %v2062 = vmul.f32 %v1945, 1.442695
        %v2063 = vpow.pop %v2062
        %v2064 = vmul.f32 %v1946, 1.442695
        %v2065 = vpow.pop %v2064
        %v2066 = vmul.f32 %v1947, 1.442695
        %v2067 = vpow.pop %v2066
        %v2068 = vmul.f32 %v1948, 1.442695
        %v2069 = vpow.pop %v2068
        %v2070 = vmul.f32 %v1949, 1.442695
        %v2071 = vpow.pop %v2070
        %v2072 = vmul.f32 %v1950, 1.442695
        %v2073 = vpow.pop %v2072
        %v2074 = vmul.f32 %v1951, 1.442695
        %v2075 = vpow.pop %v2074
        %v2076 = vmul.f32 %v1952, 1.442695
        %v2077 = vpow.pop %v2076
        %v2078 = vmul.f32 %v1953, 1.442695
        %v2079 = vpow.pop %v2078
        %v2080 = vmul.f32 %v1954, 1.442695
        %v2081 = vpow.pop %v2080
        %v2082 = vmul.f32 %v1955, 1.442695
        %v2083 = vpow.pop %v2082
        %v2084 = vadd.f32 %v1957, %v1959
        %2085 = vadd.xlane.f32.xlu0 %v2084
        %v2086 = vpop.xlane.xlu0 %2085
        %v2087 = vadd.f32 %v1961, %v1963
        %2088 = vadd.xlane.f32.xlu0 %v2087
        %v2089 = vpop.xlane.xlu0 %2088
        %v2090 = vadd.f32 %v1965, %v1967
        %2091 = vadd.xlane.f32.xlu0 %v2090
        %v2092 = vpop.xlane.xlu0 %2091
        %v2093 = vadd.f32 %v1969, %v1971
        %2094 = vadd.xlane.f32.xlu0 %v2093
        %v2095 = vpop.xlane.xlu0 %2094
        %v2096 = vadd.f32 %v1973, %v1975
        %2097 = vadd.xlane.f32.xlu0 %v2096
        %v2098 = vpop.xlane.xlu0 %2097
        %v2099 = vadd.f32 %v1977, %v1979
        %2100 = vadd.xlane.f32.xlu0 %v2099
        %v2101 = vpop.xlane.xlu0 %2100
        %v2102 = vadd.f32 %v1981, %v1983
        %2103 = vadd.xlane.f32.xlu0 %v2102
        %v2104 = vpop.xlane.xlu0 %2103
        %v2105 = vadd.f32 %v1985, %v1987
        %2106 = vadd.xlane.f32.xlu0 %v2105
        %v2107 = vpop.xlane.xlu0 %2106
        %v2108 = vadd.f32 %v1989, %v1991
        %2109 = vadd.xlane.f32.xlu0 %v2108
        %v2110 = vpop.xlane.xlu0 %2109
        %v2111 = vadd.f32 %v1993, %v1995
        %2112 = vadd.xlane.f32.xlu0 %v2111
        %v2113 = vpop.xlane.xlu0 %2112
        %v2114 = vadd.f32 %v1997, %v1999
        %2115 = vadd.xlane.f32.xlu0 %v2114
        %v2116 = vpop.xlane.xlu0 %2115
        %v2117 = vadd.f32 %v2001, %v2003
        %2118 = vadd.xlane.f32.xlu0 %v2117
        %v2119 = vpop.xlane.xlu0 %2118
        %v2120 = vadd.f32 %v2005, %v2007
        %2121 = vadd.xlane.f32.xlu0 %v2120
        %v2122 = vpop.xlane.xlu0 %2121
        %v2123 = vadd.f32 %v2009, %v2011
        %2124 = vadd.xlane.f32.xlu0 %v2123
        %v2125 = vpop.xlane.xlu0 %2124
        %v2126 = vadd.f32 %v2013, %v2015
        %2127 = vadd.xlane.f32.xlu0 %v2126
        %v2128 = vpop.xlane.xlu0 %2127
        %v2129 = vadd.f32 %v2017, %v2019
        %2130 = vadd.xlane.f32.xlu0 %v2129
        %v2131 = vpop.xlane.xlu0 %2130
        %v2132 = vadd.f32 %v2021, %v2023
        %2133 = vadd.xlane.f32.xlu0 %v2132
        %v2134 = vpop.xlane.xlu0 %2133
        %v2135 = vadd.f32 %v2025, %v2027
        %2136 = vadd.xlane.f32.xlu0 %v2135
        %v2137 = vpop.xlane.xlu0 %2136
        %v2138 = vadd.f32 %v2029, %v2031
        %2139 = vadd.xlane.f32.xlu0 %v2138
        %v2140 = vpop.xlane.xlu0 %2139
        %v2141 = vadd.f32 %v2033, %v2035
        %2142 = vadd.xlane.f32.xlu0 %v2141
        %v2143 = vpop.xlane.xlu0 %2142
        %v2144 = vadd.f32 %v2037, %v2039
        %2145 = vadd.xlane.f32.xlu0 %v2144
        %v2146 = vpop.xlane.xlu0 %2145
        %v2147 = vadd.f32 %v2041, %v2043
        %2148 = vadd.xlane.f32.xlu0 %v2147
        %v2149 = vpop.xlane.xlu0 %2148
        %v2150 = vadd.f32 %v2045, %v2047
        %2151 = vadd.xlane.f32.xlu0 %v2150
        %v2152 = vpop.xlane.xlu0 %2151
        %v2153 = vadd.f32 %v2049, %v2051
        %2154 = vadd.xlane.f32.xlu0 %v2153
        %v2155 = vpop.xlane.xlu0 %2154
        %v2156 = vadd.f32 %v2053, %v2055
        %2157 = vadd.xlane.f32.xlu0 %v2156
        %v2158 = vpop.xlane.xlu0 %2157
        %v2159 = vadd.f32 %v2057, %v2059
        %2160 = vadd.xlane.f32.xlu0 %v2159
        %v2161 = vpop.xlane.xlu0 %2160
        %v2162 = vadd.f32 %v2061, %v2063
        %2163 = vadd.xlane.f32.xlu0 %v2162
        %v2164 = vpop.xlane.xlu0 %2163
        %v2165 = vadd.f32 %v2065, %v2067
        %2166 = vadd.xlane.f32.xlu0 %v2165
        %v2167 = vpop.xlane.xlu0 %2166
        %v2168 = vadd.f32 %v2069, %v2071
        %2169 = vadd.xlane.f32.xlu0 %v2168
        %v2170 = vpop.xlane.xlu0 %2169
        %v2171 = vadd.f32 %v2073, %v2075
        %2172 = vadd.xlane.f32.xlu0 %v2171
        %v2173 = vpop.xlane.xlu0 %2172
        %v2174 = vadd.f32 %v2077, %v2079
        %2175 = vadd.xlane.f32.xlu0 %v2174
        %v2176 = vpop.xlane.xlu0 %2175
        %v2177 = vadd.f32 %v2081, %v2083
        %2178 = vadd.xlane.f32.xlu0 %v2177
        %v2179 = vpop.xlane.xlu0 %2178
        %v2180 = vrcp.pop %v2086
        %v2181 = vrcp.pop %v2089
        %v2182 = vrcp.pop %v2092
        %v2183 = vrcp.pop %v2095
        %v2184 = vrcp.pop %v2098
        %v2185 = vrcp.pop %v2101
        %v2186 = vrcp.pop %v2104
        %v2187 = vrcp.pop %v2107
        %v2188 = vrcp.pop %v2110
        %v2189 = vrcp.pop %v2113
        %v2190 = vrcp.pop %v2116
        %v2191 = vrcp.pop %v2119
        %v2192 = vrcp.pop %v2122
        %v2193 = vrcp.pop %v2125
        %v2194 = vrcp.pop %v2128
        %v2195 = vrcp.pop %v2131
        %v2196 = vrcp.pop %v2134
        %v2197 = vrcp.pop %v2137
        %v2198 = vrcp.pop %v2140
        %v2199 = vrcp.pop %v2143
        %v2200 = vrcp.pop %v2146
        %v2201 = vrcp.pop %v2149
        %v2202 = vrcp.pop %v2152
        %v2203 = vrcp.pop %v2155
        %v2204 = vrcp.pop %v2158
        %v2205 = vrcp.pop %v2161
        %v2206 = vrcp.pop %v2164
        %v2207 = vrcp.pop %v2167
        %v2208 = vrcp.pop %v2170
        %v2209 = vrcp.pop %v2173
        %v2210 = vrcp.pop %v2176
        %v2211 = vrcp.pop %v2179
        %v2212 = vmul.f32 %v1957, %v2180
        %v2213 = vmul.f32 %v1959, %v2180
        %v2214 = vmul.f32 %v1961, %v2181
        %v2215 = vmul.f32 %v1963, %v2181
        %v2216 = vmul.f32 %v1965, %v2182
        %v2217 = vmul.f32 %v1967, %v2182
        %v2218 = vmul.f32 %v1969, %v2183
        %v2219 = vmul.f32 %v1971, %v2183
        %v2220 = vmul.f32 %v1973, %v2184
        %v2221 = vmul.f32 %v1975, %v2184
        %v2222 = vmul.f32 %v1977, %v2185
        %v2223 = vmul.f32 %v1979, %v2185
        %v2224 = vmul.f32 %v1981, %v2186
        %v2225 = vmul.f32 %v1983, %v2186
        %v2226 = vmul.f32 %v1985, %v2187
        %v2227 = vmul.f32 %v1987, %v2187
        %v2228 = vmul.f32 %v1989, %v2188
        %v2229 = vmul.f32 %v1991, %v2188
        %v2230 = vmul.f32 %v1993, %v2189
        %v2231 = vmul.f32 %v1995, %v2189
        %v2232 = vmul.f32 %v1997, %v2190
        %v2233 = vmul.f32 %v1999, %v2190
        %v2234 = vmul.f32 %v2001, %v2191
        %v2235 = vmul.f32 %v2003, %v2191
        %v2236 = vmul.f32 %v2005, %v2192
        %v2237 = vmul.f32 %v2007, %v2192
        %v2238 = vmul.f32 %v2009, %v2193
        %v2239 = vmul.f32 %v2011, %v2193
        %v2240 = vmul.f32 %v2013, %v2194
        %v2241 = vmul.f32 %v2015, %v2194
        %v2242 = vmul.f32 %v2017, %v2195
        %v2243 = vmul.f32 %v2019, %v2195
        %v2244 = vmul.f32 %v2021, %v2196
        %v2245 = vmul.f32 %v2023, %v2196
        %v2246 = vmul.f32 %v2025, %v2197
        %v2247 = vmul.f32 %v2027, %v2197
        %v2248 = vmul.f32 %v2029, %v2198
        %v2249 = vmul.f32 %v2031, %v2198
        %v2250 = vmul.f32 %v2033, %v2199
        %v2251 = vmul.f32 %v2035, %v2199
        %v2252 = vmul.f32 %v2037, %v2200
        %v2253 = vmul.f32 %v2039, %v2200
        %v2254 = vmul.f32 %v2041, %v2201
        %v2255 = vmul.f32 %v2043, %v2201
        %v2256 = vmul.f32 %v2045, %v2202
        %v2257 = vmul.f32 %v2047, %v2202
        %v2258 = vmul.f32 %v2049, %v2203
        %v2259 = vmul.f32 %v2051, %v2203
        %v2260 = vmul.f32 %v2053, %v2204
        %v2261 = vmul.f32 %v2055, %v2204
        %v2262 = vmul.f32 %v2057, %v2205
        %v2263 = vmul.f32 %v2059, %v2205
        %v2264 = vmul.f32 %v2061, %v2206
        %v2265 = vmul.f32 %v2063, %v2206
        %v2266 = vmul.f32 %v2065, %v2207
        %v2267 = vmul.f32 %v2067, %v2207
        %v2268 = vmul.f32 %v2069, %v2208
        %v2269 = vmul.f32 %v2071, %v2208
        %v2270 = vmul.f32 %v2073, %v2209
        %v2271 = vmul.f32 %v2075, %v2209
        %v2272 = vmul.f32 %v2077, %v2210
        %v2273 = vmul.f32 %v2079, %v2210
        %v2274 = vmul.f32 %v2081, %v2211
        %v2275 = vmul.f32 %v2083, %v2211
        %v2276 = vpack.c.bf16 %v2214, %v2212
        %v2277 = vpack.c.bf16 %v2215, %v2213
        %v2278 = vpack.c.bf16 %v2218, %v2216
        %v2279 = vpack.c.bf16 %v2219, %v2217
        %v2280 = vpack.c.bf16 %v2222, %v2220
        %v2281 = vpack.c.bf16 %v2223, %v2221
        %v2282 = vpack.c.bf16 %v2226, %v2224
        %v2283 = vpack.c.bf16 %v2227, %v2225
        %v2284 = vpack.c.bf16 %v2230, %v2228
        %v2285 = vpack.c.bf16 %v2231, %v2229
        %v2286 = vpack.c.bf16 %v2234, %v2232
        %v2287 = vpack.c.bf16 %v2235, %v2233
        %v2288 = vpack.c.bf16 %v2238, %v2236
        %v2289 = vpack.c.bf16 %v2239, %v2237
        %v2290 = vpack.c.bf16 %v2242, %v2240
        %v2291 = vpack.c.bf16 %v2243, %v2241
        %v2292 = vpack.c.bf16 %v2246, %v2244
        %v2293 = vpack.c.bf16 %v2247, %v2245
        %v2294 = vpack.c.bf16 %v2250, %v2248
        %v2295 = vpack.c.bf16 %v2251, %v2249
        %v2296 = vpack.c.bf16 %v2254, %v2252
        %v2297 = vpack.c.bf16 %v2255, %v2253
        %v2298 = vpack.c.bf16 %v2258, %v2256
        %v2299 = vpack.c.bf16 %v2259, %v2257
        %v2300 = vpack.c.bf16 %v2262, %v2260
        %v2301 = vpack.c.bf16 %v2263, %v2261
        %v2302 = vpack.c.bf16 %v2266, %v2264
        %v2303 = vpack.c.bf16 %v2267, %v2265
        %v2304 = vpack.c.bf16 %v2270, %v2268
        %v2305 = vpack.c.bf16 %v2271, %v2269
        %v2306 = vpack.c.bf16 %v2274, %v2272
        %v2307 = vpack.c.bf16 %v2275, %v2273
        %2308 = vmatprep.subr.bf16.mxu0 %v2277
        %2309 = vmatpush1.bf16.xpose.msra.mxu0 %v2276
        %2310 = vmatprep.subr.bf16.mxu0 %v2279
        %2311 = vmatpush1.bf16.xpose.msra.mxu0 %v2278
        %2312 = vmatprep.subr.bf16.mxu0 %v2281
        %2313 = vmatpush1.bf16.xpose.msra.mxu0 %v2280
        %2314 = vmatprep.subr.bf16.mxu0 %v2283
        %2315 = vmatpush1.bf16.xpose.msra.mxu0 %v2282
        %2316 = vmatprep.subr.bf16.mxu0 %v2285
        %2317 = vmatpush1.bf16.xpose.msra.mxu0 %v2284
        %2318 = vmatprep.subr.bf16.mxu0 %v2287
        %2319 = vmatpush1.bf16.xpose.msra.mxu0 %v2286
        %2320 = vmatprep.subr.bf16.mxu0 %v2289
        %2321 = vmatpush1.bf16.xpose.msra.mxu0 %v2288
        %2322 = vmatprep.subr.bf16.mxu0 %v2291
        %2323 = vmatpush1.bf16.xpose.msra.mxu0 %v2290
        %2324 = vmatprep.subr.bf16.mxu0 %v2293
        %2325 = vmatpush1.bf16.xpose.msra.mxu0 %v2292
        %2326 = vmatprep.subr.bf16.mxu0 %v2295
        %2327 = vmatpush1.bf16.xpose.msra.mxu0 %v2294
        %2328 = vmatprep.subr.bf16.mxu0 %v2297
        %2329 = vmatpush1.bf16.xpose.msra.mxu0 %v2296
        %2330 = vmatprep.subr.bf16.mxu0 %v2299
        %2331 = vmatpush1.bf16.xpose.msra.mxu0 %v2298
        %2332 = vmatprep.subr.bf16.mxu0 %v2301
        %2333 = vmatpush1.bf16.xpose.msra.mxu0 %v2300
        %2334 = vmatprep.subr.bf16.mxu0 %v2303
        %2335 = vmatpush1.bf16.xpose.msra.mxu0 %v2302
        %2336 = vmatprep.subr.bf16.mxu0 %v2305
        %2337 = vmatpush1.bf16.xpose.msra.mxu0 %v2304
        %2338 = vmatprep.subr.bf16.mxu0 %v2307
        %2339 = vmatpush1.bf16.xpose.msra.mxu0 %v2306
        %2340 = vmatprep.mubr.bf16.mxu0 %v1515
        %2341 = vmatmul.mubr.bf16.gmra.mrb[0].mxu0 %v1514
        %v2342 = vpop.f32.mrb[0].mxu0
        %v2343 = vadd.f32 0.0, %v2342
        %v2344 = vpop.f32.mrb[0].mxu0
        %v2345 = vadd.f32 0.0, %v2344
        %v2346 = vpop.f32.mrb[0].mxu0
        %v2347 = vadd.f32 0.0, %v2346
        %v2348 = vpop.f32.mrb[0].mxu0
        %v2349 = vadd.f32 0.0, %v2348
        %2350 = vmatprep.mubr.bf16.mxu0 %v1517
        %2351 = vmatmul.mubr.bf16.gmra.mrb[0].mxu0 %v1516
        %v2352 = vpop.f32.mrb[0].mxu0
        %v2353 = vadd.f32 0.0, %v2352
        %v2354 = vpop.f32.mrb[0].mxu0
        %v2355 = vadd.f32 0.0, %v2354
        %v2356 = vpop.f32.mrb[0].mxu0
        %v2357 = vadd.f32 0.0, %v2356
        %v2358 = vpop.f32.mrb[0].mxu0
        %v2359 = vadd.f32 0.0, %v2358
        %2360 = vdwg.mxu0
        %2361 = vxpose.xlu0.c.b16.start [1/8] %v1212, 128
        %2362 = vxpose.xlu0.c.b16.cont [2/8] %v1214, 128
        %2363 = vxpose.xlu0.c.b16.cont [3/8] 0, 128
        %2364 = vxpose.xlu0.c.b16.cont [4/8] 0, 128
        %2365 = vxpose.xlu0.c.b16.cont [5/8] 0, 128
        %2366 = vxpose.xlu0.c.b16.cont [6/8] 0, 128
        %2367 = vxpose.xlu0.c.b16.cont [7/8] 0, 128
        %2368 = vxpose.xlu0.c.b16.end [8/8] 0, 128
        %v2369 = vpop.trf.xlu0
        %v2370 = vpop.trf.xlu0
        %v2371 = vpop.trf.xlu0
        %v2372 = vpop.trf.xlu0
        %v2373 = vpop.trf.xlu0
        %v2374 = vpop.trf.xlu0
        %v2375 = vpop.trf.xlu0
        %v2376 = vpop.trf.xlu0
        %2377 = vxpose.xlu0.c.b16.start [1/8] %v1213, 128
        %2378 = vxpose.xlu0.c.b16.cont [2/8] %v1215, 128
        %2379 = vxpose.xlu0.c.b16.cont [3/8] 0, 128
        %2380 = vxpose.xlu0.c.b16.cont [4/8] 0, 128
        %2381 = vxpose.xlu0.c.b16.cont [5/8] 0, 128
        %2382 = vxpose.xlu0.c.b16.cont [6/8] 0, 128
        %2383 = vxpose.xlu0.c.b16.cont [7/8] 0, 128
        %2384 = vxpose.xlu0.c.b16.end [8/8] 0, 128
        %v2385 = vpop.trf.xlu0
        %v2386 = vpop.trf.xlu0
        %v2387 = vpop.trf.xlu0
        %v2388 = vpop.trf.xlu0
        %v2389 = vpop.trf.xlu0
        %v2390 = vpop.trf.xlu0
        %v2391 = vpop.trf.xlu0
        %v2392 = vpop.trf.xlu0
        %v2394 = vsel %vm1554, %v2369, 0
        %v2397 = vsel %vm1554, %v2370, 0
        %v2400 = vsel %vm1554, %v2371, 0
        %v2403 = vsel %vm1554, %v2372, 0
        %v2406 = vsel %vm1554, %v2373, 0
        %v2409 = vsel %vm1554, %v2374, 0
        %v2412 = vsel %vm1554, %v2375, 0
        %v2415 = vsel %vm1554, %v2376, 0
        %v2418 = vsel %vm1554, %v2385, 0
        %v2421 = vsel %vm1554, %v2386, 0
        %v2424 = vsel %vm1554, %v2387, 0
        %v2427 = vsel %vm1554, %v2388, 0
        %v2430 = vsel %vm1554, %v2389, 0
        %v2433 = vsel %vm1554, %v2390, 0
        %v2436 = vsel %vm1554, %v2391, 0
        %v2439 = vsel %vm1554, %v2392, 0
        %2441 = vmatprep.subr.bf16.mxu0 %v1366
        %2442 = vmatpush1.bf16.msra.mxu0 %v1365
        %2443 = vmatprep.subr.bf16.mxu0 %v1368
        %2444 = vmatpush1.bf16.msra.mxu0 %v1367
        %2445 = vmatprep.subr.bf16.mxu0 0
        %2446 = vmatpush1.bf16.msra.mxu0 0
        %2447 = vmatprep.subr.bf16.mxu0 0
        %2448 = vmatpush1.bf16.msra.mxu0 0
        %2449 = vmatprep.subr.bf16.mxu0 0
        %2450 = vmatpush1.bf16.msra.mxu0 0
        %2451 = vmatprep.subr.bf16.mxu0 0
        %2452 = vmatpush1.bf16.msra.mxu0 0
        %2453 = vmatprep.subr.bf16.mxu0 0
        %2454 = vmatpush1.bf16.msra.mxu0 0
        %2455 = vmatprep.subr.bf16.mxu0 0
        %2456 = vmatpush1.bf16.msra.mxu0 0
        %2457 = vmatprep.subr.bf16.mxu0 0
        %2458 = vmatpush1.bf16.msra.mxu0 0
        %2459 = vmatprep.subr.bf16.mxu0 0
        %2460 = vmatpush1.bf16.msra.mxu0 0
        %2461 = vmatprep.subr.bf16.mxu0 0
        %2462 = vmatpush1.bf16.msra.mxu0 0
        %2463 = vmatprep.subr.bf16.mxu0 0
        %2464 = vmatpush1.bf16.msra.mxu0 0
        %2465 = vmatprep.subr.bf16.mxu0 0
        %2466 = vmatpush1.bf16.msra.mxu0 0
        %2467 = vmatprep.subr.bf16.mxu0 0
        %2468 = vmatpush1.bf16.msra.mxu0 0
        %2469 = vmatprep.subr.bf16.mxu0 0
        %2470 = vmatpush1.bf16.msra.mxu0 0
        %2471 = vmatprep.subr.bf16.mxu0 0
        %2472 = vmatpush1.bf16.msra.mxu0 0
        %2473 = vmatprep.mubr.bf16.mxu0 0
        %2474 = vmatmul.mubr.bf16.gmra.mrb[0].mxu0 %v2394
        %v2475 = vpop.f32.mrb[0].mxu0
        %v2476 = vadd.f32 0.0, %v2475
        %v2477 = vpop.f32.mrb[0].mxu0
        %v2478 = vadd.f32 0.0, %v2477
        %v2479 = vpop.f32.mrb[0].mxu0
        %v2480 = vadd.f32 0.0, %v2479
        %v2481 = vpop.f32.mrb[0].mxu0
        %v2482 = vadd.f32 0.0, %v2481
        %2483 = vmatprep.mubr.bf16.mxu0 0
        %2484 = vmatmul.mubr.bf16.gmra.mrb[0].mxu0 %v2397
        %v2485 = vpop.f32.mrb[0].mxu0
        %v2486 = vadd.f32 0.0, %v2485
        %v2487 = vpop.f32.mrb[0].mxu0
        %v2488 = vadd.f32 0.0, %v2487
        %v2489 = vpop.f32.mrb[0].mxu0
        %v2490 = vadd.f32 0.0, %v2489
        %v2491 = vpop.f32.mrb[0].mxu0
        %v2492 = vadd.f32 0.0, %v2491
        %2493 = vmatprep.mubr.bf16.mxu0 0
        %2494 = vmatmul.mubr.bf16.gmra.mrb[0].mxu0 %v2400
        %v2495 = vpop.f32.mrb[0].mxu0
        %v2496 = vadd.f32 0.0, %v2495
        %v2497 = vpop.f32.mrb[0].mxu0
        %v2498 = vadd.f32 0.0, %v2497
        %v2499 = vpop.f32.mrb[0].mxu0
        %v2500 = vadd.f32 0.0, %v2499
        %v2501 = vpop.f32.mrb[0].mxu0
        %v2502 = vadd.f32 0.0, %v2501
        %2503 = vmatprep.mubr.bf16.mxu0 0
        %2504 = vmatmul.mubr.bf16.gmra.mrb[0].mxu0 %v2403
        %v2505 = vpop.f32.mrb[0].mxu0
        %v2506 = vadd.f32 0.0, %v2505
        %v2507 = vpop.f32.mrb[0].mxu0
        %v2508 = vadd.f32 0.0, %v2507
        %v2509 = vpop.f32.mrb[0].mxu0
        %v2510 = vadd.f32 0.0, %v2509
        %v2511 = vpop.f32.mrb[0].mxu0
        %v2512 = vadd.f32 0.0, %v2511
        %2513 = vmatprep.mubr.bf16.mxu0 0
        %2514 = vmatmul.mubr.bf16.gmra.mrb[0].mxu0 %v2406
        %v2515 = vpop.f32.mrb[0].mxu0
        %v2516 = vadd.f32 0.0, %v2515
        %v2517 = vpop.f32.mrb[0].mxu0
        %v2518 = vadd.f32 0.0, %v2517
        %v2519 = vpop.f32.mrb[0].mxu0
        %v2520 = vadd.f32 0.0, %v2519
        %v2521 = vpop.f32.mrb[0].mxu0
        %v2522 = vadd.f32 0.0, %v2521
        %2523 = vmatprep.mubr.bf16.mxu0 0
        %2524 = vmatmul.mubr.bf16.gmra.mrb[0].mxu0 %v2409
        %v2525 = vpop.f32.mrb[0].mxu0
        %v2526 = vadd.f32 0.0, %v2525
        %v2527 = vpop.f32.mrb[0].mxu0
        %v2528 = vadd.f32 0.0, %v2527
        %v2529 = vpop.f32.mrb[0].mxu0
        %v2530 = vadd.f32 0.0, %v2529
        %v2531 = vpop.f32.mrb[0].mxu0
        %v2532 = vadd.f32 0.0, %v2531
        %2533 = vmatprep.mubr.bf16.mxu0 0
        %2534 = vmatmul.mubr.bf16.gmra.mrb[0].mxu0 %v2412
        %v2535 = vpop.f32.mrb[0].mxu0
        %v2536 = vadd.f32 0.0, %v2535
        %v2537 = vpop.f32.mrb[0].mxu0
        %v2538 = vadd.f32 0.0, %v2537
        %v2539 = vpop.f32.mrb[0].mxu0
        %v2540 = vadd.f32 0.0, %v2539
        %v2541 = vpop.f32.mrb[0].mxu0
        %v2542 = vadd.f32 0.0, %v2541
        %2543 = vmatprep.mubr.bf16.mxu0 0
        %2544 = vmatmul.mubr.bf16.gmra.mrb[0].mxu0 %v2415
        %v2545 = vpop.f32.mrb[0].mxu0
        %v2546 = vadd.f32 0.0, %v2545
        %v2547 = vpop.f32.mrb[0].mxu0
        %v2548 = vadd.f32 0.0, %v2547
        %v2549 = vpop.f32.mrb[0].mxu0
        %v2550 = vadd.f32 0.0, %v2549
        %v2551 = vpop.f32.mrb[0].mxu0
        %v2552 = vadd.f32 0.0, %v2551
        %2553 = vmatprep.mubr.bf16.mxu0 0
        %2554 = vmatmul.mubr.bf16.gmra.mrb[0].mxu0 %v2418
        %v2555 = vpop.f32.mrb[0].mxu0
        %v2556 = vadd.f32 0.0, %v2555
        %v2557 = vpop.f32.mrb[0].mxu0
        %v2558 = vadd.f32 0.0, %v2557
        %v2559 = vpop.f32.mrb[0].mxu0
        %v2560 = vadd.f32 0.0, %v2559
        %v2561 = vpop.f32.mrb[0].mxu0
        %v2562 = vadd.f32 0.0, %v2561
        %2563 = vmatprep.mubr.bf16.mxu0 0
        %2564 = vmatmul.mubr.bf16.gmra.mrb[0].mxu0 %v2421
        %v2565 = vpop.f32.mrb[0].mxu0
        %v2566 = vadd.f32 0.0, %v2565
        %v2567 = vpop.f32.mrb[0].mxu0
        %v2568 = vadd.f32 0.0, %v2567
        %v2569 = vpop.f32.mrb[0].mxu0
        %v2570 = vadd.f32 0.0, %v2569
        %v2571 = vpop.f32.mrb[0].mxu0
        %v2572 = vadd.f32 0.0, %v2571
        %2573 = vmatprep.mubr.bf16.mxu0 0
        %2574 = vmatmul.mubr.bf16.gmra.mrb[0].mxu0 %v2424
        %v2575 = vpop.f32.mrb[0].mxu0
        %v2576 = vadd.f32 0.0, %v2575
        %v2577 = vpop.f32.mrb[0].mxu0
        %v2578 = vadd.f32 0.0, %v2577
        %v2579 = vpop.f32.mrb[0].mxu0
        %v2580 = vadd.f32 0.0, %v2579
        %v2581 = vpop.f32.mrb[0].mxu0
        %v2582 = vadd.f32 0.0, %v2581
        %2583 = vmatprep.mubr.bf16.mxu0 0
        %2584 = vmatmul.mubr.bf16.gmra.mrb[0].mxu0 %v2427
        %v2585 = vpop.f32.mrb[0].mxu0
        %v2586 = vadd.f32 0.0, %v2585
        %v2587 = vpop.f32.mrb[0].mxu0
        %v2588 = vadd.f32 0.0, %v2587
        %v2589 = vpop.f32.mrb[0].mxu0
        %v2590 = vadd.f32 0.0, %v2589
        %v2591 = vpop.f32.mrb[0].mxu0
        %v2592 = vadd.f32 0.0, %v2591
        %2593 = vmatprep.mubr.bf16.mxu0 0
        %2594 = vmatmul.mubr.bf16.gmra.mrb[0].mxu0 %v2430
        %v2595 = vpop.f32.mrb[0].mxu0
        %v2596 = vadd.f32 0.0, %v2595
        %v2597 = vpop.f32.mrb[0].mxu0
        %v2598 = vadd.f32 0.0, %v2597
        %v2599 = vpop.f32.mrb[0].mxu0
        %v2600 = vadd.f32 0.0, %v2599
        %v2601 = vpop.f32.mrb[0].mxu0
        %v2602 = vadd.f32 0.0, %v2601
        %2603 = vmatprep.mubr.bf16.mxu0 0
        %2604 = vmatmul.mubr.bf16.gmra.mrb[0].mxu0 %v2433
        %v2605 = vpop.f32.mrb[0].mxu0
        %v2606 = vadd.f32 0.0, %v2605
        %v2607 = vpop.f32.mrb[0].mxu0
        %v2608 = vadd.f32 0.0, %v2607
        %v2609 = vpop.f32.mrb[0].mxu0
        %v2610 = vadd.f32 0.0, %v2609
        %v2611 = vpop.f32.mrb[0].mxu0
        %v2612 = vadd.f32 0.0, %v2611
        %2613 = vmatprep.mubr.bf16.mxu0 0
        %2614 = vmatmul.mubr.bf16.gmra.mrb[0].mxu0 %v2436
        %v2615 = vpop.f32.mrb[0].mxu0
        %v2616 = vadd.f32 0.0, %v2615
        %v2617 = vpop.f32.mrb[0].mxu0
        %v2618 = vadd.f32 0.0, %v2617
        %v2619 = vpop.f32.mrb[0].mxu0
        %v2620 = vadd.f32 0.0, %v2619
        %v2621 = vpop.f32.mrb[0].mxu0
        %v2622 = vadd.f32 0.0, %v2621
        %2623 = vmatprep.mubr.bf16.mxu0 0
        %2624 = vmatmul.mubr.bf16.gmra.mrb[0].mxu0 %v2439
        %v2625 = vpop.f32.mrb[0].mxu0
        %v2626 = vadd.f32 0.0, %v2625
        %v2627 = vpop.f32.mrb[0].mxu0
        %v2628 = vadd.f32 0.0, %v2627
        %v2629 = vpop.f32.mrb[0].mxu0
        %v2630 = vadd.f32 0.0, %v2629
        %v2631 = vpop.f32.mrb[0].mxu0
        %v2632 = vadd.f32 0.0, %v2631
        %2633 = vdwg.mxu0
        %v2634 = vmax.f32 %v2476, %v2478
        %2635 = vmax.xlane.f32.xlu0 %v2634
        %v2636 = vpop.xlane.xlu0 %2635
        %v2637 = vmax.f32 %v2480, %v2482
        %2638 = vmax.xlane.f32.xlu0 %v2637
        %v2639 = vpop.xlane.xlu0 %2638
        %v2640 = vmax.f32 %v2486, %v2488
        %2641 = vmax.xlane.f32.xlu0 %v2640
        %v2642 = vpop.xlane.xlu0 %2641
        %v2643 = vmax.f32 %v2490, %v2492
        %2644 = vmax.xlane.f32.xlu0 %v2643
        %v2645 = vpop.xlane.xlu0 %2644
        %v2646 = vmax.f32 %v2496, %v2498
        %2647 = vmax.xlane.f32.xlu0 %v2646
        %v2648 = vpop.xlane.xlu0 %2647
        %v2649 = vmax.f32 %v2500, %v2502
        %2650 = vmax.xlane.f32.xlu0 %v2649
        %v2651 = vpop.xlane.xlu0 %2650
        %v2652 = vmax.f32 %v2506, %v2508
        %2653 = vmax.xlane.f32.xlu0 %v2652
        %v2654 = vpop.xlane.xlu0 %2653
        %v2655 = vmax.f32 %v2510, %v2512
        %2656 = vmax.xlane.f32.xlu0 %v2655
        %v2657 = vpop.xlane.xlu0 %2656
        %v2658 = vmax.f32 %v2516, %v2518
        %2659 = vmax.xlane.f32.xlu0 %v2658
        %v2660 = vpop.xlane.xlu0 %2659
        %v2661 = vmax.f32 %v2520, %v2522
        %2662 = vmax.xlane.f32.xlu0 %v2661
        %v2663 = vpop.xlane.xlu0 %2662
        %v2664 = vmax.f32 %v2526, %v2528
        %2665 = vmax.xlane.f32.xlu0 %v2664
        %v2666 = vpop.xlane.xlu0 %2665
        %v2667 = vmax.f32 %v2530, %v2532
        %2668 = vmax.xlane.f32.xlu0 %v2667
        %v2669 = vpop.xlane.xlu0 %2668
        %v2670 = vmax.f32 %v2536, %v2538
        %2671 = vmax.xlane.f32.xlu0 %v2670
        %v2672 = vpop.xlane.xlu0 %2671
        %v2673 = vmax.f32 %v2540, %v2542
        %2674 = vmax.xlane.f32.xlu0 %v2673
        %v2675 = vpop.xlane.xlu0 %2674
        %v2676 = vmax.f32 %v2546, %v2548
        %2677 = vmax.xlane.f32.xlu0 %v2676
        %v2678 = vpop.xlane.xlu0 %2677
        %v2679 = vmax.f32 %v2550, %v2552
        %2680 = vmax.xlane.f32.xlu0 %v2679
        %v2681 = vpop.xlane.xlu0 %2680
        %v2682 = vmax.f32 %v2556, %v2558
        %2683 = vmax.xlane.f32.xlu0 %v2682
        %v2684 = vpop.xlane.xlu0 %2683
        %v2685 = vmax.f32 %v2560, %v2562
        %2686 = vmax.xlane.f32.xlu0 %v2685
        %v2687 = vpop.xlane.xlu0 %2686
        %v2688 = vmax.f32 %v2566, %v2568
        %2689 = vmax.xlane.f32.xlu0 %v2688
        %v2690 = vpop.xlane.xlu0 %2689
        %v2691 = vmax.f32 %v2570, %v2572
        %2692 = vmax.xlane.f32.xlu0 %v2691
        %v2693 = vpop.xlane.xlu0 %2692
        %v2694 = vmax.f32 %v2576, %v2578
        %2695 = vmax.xlane.f32.xlu0 %v2694
        %v2696 = vpop.xlane.xlu0 %2695
        %v2697 = vmax.f32 %v2580, %v2582
        %2698 = vmax.xlane.f32.xlu0 %v2697
        %v2699 = vpop.xlane.xlu0 %2698
        %v2700 = vmax.f32 %v2586, %v2588
        %2701 = vmax.xlane.f32.xlu0 %v2700
        %v2702 = vpop.xlane.xlu0 %2701
        %v2703 = vmax.f32 %v2590, %v2592
        %2704 = vmax.xlane.f32.xlu0 %v2703
        %v2705 = vpop.xlane.xlu0 %2704
        %v2706 = vmax.f32 %v2596, %v2598
        %2707 = vmax.xlane.f32.xlu0 %v2706
        %v2708 = vpop.xlane.xlu0 %2707
        %v2709 = vmax.f32 %v2600, %v2602
        %2710 = vmax.xlane.f32.xlu0 %v2709
        %v2711 = vpop.xlane.xlu0 %2710
        %v2712 = vmax.f32 %v2606, %v2608
        %2713 = vmax.xlane.f32.xlu0 %v2712
        %v2714 = vpop.xlane.xlu0 %2713
        %v2715 = vmax.f32 %v2610, %v2612
        %2716 = vmax.xlane.f32.xlu0 %v2715
        %v2717 = vpop.xlane.xlu0 %2716
        %v2718 = vmax.f32 %v2616, %v2618
        %2719 = vmax.xlane.f32.xlu0 %v2718
        %v2720 = vpop.xlane.xlu0 %2719
        %v2721 = vmax.f32 %v2620, %v2622
        %2722 = vmax.xlane.f32.xlu0 %v2721
        %v2723 = vpop.xlane.xlu0 %2722
        %v2724 = vmax.f32 %v2626, %v2628
        %2725 = vmax.xlane.f32.xlu0 %v2724
        %v2726 = vpop.xlane.xlu0 %2725
        %v2727 = vmax.f32 %v2630, %v2632
        %2728 = vmax.xlane.f32.xlu0 %v2727
        %v2729 = vpop.xlane.xlu0 %2728
        %v2730 = vsub.f32 %v2476, %v2636
        %v2731 = vsub.f32 %v2478, %v2636
        %v2732 = vsub.f32 %v2480, %v2639
        %v2733 = vsub.f32 %v2482, %v2639
        %v2734 = vsub.f32 %v2486, %v2642
        %v2735 = vsub.f32 %v2488, %v2642
        %v2736 = vsub.f32 %v2490, %v2645
        %v2737 = vsub.f32 %v2492, %v2645
        %v2738 = vsub.f32 %v2496, %v2648
        %v2739 = vsub.f32 %v2498, %v2648
        %v2740 = vsub.f32 %v2500, %v2651
        %v2741 = vsub.f32 %v2502, %v2651
        %v2742 = vsub.f32 %v2506, %v2654
        %v2743 = vsub.f32 %v2508, %v2654
        %v2744 = vsub.f32 %v2510, %v2657
        %v2745 = vsub.f32 %v2512, %v2657
        %v2746 = vsub.f32 %v2516, %v2660
        %v2747 = vsub.f32 %v2518, %v2660
        %v2748 = vsub.f32 %v2520, %v2663
        %v2749 = vsub.f32 %v2522, %v2663
        %v2750 = vsub.f32 %v2526, %v2666
        %v2751 = vsub.f32 %v2528, %v2666
        %v2752 = vsub.f32 %v2530, %v2669
        %v2753 = vsub.f32 %v2532, %v2669
        %v2754 = vsub.f32 %v2536, %v2672
        %v2755 = vsub.f32 %v2538, %v2672
        %v2756 = vsub.f32 %v2540, %v2675
        %v2757 = vsub.f32 %v2542, %v2675
        %v2758 = vsub.f32 %v2546, %v2678
        %v2759 = vsub.f32 %v2548, %v2678
        %v2760 = vsub.f32 %v2550, %v2681
        %v2761 = vsub.f32 %v2552, %v2681
        %v2762 = vsub.f32 %v2556, %v2684
        %v2763 = vsub.f32 %v2558, %v2684
        %v2764 = vsub.f32 %v2560, %v2687
        %v2765 = vsub.f32 %v2562, %v2687
        %v2766 = vsub.f32 %v2566, %v2690
        %v2767 = vsub.f32 %v2568, %v2690
        %v2768 = vsub.f32 %v2570, %v2693
        %v2769 = vsub.f32 %v2572, %v2693
        %v2770 = vsub.f32 %v2576, %v2696
        %v2771 = vsub.f32 %v2578, %v2696
        %v2772 = vsub.f32 %v2580, %v2699
        %v2773 = vsub.f32 %v2582, %v2699
        %v2774 = vsub.f32 %v2586, %v2702
        %v2775 = vsub.f32 %v2588, %v2702
        %v2776 = vsub.f32 %v2590, %v2705
        %v2777 = vsub.f32 %v2592, %v2705
        %v2778 = vsub.f32 %v2596, %v2708
        %v2779 = vsub.f32 %v2598, %v2708
        %v2780 = vsub.f32 %v2600, %v2711
        %v2781 = vsub.f32 %v2602, %v2711
        %v2782 = vsub.f32 %v2606, %v2714
        %v2783 = vsub.f32 %v2608, %v2714
        %v2784 = vsub.f32 %v2610, %v2717
        %v2785 = vsub.f32 %v2612, %v2717
        %v2786 = vsub.f32 %v2616, %v2720
        %v2787 = vsub.f32 %v2618, %v2720
        %v2788 = vsub.f32 %v2620, %v2723
        %v2789 = vsub.f32 %v2622, %v2723
        %v2790 = vsub.f32 %v2626, %v2726
        %v2791 = vsub.f32 %v2628, %v2726
        %v2792 = vsub.f32 %v2630, %v2729
        %v2793 = vsub.f32 %v2632, %v2729
        %v2794 = vmul.f32 %v2730, 1.442695
        %v2795 = vpow.pop %v2794
        %v2796 = vmul.f32 %v2731, 1.442695
        %v2797 = vpow.pop %v2796
        %v2798 = vmul.f32 %v2732, 1.442695
        %v2799 = vpow.pop %v2798
        %v2800 = vmul.f32 %v2733, 1.442695
        %v2801 = vpow.pop %v2800
        %v2802 = vmul.f32 %v2734, 1.442695
        %v2803 = vpow.pop %v2802
        %v2804 = vmul.f32 %v2735, 1.442695
        %v2805 = vpow.pop %v2804
        %v2806 = vmul.f32 %v2736, 1.442695
        %v2807 = vpow.pop %v2806
        %v2808 = vmul.f32 %v2737, 1.442695
        %v2809 = vpow.pop %v2808
        %v2810 = vmul.f32 %v2738, 1.442695
        %v2811 = vpow.pop %v2810
        %v2812 = vmul.f32 %v2739, 1.442695
        %v2813 = vpow.pop %v2812
        %v2814 = vmul.f32 %v2740, 1.442695
        %v2815 = vpow.pop %v2814
        %v2816 = vmul.f32 %v2741, 1.442695
        %v2817 = vpow.pop %v2816
        %v2818 = vmul.f32 %v2742, 1.442695
        %v2819 = vpow.pop %v2818
        %v2820 = vmul.f32 %v2743, 1.442695
        %v2821 = vpow.pop %v2820
        %v2822 = vmul.f32 %v2744, 1.442695
        %v2823 = vpow.pop %v2822
        %v2824 = vmul.f32 %v2745, 1.442695
        %v2825 = vpow.pop %v2824
        %v2826 = vmul.f32 %v2746, 1.442695
        %v2827 = vpow.pop %v2826
        %v2828 = vmul.f32 %v2747, 1.442695
        %v2829 = vpow.pop %v2828
        %v2830 = vmul.f32 %v2748, 1.442695
        %v2831 = vpow.pop %v2830
        %v2832 = vmul.f32 %v2749, 1.442695
        %v2833 = vpow.pop %v2832
        %v2834 = vmul.f32 %v2750, 1.442695
        %v2835 = vpow.pop %v2834
        %v2836 = vmul.f32 %v2751, 1.442695
        %v2837 = vpow.pop %v2836
        %v2838 = vmul.f32 %v2752, 1.442695
        %v2839 = vpow.pop %v2838
        %v2840 = vmul.f32 %v2753, 1.442695
        %v2841 = vpow.pop %v2840
        %v2842 = vmul.f32 %v2754, 1.442695
        %v2843 = vpow.pop %v2842
        %v2844 = vmul.f32 %v2755, 1.442695
        %v2845 = vpow.pop %v2844
        %v2846 = vmul.f32 %v2756, 1.442695
        %v2847 = vpow.pop %v2846
        %v2848 = vmul.f32 %v2757, 1.442695
        %v2849 = vpow.pop %v2848
        %v2850 = vmul.f32 %v2758, 1.442695
        %v2851 = vpow.pop %v2850
        %v2852 = vmul.f32 %v2759, 1.442695
        %v2853 = vpow.pop %v2852
        %v2854 = vmul.f32 %v2760, 1.442695
        %v2855 = vpow.pop %v2854
        %v2856 = vmul.f32 %v2761, 1.442695
        %v2857 = vpow.pop %v2856
        %v2858 = vmul.f32 %v2762, 1.442695
        %v2859 = vpow.pop %v2858
        %v2860 = vmul.f32 %v2763, 1.442695
        %v2861 = vpow.pop %v2860
        %v2862 = vmul.f32 %v2764, 1.442695
        %v2863 = vpow.pop %v2862
        %v2864 = vmul.f32 %v2765, 1.442695
        %v2865 = vpow.pop %v2864
        %v2866 = vmul.f32 %v2766, 1.442695
        %v2867 = vpow.pop %v2866
        %v2868 = vmul.f32 %v2767, 1.442695
        %v2869 = vpow.pop %v2868
        %v2870 = vmul.f32 %v2768, 1.442695
        %v2871 = vpow.pop %v2870
        %v2872 = vmul.f32 %v2769, 1.442695
        %v2873 = vpow.pop %v2872
        %v2874 = vmul.f32 %v2770, 1.442695
        %v2875 = vpow.pop %v2874
        %v2876 = vmul.f32 %v2771, 1.442695
        %v2877 = vpow.pop %v2876
        %v2878 = vmul.f32 %v2772, 1.442695
        %v2879 = vpow.pop %v2878
        %v2880 = vmul.f32 %v2773, 1.442695
        %v2881 = vpow.pop %v2880
        %v2882 = vmul.f32 %v2774, 1.442695
        %v2883 = vpow.pop %v2882
        %v2884 = vmul.f32 %v2775, 1.442695
        %v2885 = vpow.pop %v2884
        %v2886 = vmul.f32 %v2776, 1.442695
        %v2887 = vpow.pop %v2886
        %v2888 = vmul.f32 %v2777, 1.442695
        %v2889 = vpow.pop %v2888
        %v2890 = vmul.f32 %v2778, 1.442695
        %v2891 = vpow.pop %v2890
        %v2892 = vmul.f32 %v2779, 1.442695
        %v2893 = vpow.pop %v2892
        %v2894 = vmul.f32 %v2780, 1.442695
        %v2895 = vpow.pop %v2894
        %v2896 = vmul.f32 %v2781, 1.442695
        %v2897 = vpow.pop %v2896
        %v2898 = vmul.f32 %v2782, 1.442695
        %v2899 = vpow.pop %v2898
        %v2900 = vmul.f32 %v2783, 1.442695
        %v2901 = vpow.pop %v2900
        %v2902 = vmul.f32 %v2784, 1.442695
        %v2903 = vpow.pop %v2902
        %v2904 = vmul.f32 %v2785, 1.442695
        %v2905 = vpow.pop %v2904
        %v2906 = vmul.f32 %v2786, 1.442695
        %v2907 = vpow.pop %v2906
        %v2908 = vmul.f32 %v2787, 1.442695
        %v2909 = vpow.pop %v2908
        %v2910 = vmul.f32 %v2788, 1.442695
        %v2911 = vpow.pop %v2910
        %v2912 = vmul.f32 %v2789, 1.442695
        %v2913 = vpow.pop %v2912
        %v2914 = vmul.f32 %v2790, 1.442695
        %v2915 = vpow.pop %v2914
        %v2916 = vmul.f32 %v2791, 1.442695
        %v2917 = vpow.pop %v2916
        %v2918 = vmul.f32 %v2792, 1.442695
        %v2919 = vpow.pop %v2918
        %v2920 = vmul.f32 %v2793, 1.442695
        %v2921 = vpow.pop %v2920
        %v2922 = vadd.f32 %v2795, %v2797
        %2923 = vadd.xlane.f32.xlu0 %v2922
        %v2924 = vpop.xlane.xlu0 %2923
        %v2925 = vadd.f32 %v2799, %v2801
        %2926 = vadd.xlane.f32.xlu0 %v2925
        %v2927 = vpop.xlane.xlu0 %2926
        %v2928 = vadd.f32 %v2803, %v2805
        %2929 = vadd.xlane.f32.xlu0 %v2928
        %v2930 = vpop.xlane.xlu0 %2929
        %v2931 = vadd.f32 %v2807, %v2809
        %2932 = vadd.xlane.f32.xlu0 %v2931
        %v2933 = vpop.xlane.xlu0 %2932
        %v2934 = vadd.f32 %v2811, %v2813
        %2935 = vadd.xlane.f32.xlu0 %v2934
        %v2936 = vpop.xlane.xlu0 %2935
        %v2937 = vadd.f32 %v2815, %v2817
        %2938 = vadd.xlane.f32.xlu0 %v2937
        %v2939 = vpop.xlane.xlu0 %2938
        %v2940 = vadd.f32 %v2819, %v2821
        %2941 = vadd.xlane.f32.xlu0 %v2940
        %v2942 = vpop.xlane.xlu0 %2941
        %v2943 = vadd.f32 %v2823, %v2825
        %2944 = vadd.xlane.f32.xlu0 %v2943
        %v2945 = vpop.xlane.xlu0 %2944
        %v2946 = vadd.f32 %v2827, %v2829
        %2947 = vadd.xlane.f32.xlu0 %v2946
        %v2948 = vpop.xlane.xlu0 %2947
        %v2949 = vadd.f32 %v2831, %v2833
        %2950 = vadd.xlane.f32.xlu0 %v2949
        %v2951 = vpop.xlane.xlu0 %2950
        %v2952 = vadd.f32 %v2835, %v2837
        %2953 = vadd.xlane.f32.xlu0 %v2952
        %v2954 = vpop.xlane.xlu0 %2953
        %v2955 = vadd.f32 %v2839, %v2841
        %2956 = vadd.xlane.f32.xlu0 %v2955
        %v2957 = vpop.xlane.xlu0 %2956
        %v2958 = vadd.f32 %v2843, %v2845
        %2959 = vadd.xlane.f32.xlu0 %v2958
        %v2960 = vpop.xlane.xlu0 %2959
        %v2961 = vadd.f32 %v2847, %v2849
        %2962 = vadd.xlane.f32.xlu0 %v2961
        %v2963 = vpop.xlane.xlu0 %2962
        %v2964 = vadd.f32 %v2851, %v2853
        %2965 = vadd.xlane.f32.xlu0 %v2964
        %v2966 = vpop.xlane.xlu0 %2965
        %v2967 = vadd.f32 %v2855, %v2857
        %2968 = vadd.xlane.f32.xlu0 %v2967
        %v2969 = vpop.xlane.xlu0 %2968
        %v2970 = vadd.f32 %v2859, %v2861
        %2971 = vadd.xlane.f32.xlu0 %v2970
        %v2972 = vpop.xlane.xlu0 %2971
        %v2973 = vadd.f32 %v2863, %v2865
        %2974 = vadd.xlane.f32.xlu0 %v2973
        %v2975 = vpop.xlane.xlu0 %2974
        %v2976 = vadd.f32 %v2867, %v2869
        %2977 = vadd.xlane.f32.xlu0 %v2976
        %v2978 = vpop.xlane.xlu0 %2977
        %v2979 = vadd.f32 %v2871, %v2873
        %2980 = vadd.xlane.f32.xlu0 %v2979
        %v2981 = vpop.xlane.xlu0 %2980
        %v2982 = vadd.f32 %v2875, %v2877
        %2983 = vadd.xlane.f32.xlu0 %v2982
        %v2984 = vpop.xlane.xlu0 %2983
        %v2985 = vadd.f32 %v2879, %v2881
        %2986 = vadd.xlane.f32.xlu0 %v2985
        %v2987 = vpop.xlane.xlu0 %2986
        %v2988 = vadd.f32 %v2883, %v2885
        %2989 = vadd.xlane.f32.xlu0 %v2988
        %v2990 = vpop.xlane.xlu0 %2989
        %v2991 = vadd.f32 %v2887, %v2889
        %2992 = vadd.xlane.f32.xlu0 %v2991
        %v2993 = vpop.xlane.xlu0 %2992
        %v2994 = vadd.f32 %v2891, %v2893
        %2995 = vadd.xlane.f32.xlu0 %v2994
        %v2996 = vpop.xlane.xlu0 %2995
        %v2997 = vadd.f32 %v2895, %v2897
        %2998 = vadd.xlane.f32.xlu0 %v2997
        %v2999 = vpop.xlane.xlu0 %2998
        %v3000 = vadd.f32 %v2899, %v2901
        %3001 = vadd.xlane.f32.xlu0 %v3000
        %v3002 = vpop.xlane.xlu0 %3001
        %v3003 = vadd.f32 %v2903, %v2905
        %3004 = vadd.xlane.f32.xlu0 %v3003
        %v3005 = vpop.xlane.xlu0 %3004
        %v3006 = vadd.f32 %v2907, %v2909
        %3007 = vadd.xlane.f32.xlu0 %v3006
        %v3008 = vpop.xlane.xlu0 %3007
        %v3009 = vadd.f32 %v2911, %v2913
        %3010 = vadd.xlane.f32.xlu0 %v3009
        %v3011 = vpop.xlane.xlu0 %3010
        %v3012 = vadd.f32 %v2915, %v2917
        %3013 = vadd.xlane.f32.xlu0 %v3012
        %v3014 = vpop.xlane.xlu0 %3013
        %v3015 = vadd.f32 %v2919, %v2921
        %3016 = vadd.xlane.f32.xlu0 %v3015
        %v3017 = vpop.xlane.xlu0 %3016
        %v3018 = vrcp.pop %v2924
        %v3019 = vrcp.pop %v2927
        %v3020 = vrcp.pop %v2930
        %v3021 = vrcp.pop %v2933
        %v3022 = vrcp.pop %v2936
        %v3023 = vrcp.pop %v2939
        %v3024 = vrcp.pop %v2942
        %v3025 = vrcp.pop %v2945
        %v3026 = vrcp.pop %v2948
        %v3027 = vrcp.pop %v2951
        %v3028 = vrcp.pop %v2954
        %v3029 = vrcp.pop %v2957
        %v3030 = vrcp.pop %v2960
        %v3031 = vrcp.pop %v2963
        %v3032 = vrcp.pop %v2966
        %v3033 = vrcp.pop %v2969
        %v3034 = vrcp.pop %v2972
        %v3035 = vrcp.pop %v2975
        %v3036 = vrcp.pop %v2978
        %v3037 = vrcp.pop %v2981
        %v3038 = vrcp.pop %v2984
        %v3039 = vrcp.pop %v2987
        %v3040 = vrcp.pop %v2990
        %v3041 = vrcp.pop %v2993
        %v3042 = vrcp.pop %v2996
        %v3043 = vrcp.pop %v2999
        %v3044 = vrcp.pop %v3002
        %v3045 = vrcp.pop %v3005
        %v3046 = vrcp.pop %v3008
        %v3047 = vrcp.pop %v3011
        %v3048 = vrcp.pop %v3014
        %v3049 = vrcp.pop %v3017
        %v3050 = vmul.f32 %v2795, %v3018
        %v3051 = vmul.f32 %v2797, %v3018
        %v3052 = vmul.f32 %v2799, %v3019
        %v3053 = vmul.f32 %v2801, %v3019
        %v3054 = vmul.f32 %v2803, %v3020
        %v3055 = vmul.f32 %v2805, %v3020
        %v3056 = vmul.f32 %v2807, %v3021
        %v3057 = vmul.f32 %v2809, %v3021
        %v3058 = vmul.f32 %v2811, %v3022
        %v3059 = vmul.f32 %v2813, %v3022
        %v3060 = vmul.f32 %v2815, %v3023
        %v3061 = vmul.f32 %v2817, %v3023
        %v3062 = vmul.f32 %v2819, %v3024
        %v3063 = vmul.f32 %v2821, %v3024
        %v3064 = vmul.f32 %v2823, %v3025
        %v3065 = vmul.f32 %v2825, %v3025
        %v3066 = vmul.f32 %v2827, %v3026
        %v3067 = vmul.f32 %v2829, %v3026
        %v3068 = vmul.f32 %v2831, %v3027
        %v3069 = vmul.f32 %v2833, %v3027
        %v3070 = vmul.f32 %v2835, %v3028
        %v3071 = vmul.f32 %v2837, %v3028
        %v3072 = vmul.f32 %v2839, %v3029
        %v3073 = vmul.f32 %v2841, %v3029
        %v3074 = vmul.f32 %v2843, %v3030
        %v3075 = vmul.f32 %v2845, %v3030
        %v3076 = vmul.f32 %v2847, %v3031
        %v3077 = vmul.f32 %v2849, %v3031
        %v3078 = vmul.f32 %v2851, %v3032
        %v3079 = vmul.f32 %v2853, %v3032
        %v3080 = vmul.f32 %v2855, %v3033
        %v3081 = vmul.f32 %v2857, %v3033
        %v3082 = vmul.f32 %v2859, %v3034
        %v3083 = vmul.f32 %v2861, %v3034
        %v3084 = vmul.f32 %v2863, %v3035
        %v3085 = vmul.f32 %v2865, %v3035
        %v3086 = vmul.f32 %v2867, %v3036
        %v3087 = vmul.f32 %v2869, %v3036
        %v3088 = vmul.f32 %v2871, %v3037
        %v3089 = vmul.f32 %v2873, %v3037
        %v3090 = vmul.f32 %v2875, %v3038
        %v3091 = vmul.f32 %v2877, %v3038
        %v3092 = vmul.f32 %v2879, %v3039
        %v3093 = vmul.f32 %v2881, %v3039
        %v3094 = vmul.f32 %v2883, %v3040
        %v3095 = vmul.f32 %v2885, %v3040
        %v3096 = vmul.f32 %v2887, %v3041
        %v3097 = vmul.f32 %v2889, %v3041
        %v3098 = vmul.f32 %v2891, %v3042
        %v3099 = vmul.f32 %v2893, %v3042
        %v3100 = vmul.f32 %v2895, %v3043
        %v3101 = vmul.f32 %v2897, %v3043
        %v3102 = vmul.f32 %v2899, %v3044
        %v3103 = vmul.f32 %v2901, %v3044
        %v3104 = vmul.f32 %v2903, %v3045
        %v3105 = vmul.f32 %v2905, %v3045
        %v3106 = vmul.f32 %v2907, %v3046
        %v3107 = vmul.f32 %v2909, %v3046
        %v3108 = vmul.f32 %v2911, %v3047
        %v3109 = vmul.f32 %v2913, %v3047
        %v3110 = vmul.f32 %v2915, %v3048
        %v3111 = vmul.f32 %v2917, %v3048
        %v3112 = vmul.f32 %v2919, %v3049
        %v3113 = vmul.f32 %v2921, %v3049
        %v3114 = vpack.c.bf16 %v3052, %v3050
        %v3115 = vpack.c.bf16 %v3053, %v3051
        %v3116 = vpack.c.bf16 %v3056, %v3054
        %v3117 = vpack.c.bf16 %v3057, %v3055
        %v3118 = vpack.c.bf16 %v3060, %v3058
        %v3119 = vpack.c.bf16 %v3061, %v3059
        %v3120 = vpack.c.bf16 %v3064, %v3062
        %v3121 = vpack.c.bf16 %v3065, %v3063
        %v3122 = vpack.c.bf16 %v3068, %v3066
        %v3123 = vpack.c.bf16 %v3069, %v3067
        %v3124 = vpack.c.bf16 %v3072, %v3070
        %v3125 = vpack.c.bf16 %v3073, %v3071
        %v3126 = vpack.c.bf16 %v3076, %v3074
        %v3127 = vpack.c.bf16 %v3077, %v3075
        %v3128 = vpack.c.bf16 %v3080, %v3078
        %v3129 = vpack.c.bf16 %v3081, %v3079
        %v3130 = vpack.c.bf16 %v3084, %v3082
        %v3131 = vpack.c.bf16 %v3085, %v3083
        %v3132 = vpack.c.bf16 %v3088, %v3086
        %v3133 = vpack.c.bf16 %v3089, %v3087
        %v3134 = vpack.c.bf16 %v3092, %v3090
        %v3135 = vpack.c.bf16 %v3093, %v3091
        %v3136 = vpack.c.bf16 %v3096, %v3094
        %v3137 = vpack.c.bf16 %v3097, %v3095
        %v3138 = vpack.c.bf16 %v3100, %v3098
        %v3139 = vpack.c.bf16 %v3101, %v3099
        %v3140 = vpack.c.bf16 %v3104, %v3102
        %v3141 = vpack.c.bf16 %v3105, %v3103
        %v3142 = vpack.c.bf16 %v3108, %v3106
        %v3143 = vpack.c.bf16 %v3109, %v3107
        %v3144 = vpack.c.bf16 %v3112, %v3110
        %v3145 = vpack.c.bf16 %v3113, %v3111
        %3146 = vmatprep.subr.bf16.mxu0 %v3115
        %3147 = vmatpush1.bf16.xpose.msra.mxu0 %v3114
        %3148 = vmatprep.subr.bf16.mxu0 %v3117
        %3149 = vmatpush1.bf16.xpose.msra.mxu0 %v3116
        %3150 = vmatprep.subr.bf16.mxu0 %v3119
        %3151 = vmatpush1.bf16.xpose.msra.mxu0 %v3118
        %3152 = vmatprep.subr.bf16.mxu0 %v3121
        %3153 = vmatpush1.bf16.xpose.msra.mxu0 %v3120
        %3154 = vmatprep.subr.bf16.mxu0 %v3123
        %3155 = vmatpush1.bf16.xpose.msra.mxu0 %v3122
        %3156 = vmatprep.subr.bf16.mxu0 %v3125
        %3157 = vmatpush1.bf16.xpose.msra.mxu0 %v3124
        %3158 = vmatprep.subr.bf16.mxu0 %v3127
        %3159 = vmatpush1.bf16.xpose.msra.mxu0 %v3126
        %3160 = vmatprep.subr.bf16.mxu0 %v3129
        %3161 = vmatpush1.bf16.xpose.msra.mxu0 %v3128
        %3162 = vmatprep.subr.bf16.mxu0 %v3131
        %3163 = vmatpush1.bf16.xpose.msra.mxu0 %v3130
        %3164 = vmatprep.subr.bf16.mxu0 %v3133
        %3165 = vmatpush1.bf16.xpose.msra.mxu0 %v3132
        %3166 = vmatprep.subr.bf16.mxu0 %v3135
        %3167 = vmatpush1.bf16.xpose.msra.mxu0 %v3134
        %3168 = vmatprep.subr.bf16.mxu0 %v3137
        %3169 = vmatpush1.bf16.xpose.msra.mxu0 %v3136
        %3170 = vmatprep.subr.bf16.mxu0 %v3139
        %3171 = vmatpush1.bf16.xpose.msra.mxu0 %v3138
        %3172 = vmatprep.subr.bf16.mxu0 %v3141
        %3173 = vmatpush1.bf16.xpose.msra.mxu0 %v3140
        %3174 = vmatprep.subr.bf16.mxu0 %v3143
        %3175 = vmatpush1.bf16.xpose.msra.mxu0 %v3142
        %3176 = vmatprep.subr.bf16.mxu0 %v3145
        %3177 = vmatpush1.bf16.xpose.msra.mxu0 %v3144
        %3178 = vmatprep.mubr.bf16.mxu0 %v1519
        %3179 = vmatmul.mubr.bf16.gmra.mrb[0].mxu0 %v1518
        %v3180 = vpop.f32.mrb[0].mxu0
        %v3181 = vadd.f32 0.0, %v3180
        %v3182 = vpop.f32.mrb[0].mxu0
        %v3183 = vadd.f32 0.0, %v3182
        %v3184 = vpop.f32.mrb[0].mxu0
        %v3185 = vadd.f32 0.0, %v3184
        %v3186 = vpop.f32.mrb[0].mxu0
        %v3187 = vadd.f32 0.0, %v3186
        %3188 = vmatprep.mubr.bf16.mxu0 %v1521
        %3189 = vmatmul.mubr.bf16.gmra.mrb[0].mxu0 %v1520
        %v3190 = vpop.f32.mrb[0].mxu0
        %v3191 = vadd.f32 0.0, %v3190
        %v3192 = vpop.f32.mrb[0].mxu0
        %v3193 = vadd.f32 0.0, %v3192
        %v3194 = vpop.f32.mrb[0].mxu0
        %v3195 = vadd.f32 0.0, %v3194
        %v3196 = vpop.f32.mrb[0].mxu0
        %v3197 = vadd.f32 0.0, %v3196
        %3198 = vdwg.mxu0
        %v3199 = vpack.c.bf16 %v2347, %v2343
        %v3200 = vpack.c.bf16 %v2349, %v2345
        %v3201 = vpack.c.bf16 %v2357, %v2353
        %v3202 = vpack.c.bf16 %v2359, %v2355
        %v3203 = vpack.c.bf16 %v3185, %v3181
        %v3204 = vpack.c.bf16 %v3187, %v3183
        %v3205 = vpack.c.bf16 %v3195, %v3191
        %v3206 = vpack.c.bf16 %v3197, %v3193
        %3208 = vset.pattern.permute.xlu0 0
        %3209 = vperm.xlu0 %3208, %v516
        %v3210 = vpop.permute.xlu0 %3209
        %3213 = vset.pattern.permute.xlu0 0
        %3214 = vperm.xlu0 %3213, %v517
        %v3215 = vpop.permute.xlu0 %3214
        %3218 = vset.pattern.permute.xlu0 0
        %3219 = vperm.xlu0 %3218, %v518
        %v3220 = vpop.permute.xlu0 %3219
        %3223 = vset.pattern.permute.xlu0 0
        %3224 = vperm.xlu0 %3223, %v519
        %v3225 = vpop.permute.xlu0 %3224
        %3228 = vset.pattern.permute.xlu0 0
        %3229 = vperm.xlu0 %3228, %v520
        %v3230 = vpop.permute.xlu0 %3229
        %3233 = vset.pattern.permute.xlu0 0
        %3234 = vperm.xlu0 %3233, %v521
        %v3235 = vpop.permute.xlu0 %3234
        %3238 = vset.pattern.permute.xlu0 0
        %3239 = vperm.xlu0 %3238, %v522
        %v3240 = vpop.permute.xlu0 %3239
        %3243 = vset.pattern.permute.xlu0 0
        %3244 = vperm.xlu0 %3243, %v523
        %v3245 = vpop.permute.xlu0 %3244
        %v3255 = vunpack.c.l.b16 %v484
        %v3256 = vunpack.c.l.b16 %v485
        %v3257 = vunpack.c.l.b16 %v486
        %v3258 = vunpack.c.l.b16 %v487
        %v3259 = vunpack.c.l.b16 %v488
        %v3260 = vunpack.c.l.b16 %v489
        %v3261 = vunpack.c.l.b16 %v490
        %v3262 = vunpack.c.l.b16 %v491
        %v3263 = vpack.c.b16 %v3256, %v3255
        %v3264 = vpack.c.b16 %v3258, %v3257
        %v3265 = vpack.c.b16 %v3260, %v3259
        %v3266 = vpack.c.b16 %v3262, %v3261
        %v3268 = vsel %vm540, %v3263, 0
        %v3271 = vsel %vm540, %v3264, 0
        %v3274 = vsel %vm540, %v3265, 0
        %v3277 = vsel %vm540, %v3266, 0
        %3279 = vmatprep.subr.bf16.mxu0 %v3200
        %3280 = vmatpush1.bf16.msra.mxu0 %v3199
        %3281 = vmatprep.subr.bf16.mxu0 %v3202
        %3282 = vmatpush1.bf16.msra.mxu0 %v3201
        %3283 = vmatprep.subr.bf16.mxu0 %v3204
        %3284 = vmatpush1.bf16.msra.mxu0 %v3203
        %3285 = vmatprep.subr.bf16.mxu0 %v3206
        %3286 = vmatpush1.bf16.msra.mxu0 %v3205
        %3287 = vmatprep.subr.bf16.mxu0 0
        %3288 = vmatpush1.bf16.msra.mxu0 0
        %3289 = vmatprep.subr.bf16.mxu0 0
        %3290 = vmatpush1.bf16.msra.mxu0 0
        %3291 = vmatprep.subr.bf16.mxu0 0
        %3292 = vmatpush1.bf16.msra.mxu0 0
        %3293 = vmatprep.subr.bf16.mxu0 0
        %3294 = vmatpush1.bf16.msra.mxu0 0
        %3295 = vmatprep.subr.bf16.mxu0 0
        %3296 = vmatpush1.bf16.msra.mxu0 0
        %3297 = vmatprep.subr.bf16.mxu0 0
        %3298 = vmatpush1.bf16.msra.mxu0 0
        %3299 = vmatprep.subr.bf16.mxu0 0
        %3300 = vmatpush1.bf16.msra.mxu0 0
        %3301 = vmatprep.subr.bf16.mxu0 0
        %3302 = vmatpush1.bf16.msra.mxu0 0
        %3303 = vmatprep.subr.bf16.mxu0 0
        %3304 = vmatpush1.bf16.msra.mxu0 0
        %3305 = vmatprep.subr.bf16.mxu0 0
        %3306 = vmatpush1.bf16.msra.mxu0 0
        %3307 = vmatprep.subr.bf16.mxu0 0
        %3308 = vmatpush1.bf16.msra.mxu0 0
        %3309 = vmatprep.subr.bf16.mxu0 0
        %3310 = vmatpush1.bf16.msra.mxu0 0
        %3311 = vmatprep.mubr.bf16.mxu0 0
        %3312 = vmatmul.mubr.bf16.gmra.mrb[0].mxu0 %v3268
        %v3313 = vpop.f32.mrb[0].mxu0
        %v3314 = vadd.f32 %v3210, %v3313
        %v3315 = vpop.f32.mrb[0].mxu0
        %v3316 = vadd.f32 %v3210, %v3315
        %v3317 = vpop.f32.mrb[0].mxu0
        %v3318 = vadd.f32 %v3215, %v3317
        %v3319 = vpop.f32.mrb[0].mxu0
        %v3320 = vadd.f32 %v3215, %v3319
        %3321 = vmatprep.mubr.bf16.mxu0 0
        %3322 = vmatmul.mubr.bf16.gmra.mrb[0].mxu0 %v3271
        %v3323 = vpop.f32.mrb[0].mxu0
        %v3324 = vadd.f32 %v3220, %v3323
        %v3325 = vpop.f32.mrb[0].mxu0
        %v3326 = vadd.f32 %v3220, %v3325
        %v3327 = vpop.f32.mrb[0].mxu0
        %v3328 = vadd.f32 %v3225, %v3327
        %v3329 = vpop.f32.mrb[0].mxu0
        %v3330 = vadd.f32 %v3225, %v3329
        %3331 = vmatprep.mubr.bf16.mxu0 0
        %3332 = vmatmul.mubr.bf16.gmra.mrb[0].mxu0 %v3274
        %v3333 = vpop.f32.mrb[0].mxu0
        %v3334 = vadd.f32 %v3230, %v3333
        %v3335 = vpop.f32.mrb[0].mxu0
        %v3336 = vadd.f32 %v3230, %v3335
        %v3337 = vpop.f32.mrb[0].mxu0
        %v3338 = vadd.f32 %v3235, %v3337
        %v3339 = vpop.f32.mrb[0].mxu0
        %v3340 = vadd.f32 %v3235, %v3339
        %3341 = vmatprep.mubr.bf16.mxu0 0
        %3342 = vmatmul.mubr.bf16.gmra.mrb[0].mxu0 %v3277
        %v3343 = vpop.f32.mrb[0].mxu0
        %v3344 = vadd.f32 %v3240, %v3343
        %v3345 = vpop.f32.mrb[0].mxu0
        %v3346 = vadd.f32 %v3240, %v3345
        %v3347 = vpop.f32.mrb[0].mxu0
        %v3348 = vadd.f32 %v3245, %v3347
        %v3349 = vpop.f32.mrb[0].mxu0
        %v3350 = vadd.f32 %v3245, %v3349
        %3351 = vdwg.mxu0
        %v3352 = vadd.f32 %v524, %v3314
        %v3353 = vadd.f32 %v525, %v3316
        %v3354 = vadd.f32 %v526, %v3318
        %v3355 = vadd.f32 %v527, %v3320
        %v3356 = vadd.f32 %v528, %v3324
        %v3357 = vadd.f32 %v529, %v3326
        %v3358 = vadd.f32 %v530, %v3328
        %v3359 = vadd.f32 %v531, %v3330
        %v3360 = vadd.f32 %v532, %v3334
        %v3361 = vadd.f32 %v533, %v3336
        %v3362 = vadd.f32 %v534, %v3338
        %v3363 = vadd.f32 %v535, %v3340
        %v3364 = vadd.f32 %v536, %v3344
        %v3365 = vadd.f32 %v537, %v3346
        %v3366 = vadd.f32 %v538, %v3348
        %v3367 = vadd.f32 %v539, %v3350
        %3368 = vst [vmem:[%s432] sm:$0xff] %v3352
        %3369 = vst [vmem:[%s432 + $0x8] sm:$0xff] %v3353
        %3370 = vst [vmem:[%s432 + $0x10] sm:$0xff] %v3354
        %3371 = vst [vmem:[%s432 + $0x18] sm:$0xff] %v3355
        %3372 = vst [vmem:[%s432 + $0x20] sm:$0xff] %v3356
        %3373 = vst [vmem:[%s432 + $0x28] sm:$0xff] %v3357
        %3374 = vst [vmem:[%s432 + $0x30] sm:$0xff] %v3358
        %3375 = vst [vmem:[%s432 + $0x38] sm:$0xff] %v3359
        %3376 = vst [vmem:[%s432 + $0x40] sm:$0xff] %v3360
        %3377 = vst [vmem:[%s432 + $0x48] sm:$0xff] %v3361
        %3378 = vst [vmem:[%s432 + $0x50] sm:$0xff] %v3362
        %3379 = vst [vmem:[%s432 + $0x58] sm:$0xff] %v3363
        %3380 = vst [vmem:[%s432 + $0x60] sm:$0xff] %v3364
        %3381 = vst [vmem:[%s432 + $0x68] sm:$0xff] %v3365
        %3382 = vst [vmem:[%s432 + $0x70] sm:$0xff] %v3366
        %3383 = vst [vmem:[%s432 + $0x78] sm:$0xff] %v3367
        %s3384 = scalar_lea.vmem %s392, 128 [#allocation2]
        %v3385 = vld [vmem:[%s3384] sm:$0xff]
        %v3386 = vld [vmem:[%s3384 + $0x8] sm:$0xff]
        %v3387 = vld [vmem:[%s3384 + $0x10] sm:$0xff]
        %v3388 = vld [vmem:[%s3384 + $0x18] sm:$0xff]
        %v3389 = vld [vmem:[%s3384 + $0x20] sm:$0xff]
        %v3390 = vld [vmem:[%s3384 + $0x28] sm:$0xff]
        %v3391 = vld [vmem:[%s3384 + $0x30] sm:$0xff]
        %v3392 = vld [vmem:[%s3384 + $0x38] sm:$0xff]
        %v3393 = vld [vmem:[%s3384 + $0x40] sm:$0xff]
        %v3394 = vld [vmem:[%s3384 + $0x48] sm:$0xff]
        %v3395 = vld [vmem:[%s3384 + $0x50] sm:$0xff]
        %v3396 = vld [vmem:[%s3384 + $0x58] sm:$0xff]
        %v3397 = vld [vmem:[%s3384 + $0x60] sm:$0xff]
        %v3398 = vld [vmem:[%s3384 + $0x68] sm:$0xff]
        %v3399 = vld [vmem:[%s3384 + $0x70] sm:$0xff]
        %v3400 = vld [vmem:[%s3384 + $0x78] sm:$0xff]
        %3401 = vmatprep.subr.mxu0 %v3386
        %3402 = vmatpush1.msra.mxu0 %v3385
        %3403 = vmatprep.subr.mxu0 %v3388
        %3404 = vmatpush1.msra.mxu0 %v3387
        %3405 = vmatprep.subr.mxu0 %v3390
        %3406 = vmatpush1.msra.mxu0 %v3389
        %3407 = vmatprep.subr.mxu0 %v3392
        %3408 = vmatpush1.msra.mxu0 %v3391
        %3409 = vmatprep.subr.mxu0 %v3394
        %3410 = vmatpush1.msra.mxu0 %v3393
        %3411 = vmatprep.subr.mxu0 %v3396
        %3412 = vmatpush1.msra.mxu0 %v3395
        %3413 = vmatprep.subr.mxu0 %v3398
        %3414 = vmatpush1.msra.mxu0 %v3397
        %3415 = vmatprep.subr.mxu0 %v3400
        %3416 = vmatpush1.msra.mxu0 %v3399
        %3417 = vmatprep.subr.mxu0 0.0
        %3418 = vmatpush1.msra.mxu0 0.0
        %3419 = vmatprep.subr.mxu0 0.0
        %3420 = vmatpush1.msra.mxu0 0.0
        %3421 = vmatprep.subr.mxu0 0.0
        %3422 = vmatpush1.msra.mxu0 0.0
        %3423 = vmatprep.subr.mxu0 0.0
        %3424 = vmatpush1.msra.mxu0 0.0
        %3425 = vmatprep.subr.mxu0 0.0
        %3426 = vmatpush1.msra.mxu0 0.0
        %3427 = vmatprep.subr.mxu0 0.0
        %3428 = vmatpush1.msra.mxu0 0.0
        %3429 = vmatprep.subr.mxu0 0.0
        %3430 = vmatpush1.msra.mxu0 0.0
        %3431 = vmatprep.subr.mxu0 0.0
        %3432 = vmatpush1.msra.mxu0 0.0
        %3433 = vmatprep.subr.mxu0 0.0
        %3434 = vmatpush1.msra.mxu0 0.0
        %3435 = vmatprep.subr.mxu0 0.0
        %3436 = vmatpush1.msra.mxu0 0.0
        %3437 = vmatprep.subr.mxu0 0.0
        %3438 = vmatpush1.msra.mxu0 0.0
        %3439 = vmatprep.subr.mxu0 0.0
        %3440 = vmatpush1.msra.mxu0 0.0
        %3441 = vmatprep.subr.mxu0 0.0
        %3442 = vmatpush1.msra.mxu0 0.0
        %3443 = vmatprep.subr.mxu0 0.0
        %3444 = vmatpush1.msra.mxu0 0.0
        %3445 = vmatprep.subr.mxu0 0.0
        %3446 = vmatpush1.msra.mxu0 0.0
        %3447 = vmatprep.subr.mxu0 0.0
        %3448 = vmatpush1.msra.mxu0 0.0
        %3449 = vmatprep.subr.mxu0 0.0
        %3450 = vmatpush1.msra.mxu0 0.0
        %3451 = vmatprep.subr.mxu0 0.0
        %3452 = vmatpush1.msra.mxu0 0.0
        %3453 = vmatprep.subr.mxu0 0.0
        %3454 = vmatpush1.msra.mxu0 0.0
        %3455 = vmatprep.subr.mxu0 0.0
        %3456 = vmatpush1.msra.mxu0 0.0
        %3457 = vmatprep.subr.mxu0 0.0
        %3458 = vmatpush1.msra.mxu0 0.0
        %3459 = vmatprep.subr.mxu0 0.0
        %3460 = vmatpush1.msra.mxu0 0.0
        %3461 = vmatprep.subr.mxu0 0.0
        %3462 = vmatpush1.msra.mxu0 0.0
        %3463 = vmatprep.subr.mxu0 0.0
        %3464 = vmatpush1.msra.mxu0 0.0
        %3465 = vmatprep.mubr.f32.mxu0 0.0
        %3466 = vmatmul.mubr.f32.gmra.mrb[0].mxu0 %v542
        %v3467 = vpop.f32.mrb[0].mxu0
        %v3468 = vadd.f32 0.0, %v3467
        %v3469 = vpop.f32.mrb[0].mxu0
        %v3470 = vadd.f32 0.0, %v3469
        %3471 = vmatprep.mubr.f32.mxu0 0.0
        %3472 = vmatmul.mubr.f32.gmra.mrb[0].mxu0 %v545
        %v3473 = vpop.f32.mrb[0].mxu0
        %v3474 = vadd.f32 0.0, %v3473
        %v3475 = vpop.f32.mrb[0].mxu0
        %v3476 = vadd.f32 0.0, %v3475
        %3477 = vmatprep.mubr.f32.mxu0 0.0
        %3478 = vmatmul.mubr.f32.gmra.mrb[0].mxu0 %v548
        %v3479 = vpop.f32.mrb[0].mxu0
        %v3480 = vadd.f32 0.0, %v3479
        %v3481 = vpop.f32.mrb[0].mxu0
        %v3482 = vadd.f32 0.0, %v3481
        %3483 = vmatprep.mubr.f32.mxu0 0.0
        %3484 = vmatmul.mubr.f32.gmra.mrb[0].mxu0 %v551
        %v3485 = vpop.f32.mrb[0].mxu0
        %v3486 = vadd.f32 0.0, %v3485
        %v3487 = vpop.f32.mrb[0].mxu0
        %v3488 = vadd.f32 0.0, %v3487
        %3489 = vmatprep.mubr.f32.mxu0 0.0
        %3490 = vmatmul.mubr.f32.gmra.mrb[0].mxu0 %v554
        %v3491 = vpop.f32.mrb[0].mxu0
        %v3492 = vadd.f32 0.0, %v3491
        %v3493 = vpop.f32.mrb[0].mxu0
        %v3494 = vadd.f32 0.0, %v3493
        %3495 = vmatprep.mubr.f32.mxu0 0.0
        %3496 = vmatmul.mubr.f32.gmra.mrb[0].mxu0 %v557
        %v3497 = vpop.f32.mrb[0].mxu0
        %v3498 = vadd.f32 0.0, %v3497
        %v3499 = vpop.f32.mrb[0].mxu0
        %v3500 = vadd.f32 0.0, %v3499
        %3501 = vmatprep.mubr.f32.mxu0 0.0
        %3502 = vmatmul.mubr.f32.gmra.mrb[0].mxu0 %v560
        %v3503 = vpop.f32.mrb[0].mxu0
        %v3504 = vadd.f32 0.0, %v3503
        %v3505 = vpop.f32.mrb[0].mxu0
        %v3506 = vadd.f32 0.0, %v3505
        %3507 = vmatprep.mubr.f32.mxu0 0.0
        %3508 = vmatmul.mubr.f32.gmra.mrb[0].mxu0 %v563
        %v3509 = vpop.f32.mrb[0].mxu0
        %v3510 = vadd.f32 0.0, %v3509
        %v3511 = vpop.f32.mrb[0].mxu0
        %v3512 = vadd.f32 0.0, %v3511
        %3513 = vdwg.mxu0
        %v3514 = vadd.f32 %v3468, %v3470
        %3515 = vadd.xlane.f32.xlu0 %v3514
        %v3516 = vpop.xlane.xlu0 %3515
        %v3517 = vadd.f32 %v3474, %v3476
        %3518 = vadd.xlane.f32.xlu0 %v3517
        %v3519 = vpop.xlane.xlu0 %3518
        %v3520 = vadd.f32 %v3480, %v3482
        %3521 = vadd.xlane.f32.xlu0 %v3520
        %v3522 = vpop.xlane.xlu0 %3521
        %v3523 = vadd.f32 %v3486, %v3488
        %3524 = vadd.xlane.f32.xlu0 %v3523
        %v3525 = vpop.xlane.xlu0 %3524
        %v3526 = vadd.f32 %v3492, %v3494
        %3527 = vadd.xlane.f32.xlu0 %v3526
        %v3528 = vpop.xlane.xlu0 %3527
        %v3529 = vadd.f32 %v3498, %v3500
        %3530 = vadd.xlane.f32.xlu0 %v3529
        %v3531 = vpop.xlane.xlu0 %3530
        %v3532 = vadd.f32 %v3504, %v3506
        %3533 = vadd.xlane.f32.xlu0 %v3532
        %v3534 = vpop.xlane.xlu0 %3533
        %v3535 = vadd.f32 %v3510, %v3512
        %3536 = vadd.xlane.f32.xlu0 %v3535
        %v3537 = vpop.xlane.xlu0 %3536
        %v3538 = vmul.f32 %v3516, 0.001953125
        %v3539 = vmul.f32 %v3519, 0.001953125
        %v3540 = vmul.f32 %v3522, 0.001953125
        %v3541 = vmul.f32 %v3525, 0.001953125
        %v3542 = vmul.f32 %v3528, 0.001953125
        %v3543 = vmul.f32 %v3531, 0.001953125
        %v3544 = vmul.f32 %v3534, 0.001953125
        %v3545 = vmul.f32 %v3537, 0.001953125
        %v3546 = vsub.f32 %v3385, %v3538
        %v3547 = vsub.f32 %v3386, %v3538
        %v3548 = vsub.f32 %v3387, %v3539
        %v3549 = vsub.f32 %v3388, %v3539
        %v3550 = vsub.f32 %v3389, %v3540
        %v3551 = vsub.f32 %v3390, %v3540
        %v3552 = vsub.f32 %v3391, %v3541
        %v3553 = vsub.f32 %v3392, %v3541
        %v3554 = vsub.f32 %v3393, %v3542
        %v3555 = vsub.f32 %v3394, %v3542
        %v3556 = vsub.f32 %v3395, %v3543
        %v3557 = vsub.f32 %v3396, %v3543
        %v3558 = vsub.f32 %v3397, %v3544
        %v3559 = vsub.f32 %v3398, %v3544
        %v3560 = vsub.f32 %v3399, %v3545
        %v3561 = vsub.f32 %v3400, %v3545
        %v3562 = vmul.f32 %v3546, %v3546
        %v3563 = vmul.f32 %v3547, %v3547
        %v3564 = vmul.f32 %v3548, %v3548
        %v3565 = vmul.f32 %v3549, %v3549
        %v3566 = vmul.f32 %v3550, %v3550
        %v3567 = vmul.f32 %v3551, %v3551
        %v3568 = vmul.f32 %v3552, %v3552
        %v3569 = vmul.f32 %v3553, %v3553
        %v3570 = vmul.f32 %v3554, %v3554
        %v3571 = vmul.f32 %v3555, %v3555
        %v3572 = vmul.f32 %v3556, %v3556
        %v3573 = vmul.f32 %v3557, %v3557
        %v3574 = vmul.f32 %v3558, %v3558
        %v3575 = vmul.f32 %v3559, %v3559
        %v3576 = vmul.f32 %v3560, %v3560
        %v3577 = vmul.f32 %v3561, %v3561
        %3578 = vmatprep.subr.mxu0 %v3563
        %3579 = vmatpush1.msra.mxu0 %v3562
        %3580 = vmatprep.subr.mxu0 %v3565
        %3581 = vmatpush1.msra.mxu0 %v3564
        %3582 = vmatprep.subr.mxu0 %v3567
        %3583 = vmatpush1.msra.mxu0 %v3566
        %3584 = vmatprep.subr.mxu0 %v3569
        %3585 = vmatpush1.msra.mxu0 %v3568
        %3586 = vmatprep.subr.mxu0 %v3571
        %3587 = vmatpush1.msra.mxu0 %v3570
        %3588 = vmatprep.subr.mxu0 %v3573
        %3589 = vmatpush1.msra.mxu0 %v3572
        %3590 = vmatprep.subr.mxu0 %v3575
        %3591 = vmatpush1.msra.mxu0 %v3574
        %3592 = vmatprep.subr.mxu0 %v3577
        %3593 = vmatpush1.msra.mxu0 %v3576
        %3594 = vmatprep.subr.mxu0 0.0
        %3595 = vmatpush1.msra.mxu0 0.0
        %3596 = vmatprep.subr.mxu0 0.0
        %3597 = vmatpush1.msra.mxu0 0.0
        %3598 = vmatprep.subr.mxu0 0.0
        %3599 = vmatpush1.msra.mxu0 0.0
        %3600 = vmatprep.subr.mxu0 0.0
        %3601 = vmatpush1.msra.mxu0 0.0
        %3602 = vmatprep.subr.mxu0 0.0
        %3603 = vmatpush1.msra.mxu0 0.0
        %3604 = vmatprep.subr.mxu0 0.0
        %3605 = vmatpush1.msra.mxu0 0.0
        %3606 = vmatprep.subr.mxu0 0.0
        %3607 = vmatpush1.msra.mxu0 0.0
        %3608 = vmatprep.subr.mxu0 0.0
        %3609 = vmatpush1.msra.mxu0 0.0
        %3610 = vmatprep.subr.mxu0 0.0
        %3611 = vmatpush1.msra.mxu0 0.0
        %3612 = vmatprep.subr.mxu0 0.0
        %3613 = vmatpush1.msra.mxu0 0.0
        %3614 = vmatprep.subr.mxu0 0.0
        %3615 = vmatpush1.msra.mxu0 0.0
        %3616 = vmatprep.subr.mxu0 0.0
        %3617 = vmatpush1.msra.mxu0 0.0
        %3618 = vmatprep.subr.mxu0 0.0
        %3619 = vmatpush1.msra.mxu0 0.0
        %3620 = vmatprep.subr.mxu0 0.0
        %3621 = vmatpush1.msra.mxu0 0.0
        %3622 = vmatprep.subr.mxu0 0.0
        %3623 = vmatpush1.msra.mxu0 0.0
        %3624 = vmatprep.subr.mxu0 0.0
        %3625 = vmatpush1.msra.mxu0 0.0
        %3626 = vmatprep.subr.mxu0 0.0
        %3627 = vmatpush1.msra.mxu0 0.0
        %3628 = vmatprep.subr.mxu0 0.0
        %3629 = vmatpush1.msra.mxu0 0.0
        %3630 = vmatprep.subr.mxu0 0.0
        %3631 = vmatpush1.msra.mxu0 0.0
        %3632 = vmatprep.subr.mxu0 0.0
        %3633 = vmatpush1.msra.mxu0 0.0
        %3634 = vmatprep.subr.mxu0 0.0
        %3635 = vmatpush1.msra.mxu0 0.0
        %3636 = vmatprep.subr.mxu0 0.0
        %3637 = vmatpush1.msra.mxu0 0.0
        %3638 = vmatprep.subr.mxu0 0.0
        %3639 = vmatpush1.msra.mxu0 0.0
        %3640 = vmatprep.subr.mxu0 0.0
        %3641 = vmatpush1.msra.mxu0 0.0
        %3642 = vmatprep.mubr.f32.mxu0 0.0
        %3643 = vmatmul.mubr.f32.gmra.mrb[0].mxu0 %v542
        %v3644 = vpop.f32.mrb[0].mxu0
        %v3645 = vadd.f32 0.0, %v3644
        %v3646 = vpop.f32.mrb[0].mxu0
        %v3647 = vadd.f32 0.0, %v3646
        %3648 = vmatprep.mubr.f32.mxu0 0.0
        %3649 = vmatmul.mubr.f32.gmra.mrb[0].mxu0 %v545
        %v3650 = vpop.f32.mrb[0].mxu0
        %v3651 = vadd.f32 0.0, %v3650
        %v3652 = vpop.f32.mrb[0].mxu0
        %v3653 = vadd.f32 0.0, %v3652
        %3654 = vmatprep.mubr.f32.mxu0 0.0
        %3655 = vmatmul.mubr.f32.gmra.mrb[0].mxu0 %v548
        %v3656 = vpop.f32.mrb[0].mxu0
        %v3657 = vadd.f32 0.0, %v3656
        %v3658 = vpop.f32.mrb[0].mxu0
        %v3659 = vadd.f32 0.0, %v3658
        %3660 = vmatprep.mubr.f32.mxu0 0.0
        %3661 = vmatmul.mubr.f32.gmra.mrb[0].mxu0 %v551
        %v3662 = vpop.f32.mrb[0].mxu0
        %v3663 = vadd.f32 0.0, %v3662
        %v3664 = vpop.f32.mrb[0].mxu0
        %v3665 = vadd.f32 0.0, %v3664
        %3666 = vmatprep.mubr.f32.mxu0 0.0
        %3667 = vmatmul.mubr.f32.gmra.mrb[0].mxu0 %v554
        %v3668 = vpop.f32.mrb[0].mxu0
        %v3669 = vadd.f32 0.0, %v3668
        %v3670 = vpop.f32.mrb[0].mxu0
        %v3671 = vadd.f32 0.0, %v3670
        %3672 = vmatprep.mubr.f32.mxu0 0.0
        %3673 = vmatmul.mubr.f32.gmra.mrb[0].mxu0 %v557
        %v3674 = vpop.f32.mrb[0].mxu0
        %v3675 = vadd.f32 0.0, %v3674
        %v3676 = vpop.f32.mrb[0].mxu0
        %v3677 = vadd.f32 0.0, %v3676
        %3678 = vmatprep.mubr.f32.mxu0 0.0
        %3679 = vmatmul.mubr.f32.gmra.mrb[0].mxu0 %v560
        %v3680 = vpop.f32.mrb[0].mxu0
        %v3681 = vadd.f32 0.0, %v3680
        %v3682 = vpop.f32.mrb[0].mxu0
        %v3683 = vadd.f32 0.0, %v3682
        %3684 = vmatprep.mubr.f32.mxu0 0.0
        %3685 = vmatmul.mubr.f32.gmra.mrb[0].mxu0 %v563
        %v3686 = vpop.f32.mrb[0].mxu0
        %v3687 = vadd.f32 0.0, %v3686
        %v3688 = vpop.f32.mrb[0].mxu0
        %v3689 = vadd.f32 0.0, %v3688
        %3690 = vdwg.mxu0
        %v3691 = vadd.f32 %v3645, %v3647
        %3692 = vadd.xlane.f32.xlu0 %v3691
        %v3693 = vpop.xlane.xlu0 %3692
        %v3694 = vadd.f32 %v3651, %v3653
        %3695 = vadd.xlane.f32.xlu0 %v3694
        %v3696 = vpop.xlane.xlu0 %3695
        %v3697 = vadd.f32 %v3657, %v3659
        %3698 = vadd.xlane.f32.xlu0 %v3697
        %v3699 = vpop.xlane.xlu0 %3698
        %v3700 = vadd.f32 %v3663, %v3665
        %3701 = vadd.xlane.f32.xlu0 %v3700
        %v3702 = vpop.xlane.xlu0 %3701
        %v3703 = vadd.f32 %v3669, %v3671
        %3704 = vadd.xlane.f32.xlu0 %v3703
        %v3705 = vpop.xlane.xlu0 %3704
        %v3706 = vadd.f32 %v3675, %v3677
        %3707 = vadd.xlane.f32.xlu0 %v3706
        %v3708 = vpop.xlane.xlu0 %3707
        %v3709 = vadd.f32 %v3681, %v3683
        %3710 = vadd.xlane.f32.xlu0 %v3709
        %v3711 = vpop.xlane.xlu0 %3710
        %v3712 = vadd.f32 %v3687, %v3689
        %3713 = vadd.xlane.f32.xlu0 %v3712
        %v3714 = vpop.xlane.xlu0 %3713
        %v3715 = vmul.f32 %v3693, 0.001953125
        %v3716 = vmul.f32 %v3696, 0.001953125
        %v3717 = vmul.f32 %v3699, 0.001953125
        %v3718 = vmul.f32 %v3702, 0.001953125
        %v3719 = vmul.f32 %v3705, 0.001953125
        %v3720 = vmul.f32 %v3708, 0.001953125
        %v3721 = vmul.f32 %v3711, 0.001953125
        %v3722 = vmul.f32 %v3714, 0.001953125
        %v3723 = vadd.f32 %v3715, 1e-06
        %v3724 = vadd.f32 %v3716, 1e-06
        %v3725 = vadd.f32 %v3717, 1e-06
        %v3726 = vadd.f32 %v3718, 1e-06
        %v3727 = vadd.f32 %v3719, 1e-06
        %v3728 = vadd.f32 %v3720, 1e-06
        %v3729 = vadd.f32 %v3721, 1e-06
        %v3730 = vadd.f32 %v3722, 1e-06
        %v3731 = vrsqrt.pop %v3723
        %v3732 = vrsqrt.pop %v3724
        %v3733 = vrsqrt.pop %v3725
        %v3734 = vrsqrt.pop %v3726
        %v3735 = vrsqrt.pop %v3727
        %v3736 = vrsqrt.pop %v3728
        %v3737 = vrsqrt.pop %v3729
        %v3738 = vrsqrt.pop %v3730
        %v3739 = vmul.f32 %v444, %v3731
        %v3740 = vmul.f32 %v445, %v3732
        %v3741 = vmul.f32 %v446, %v3733
        %v3742 = vmul.f32 %v447, %v3734
        %v3743 = vmul.f32 %v448, %v3735
        %v3744 = vmul.f32 %v449, %v3736
        %v3745 = vmul.f32 %v450, %v3737
        %v3746 = vmul.f32 %v451, %v3738
        %v3747 = vmul.f32 %v3538, %v3739
        %v3748 = vmul.f32 %v3539, %v3740
        %v3749 = vmul.f32 %v3540, %v3741
        %v3750 = vmul.f32 %v3541, %v3742
        %v3751 = vmul.f32 %v3542, %v3743
        %v3752 = vmul.f32 %v3543, %v3744
        %v3753 = vmul.f32 %v3544, %v3745
        %v3754 = vmul.f32 %v3545, %v3746
        %v3755 = vsub.f32 %v452, %v3747
        %v3756 = vsub.f32 %v453, %v3748
        %v3757 = vsub.f32 %v454, %v3749
        %v3758 = vsub.f32 %v455, %v3750
        %v3759 = vsub.f32 %v456, %v3751
        %v3760 = vsub.f32 %v457, %v3752
        %v3761 = vsub.f32 %v458, %v3753
        %v3762 = vsub.f32 %v459, %v3754
        %3764 = vset.pattern.permute.xlu0 0
        %3765 = vperm.xlu0 %3764, %v3739
        %v3766 = vpop.permute.xlu0 %3765
        %3769 = vset.pattern.permute.xlu0 0
        %3770 = vperm.xlu0 %3769, %v3740
        %v3771 = vpop.permute.xlu0 %3770
        %3774 = vset.pattern.permute.xlu0 0
        %3775 = vperm.xlu0 %3774, %v3741
        %v3776 = vpop.permute.xlu0 %3775
        %3779 = vset.pattern.permute.xlu0 0
        %3780 = vperm.xlu0 %3779, %v3742
        %v3781 = vpop.permute.xlu0 %3780
        %3784 = vset.pattern.permute.xlu0 0
        %3785 = vperm.xlu0 %3784, %v3743
        %v3786 = vpop.permute.xlu0 %3785
        %3789 = vset.pattern.permute.xlu0 0
        %3790 = vperm.xlu0 %3789, %v3744
        %v3791 = vpop.permute.xlu0 %3790
        %3794 = vset.pattern.permute.xlu0 0
        %3795 = vperm.xlu0 %3794, %v3745
        %v3796 = vpop.permute.xlu0 %3795
        %3799 = vset.pattern.permute.xlu0 0
        %3800 = vperm.xlu0 %3799, %v3746
        %v3801 = vpop.permute.xlu0 %3800
        %v3803 = vmul.f32 %v3385, %v3766
        %v3804 = vmul.f32 %v3386, %v3766
        %v3805 = vmul.f32 %v3387, %v3771
        %v3806 = vmul.f32 %v3388, %v3771
        %v3807 = vmul.f32 %v3389, %v3776
        %v3808 = vmul.f32 %v3390, %v3776
        %v3809 = vmul.f32 %v3391, %v3781
        %v3810 = vmul.f32 %v3392, %v3781
        %v3811 = vmul.f32 %v3393, %v3786
        %v3812 = vmul.f32 %v3394, %v3786
        %v3813 = vmul.f32 %v3395, %v3791
        %v3814 = vmul.f32 %v3396, %v3791
        %v3815 = vmul.f32 %v3397, %v3796
        %v3816 = vmul.f32 %v3398, %v3796
        %v3817 = vmul.f32 %v3399, %v3801
        %v3818 = vmul.f32 %v3400, %v3801
        %3820 = vset.pattern.permute.xlu0 0
        %3821 = vperm.xlu0 %3820, %v3755
        %v3822 = vpop.permute.xlu0 %3821
        %3825 = vset.pattern.permute.xlu0 0
        %3826 = vperm.xlu0 %3825, %v3756
        %v3827 = vpop.permute.xlu0 %3826
        %3830 = vset.pattern.permute.xlu0 0
        %3831 = vperm.xlu0 %3830, %v3757
        %v3832 = vpop.permute.xlu0 %3831
        %3835 = vset.pattern.permute.xlu0 0
        %3836 = vperm.xlu0 %3835, %v3758
        %v3837 = vpop.permute.xlu0 %3836
        %3840 = vset.pattern.permute.xlu0 0
        %3841 = vperm.xlu0 %3840, %v3759
        %v3842 = vpop.permute.xlu0 %3841
        %3845 = vset.pattern.permute.xlu0 0
        %3846 = vperm.xlu0 %3845, %v3760
        %v3847 = vpop.permute.xlu0 %3846
        %3850 = vset.pattern.permute.xlu0 0
        %3851 = vperm.xlu0 %3850, %v3761
        %v3852 = vpop.permute.xlu0 %3851
        %3855 = vset.pattern.permute.xlu0 0
        %3856 = vperm.xlu0 %3855, %v3762
        %v3857 = vpop.permute.xlu0 %3856
        %v3859 = vadd.f32 %v3803, %v3822
        %v3860 = vadd.f32 %v3804, %v3822
        %v3861 = vadd.f32 %v3805, %v3827
        %v3862 = vadd.f32 %v3806, %v3827
        %v3863 = vadd.f32 %v3807, %v3832
        %v3864 = vadd.f32 %v3808, %v3832
        %v3865 = vadd.f32 %v3809, %v3837
        %v3866 = vadd.f32 %v3810, %v3837
        %v3867 = vadd.f32 %v3811, %v3842
        %v3868 = vadd.f32 %v3812, %v3842
        %v3869 = vadd.f32 %v3813, %v3847
        %v3870 = vadd.f32 %v3814, %v3847
        %v3871 = vadd.f32 %v3815, %v3852
        %v3872 = vadd.f32 %v3816, %v3852
        %v3873 = vadd.f32 %v3817, %v3857
        %v3874 = vadd.f32 %v3818, %v3857
        %v3875 = vpack.c.bf16 %v3861, %v3859
        %v3876 = vpack.c.bf16 %v3862, %v3860
        %v3877 = vpack.c.bf16 %v3865, %v3863
        %v3878 = vpack.c.bf16 %v3866, %v3864
        %v3879 = vpack.c.bf16 %v3869, %v3867
        %v3880 = vpack.c.bf16 %v3870, %v3868
        %v3881 = vpack.c.bf16 %v3873, %v3871
        %v3882 = vpack.c.bf16 %v3874, %v3872
        %3883 = vmatprep.subr.bf16.mxu0 %v3876
        %3884 = vmatpush1.bf16.msra.mxu0 %v3875
        %3885 = vmatprep.subr.bf16.mxu0 %v3878
        %3886 = vmatpush1.bf16.msra.mxu0 %v3877
        %3887 = vmatprep.subr.bf16.mxu0 %v3880
        %3888 = vmatpush1.bf16.msra.mxu0 %v3879
        %3889 = vmatprep.subr.bf16.mxu0 %v3882
        %3890 = vmatpush1.bf16.msra.mxu0 %v3881
        %3891 = vmatprep.subr.bf16.mxu0 0
        %3892 = vmatpush1.bf16.msra.mxu0 0
        %3893 = vmatprep.subr.bf16.mxu0 0
        %3894 = vmatpush1.bf16.msra.mxu0 0
        %3895 = vmatprep.subr.bf16.mxu0 0
        %3896 = vmatpush1.bf16.msra.mxu0 0
        %3897 = vmatprep.subr.bf16.mxu0 0
        %3898 = vmatpush1.bf16.msra.mxu0 0
        %3899 = vmatprep.subr.bf16.mxu0 0
        %3900 = vmatpush1.bf16.msra.mxu0 0
        %3901 = vmatprep.subr.bf16.mxu0 0
        %3902 = vmatpush1.bf16.msra.mxu0 0
        %3903 = vmatprep.subr.bf16.mxu0 0
        %3904 = vmatpush1.bf16.msra.mxu0 0
        %3905 = vmatprep.subr.bf16.mxu0 0
        %3906 = vmatpush1.bf16.msra.mxu0 0
        %3907 = vmatprep.subr.bf16.mxu0 0
        %3908 = vmatpush1.bf16.msra.mxu0 0
        %3909 = vmatprep.subr.bf16.mxu0 0
        %3910 = vmatpush1.bf16.msra.mxu0 0
        %3911 = vmatprep.subr.bf16.mxu0 0
        %3912 = vmatpush1.bf16.msra.mxu0 0
        %3913 = vmatprep.subr.bf16.mxu0 0
        %3914 = vmatpush1.bf16.msra.mxu0 0
        %3915 = vmatprep.mubr.bf16.mxu0 0
        %3916 = vmatmul.mubr.bf16.gmra.mrb[0].mxu0 %v1108
        %v3917 = vpop.f32.mrb[0].mxu0
        %v3918 = vadd.f32 %v1050, %v3917
        %v3919 = vpop.f32.mrb[0].mxu0
        %v3920 = vadd.f32 %v1050, %v3919
        %v3921 = vpop.f32.mrb[0].mxu0
        %v3922 = vadd.f32 %v1055, %v3921
        %v3923 = vpop.f32.mrb[0].mxu0
        %v3924 = vadd.f32 %v1055, %v3923
        %3925 = vmatprep.mubr.bf16.mxu0 0
        %3926 = vmatmul.mubr.bf16.gmra.mrb[0].mxu0 %v1111
        %v3927 = vpop.f32.mrb[0].mxu0
        %v3928 = vadd.f32 %v1060, %v3927
        %v3929 = vpop.f32.mrb[0].mxu0
        %v3930 = vadd.f32 %v1060, %v3929
        %v3931 = vpop.f32.mrb[0].mxu0
        %v3932 = vadd.f32 %v1065, %v3931
        %v3933 = vpop.f32.mrb[0].mxu0
        %v3934 = vadd.f32 %v1065, %v3933
        %3935 = vmatprep.mubr.bf16.mxu0 0
        %3936 = vmatmul.mubr.bf16.gmra.mrb[0].mxu0 %v1114
        %v3937 = vpop.f32.mrb[0].mxu0
        %v3938 = vadd.f32 %v1070, %v3937
        %v3939 = vpop.f32.mrb[0].mxu0
        %v3940 = vadd.f32 %v1070, %v3939
        %v3941 = vpop.f32.mrb[0].mxu0
        %v3942 = vadd.f32 %v1075, %v3941
        %v3943 = vpop.f32.mrb[0].mxu0
        %v3944 = vadd.f32 %v1075, %v3943
        %3945 = vmatprep.mubr.bf16.mxu0 0
        %3946 = vmatmul.mubr.bf16.gmra.mrb[0].mxu0 %v1117
        %v3947 = vpop.f32.mrb[0].mxu0
        %v3948 = vadd.f32 %v1080, %v3947
        %v3949 = vpop.f32.mrb[0].mxu0
        %v3950 = vadd.f32 %v1080, %v3949
        %v3951 = vpop.f32.mrb[0].mxu0
        %v3952 = vadd.f32 %v1085, %v3951
        %v3953 = vpop.f32.mrb[0].mxu0
        %v3954 = vadd.f32 %v1085, %v3953
        %3955 = vdwg.mxu0
        %v3956 = vmul.f32 %v3918, 0.17677669
        %v3957 = vmul.f32 %v3920, 0.17677669
        %v3958 = vmul.f32 %v3922, 0.17677669
        %v3959 = vmul.f32 %v3924, 0.17677669
        %v3960 = vmul.f32 %v3928, 0.17677669
        %v3961 = vmul.f32 %v3930, 0.17677669
        %v3962 = vmul.f32 %v3932, 0.17677669
        %v3963 = vmul.f32 %v3934, 0.17677669
        %v3964 = vmul.f32 %v3938, 0.17677669
        %v3965 = vmul.f32 %v3940, 0.17677669
        %v3966 = vmul.f32 %v3942, 0.17677669
        %v3967 = vmul.f32 %v3944, 0.17677669
        %v3968 = vmul.f32 %v3948, 0.17677669
        %v3969 = vmul.f32 %v3950, 0.17677669
        %v3970 = vmul.f32 %v3952, 0.17677669
        %v3971 = vmul.f32 %v3954, 0.17677669
        %v3972 = vpack.c.bf16 %v3958, %v3956
        %v3973 = vpack.c.bf16 %v3959, %v3957
        %v3974 = vpack.c.bf16 %v3962, %v3960
        %v3975 = vpack.c.bf16 %v3963, %v3961
        %v3976 = vpack.c.bf16 %v3966, %v3964
        %v3977 = vpack.c.bf16 %v3967, %v3965
        %v3978 = vpack.c.bf16 %v3970, %v3968
        %v3979 = vpack.c.bf16 %v3971, %v3969
        %3980 = vmatprep.subr.bf16.mxu0 %v3876
        %3981 = vmatpush1.bf16.msra.mxu0 %v3875
        %3982 = vmatprep.subr.bf16.mxu0 %v3878
        %3983 = vmatpush1.bf16.msra.mxu0 %v3877
        %3984 = vmatprep.subr.bf16.mxu0 %v3880
        %3985 = vmatpush1.bf16.msra.mxu0 %v3879
        %3986 = vmatprep.subr.bf16.mxu0 %v3882
        %3987 = vmatpush1.bf16.msra.mxu0 %v3881
        %3988 = vmatprep.subr.bf16.mxu0 0
        %3989 = vmatpush1.bf16.msra.mxu0 0
        %3990 = vmatprep.subr.bf16.mxu0 0
        %3991 = vmatpush1.bf16.msra.mxu0 0
        %3992 = vmatprep.subr.bf16.mxu0 0
        %3993 = vmatpush1.bf16.msra.mxu0 0
        %3994 = vmatprep.subr.bf16.mxu0 0
        %3995 = vmatpush1.bf16.msra.mxu0 0
        %3996 = vmatprep.subr.bf16.mxu0 0
        %3997 = vmatpush1.bf16.msra.mxu0 0
        %3998 = vmatprep.subr.bf16.mxu0 0
        %3999 = vmatpush1.bf16.msra.mxu0 0
        %4000 = vmatprep.subr.bf16.mxu0 0
        %4001 = vmatpush1.bf16.msra.mxu0 0
        %4002 = vmatprep.subr.bf16.mxu0 0
        %4003 = vmatpush1.bf16.msra.mxu0 0
        %4004 = vmatprep.subr.bf16.mxu0 0
        %4005 = vmatpush1.bf16.msra.mxu0 0
        %4006 = vmatprep.subr.bf16.mxu0 0
        %4007 = vmatpush1.bf16.msra.mxu0 0
        %4008 = vmatprep.subr.bf16.mxu0 0
        %4009 = vmatpush1.bf16.msra.mxu0 0
        %4010 = vmatprep.subr.bf16.mxu0 0
        %4011 = vmatpush1.bf16.msra.mxu0 0
        %4012 = vmatprep.mubr.bf16.mxu0 0
        %4013 = vmatmul.mubr.bf16.gmra.mrb[0].mxu0 %v1277
        %v4014 = vpop.f32.mrb[0].mxu0
        %v4015 = vadd.f32 %v1219, %v4014
        %v4016 = vpop.f32.mrb[0].mxu0
        %v4017 = vadd.f32 %v1219, %v4016
        %v4018 = vpop.f32.mrb[0].mxu0
        %v4019 = vadd.f32 %v1224, %v4018
        %v4020 = vpop.f32.mrb[0].mxu0
        %v4021 = vadd.f32 %v1224, %v4020
        %4022 = vmatprep.mubr.bf16.mxu0 0
        %4023 = vmatmul.mubr.bf16.gmra.mrb[0].mxu0 %v1280
        %v4024 = vpop.f32.mrb[0].mxu0
        %v4025 = vadd.f32 %v1229, %v4024
        %v4026 = vpop.f32.mrb[0].mxu0
        %v4027 = vadd.f32 %v1229, %v4026
        %v4028 = vpop.f32.mrb[0].mxu0
        %v4029 = vadd.f32 %v1234, %v4028
        %v4030 = vpop.f32.mrb[0].mxu0
        %v4031 = vadd.f32 %v1234, %v4030
        %4032 = vmatprep.mubr.bf16.mxu0 0
        %4033 = vmatmul.mubr.bf16.gmra.mrb[0].mxu0 %v1283
        %v4034 = vpop.f32.mrb[0].mxu0
        %v4035 = vadd.f32 %v1239, %v4034
        %v4036 = vpop.f32.mrb[0].mxu0
        %v4037 = vadd.f32 %v1239, %v4036
        %v4038 = vpop.f32.mrb[0].mxu0
        %v4039 = vadd.f32 %v1244, %v4038
        %v4040 = vpop.f32.mrb[0].mxu0
        %v4041 = vadd.f32 %v1244, %v4040
        %4042 = vmatprep.mubr.bf16.mxu0 0
        %4043 = vmatmul.mubr.bf16.gmra.mrb[0].mxu0 %v1286
        %v4044 = vpop.f32.mrb[0].mxu0
        %v4045 = vadd.f32 %v1249, %v4044
        %v4046 = vpop.f32.mrb[0].mxu0
        %v4047 = vadd.f32 %v1249, %v4046
        %v4048 = vpop.f32.mrb[0].mxu0
        %v4049 = vadd.f32 %v1254, %v4048
        %v4050 = vpop.f32.mrb[0].mxu0
        %v4051 = vadd.f32 %v1254, %v4050
        %4052 = vdwg.mxu0
        %v4053 = vpack.c.bf16 %v4019, %v4015
        %v4054 = vpack.c.bf16 %v4021, %v4017
        %v4055 = vpack.c.bf16 %v4029, %v4025
        %v4056 = vpack.c.bf16 %v4031, %v4027
        %v4057 = vpack.c.bf16 %v4039, %v4035
        %v4058 = vpack.c.bf16 %v4041, %v4037
        %v4059 = vpack.c.bf16 %v4049, %v4045
        %v4060 = vpack.c.bf16 %v4051, %v4047
        %4061 = vmatprep.subr.bf16.mxu0 %v3876
        %4062 = vmatpush1.bf16.msra.mxu0 %v3875
        %4063 = vmatprep.subr.bf16.mxu0 %v3878
        %4064 = vmatpush1.bf16.msra.mxu0 %v3877
        %4065 = vmatprep.subr.bf16.mxu0 %v3880
        %4066 = vmatpush1.bf16.msra.mxu0 %v3879
        %4067 = vmatprep.subr.bf16.mxu0 %v3882
        %4068 = vmatpush1.bf16.msra.mxu0 %v3881
        %4069 = vmatprep.subr.bf16.mxu0 0
        %4070 = vmatpush1.bf16.msra.mxu0 0
        %4071 = vmatprep.subr.bf16.mxu0 0
        %4072 = vmatpush1.bf16.msra.mxu0 0
        %4073 = vmatprep.subr.bf16.mxu0 0
        %4074 = vmatpush1.bf16.msra.mxu0 0
        %4075 = vmatprep.subr.bf16.mxu0 0
        %4076 = vmatpush1.bf16.msra.mxu0 0
        %4077 = vmatprep.subr.bf16.mxu0 0
        %4078 = vmatpush1.bf16.msra.mxu0 0
        %4079 = vmatprep.subr.bf16.mxu0 0
        %4080 = vmatpush1.bf16.msra.mxu0 0
        %4081 = vmatprep.subr.bf16.mxu0 0
        %4082 = vmatpush1.bf16.msra.mxu0 0
        %4083 = vmatprep.subr.bf16.mxu0 0
        %4084 = vmatpush1.bf16.msra.mxu0 0
        %4085 = vmatprep.subr.bf16.mxu0 0
        %4086 = vmatpush1.bf16.msra.mxu0 0
        %4087 = vmatprep.subr.bf16.mxu0 0
        %4088 = vmatpush1.bf16.msra.mxu0 0
        %4089 = vmatprep.subr.bf16.mxu0 0
        %4090 = vmatpush1.bf16.msra.mxu0 0
        %4091 = vmatprep.subr.bf16.mxu0 0
        %4092 = vmatpush1.bf16.msra.mxu0 0
        %4093 = vmatprep.mubr.bf16.mxu0 0
        %4094 = vmatmul.mubr.bf16.gmra.mrb[0].mxu0 %v1430
        %v4095 = vpop.f32.mrb[0].mxu0
        %v4096 = vadd.f32 %v1372, %v4095
        %v4097 = vpop.f32.mrb[0].mxu0
        %v4098 = vadd.f32 %v1372, %v4097
        %v4099 = vpop.f32.mrb[0].mxu0
        %v4100 = vadd.f32 %v1377, %v4099
        %v4101 = vpop.f32.mrb[0].mxu0
        %v4102 = vadd.f32 %v1377, %v4101
        %4103 = vmatprep.mubr.bf16.mxu0 0
        %4104 = vmatmul.mubr.bf16.gmra.mrb[0].mxu0 %v1433
        %v4105 = vpop.f32.mrb[0].mxu0
        %v4106 = vadd.f32 %v1382, %v4105
        %v4107 = vpop.f32.mrb[0].mxu0
        %v4108 = vadd.f32 %v1382, %v4107
        %v4109 = vpop.f32.mrb[0].mxu0
        %v4110 = vadd.f32 %v1387, %v4109
        %v4111 = vpop.f32.mrb[0].mxu0
        %v4112 = vadd.f32 %v1387, %v4111
        %4113 = vmatprep.mubr.bf16.mxu0 0
        %4114 = vmatmul.mubr.bf16.gmra.mrb[0].mxu0 %v1436
        %v4115 = vpop.f32.mrb[0].mxu0
        %v4116 = vadd.f32 %v1392, %v4115
        %v4117 = vpop.f32.mrb[0].mxu0
        %v4118 = vadd.f32 %v1392, %v4117
        %v4119 = vpop.f32.mrb[0].mxu0
        %v4120 = vadd.f32 %v1397, %v4119
        %v4121 = vpop.f32.mrb[0].mxu0
        %v4122 = vadd.f32 %v1397, %v4121
        %4123 = vmatprep.mubr.bf16.mxu0 0
        %4124 = vmatmul.mubr.bf16.gmra.mrb[0].mxu0 %v1439
        %v4125 = vpop.f32.mrb[0].mxu0
        %v4126 = vadd.f32 %v1402, %v4125
        %v4127 = vpop.f32.mrb[0].mxu0
        %v4128 = vadd.f32 %v1402, %v4127
        %v4129 = vpop.f32.mrb[0].mxu0
        %v4130 = vadd.f32 %v1407, %v4129
        %v4131 = vpop.f32.mrb[0].mxu0
        %v4132 = vadd.f32 %v1407, %v4131
        %4133 = vdwg.mxu0
        %v4134 = vpack.c.bf16 %v4100, %v4096
        %v4135 = vpack.c.bf16 %v4102, %v4098
        %v4136 = vpack.c.bf16 %v4110, %v4106
        %v4137 = vpack.c.bf16 %v4112, %v4108
        %v4138 = vpack.c.bf16 %v4120, %v4116
        %v4139 = vpack.c.bf16 %v4122, %v4118
        %v4140 = vpack.c.bf16 %v4130, %v4126
        %v4141 = vpack.c.bf16 %v4132, %v4128
        %4142 = vxpose.xlu0.c.b16.start [1/8] %v3972, 128
        %4143 = vxpose.xlu0.c.b16.cont [2/8] %v3974, 128
        %4144 = vxpose.xlu0.c.b16.cont [3/8] 0, 128
        %4145 = vxpose.xlu0.c.b16.cont [4/8] 0, 128
        %4146 = vxpose.xlu0.c.b16.cont [5/8] 0, 128
        %4147 = vxpose.xlu0.c.b16.cont [6/8] 0, 128
        %4148 = vxpose.xlu0.c.b16.cont [7/8] 0, 128
        %4149 = vxpose.xlu0.c.b16.end [8/8] 0, 128
        %v4150 = vpop.trf.xlu0
        %v4151 = vpop.trf.xlu0
        %v4152 = vpop.trf.xlu0
        %v4153 = vpop.trf.xlu0
        %v4154 = vpop.trf.xlu0
        %v4155 = vpop.trf.xlu0
        %v4156 = vpop.trf.xlu0
        %v4157 = vpop.trf.xlu0
        %4158 = vxpose.xlu0.c.b16.start [1/8] %v3973, 128
        %4159 = vxpose.xlu0.c.b16.cont [2/8] %v3975, 128
        %4160 = vxpose.xlu0.c.b16.cont [3/8] 0, 128
        %4161 = vxpose.xlu0.c.b16.cont [4/8] 0, 128
        %4162 = vxpose.xlu0.c.b16.cont [5/8] 0, 128
        %4163 = vxpose.xlu0.c.b16.cont [6/8] 0, 128
        %4164 = vxpose.xlu0.c.b16.cont [7/8] 0, 128
        %4165 = vxpose.xlu0.c.b16.end [8/8] 0, 128
        %v4166 = vpop.trf.xlu0
        %v4167 = vpop.trf.xlu0
        %v4168 = vpop.trf.xlu0
        %v4169 = vpop.trf.xlu0
        %v4170 = vpop.trf.xlu0
        %v4171 = vpop.trf.xlu0
        %v4172 = vpop.trf.xlu0
        %v4173 = vpop.trf.xlu0
        %v4175 = vsel %vm1554, %v4150, 0
        %v4178 = vsel %vm1554, %v4151, 0
        %v4181 = vsel %vm1554, %v4152, 0
        %v4184 = vsel %vm1554, %v4153, 0
        %v4187 = vsel %vm1554, %v4154, 0
        %v4190 = vsel %vm1554, %v4155, 0
        %v4193 = vsel %vm1554, %v4156, 0
        %v4196 = vsel %vm1554, %v4157, 0
        %v4199 = vsel %vm1554, %v4166, 0
        %v4202 = vsel %vm1554, %v4167, 0
        %v4205 = vsel %vm1554, %v4168, 0
        %v4208 = vsel %vm1554, %v4169, 0
        %v4211 = vsel %vm1554, %v4170, 0
        %v4214 = vsel %vm1554, %v4171, 0
        %v4217 = vsel %vm1554, %v4172, 0
        %v4220 = vsel %vm1554, %v4173, 0
        %4222 = vmatprep.subr.bf16.mxu0 %v4054
        %4223 = vmatpush1.bf16.msra.mxu0 %v4053
        %4224 = vmatprep.subr.bf16.mxu0 %v4056
        %4225 = vmatpush1.bf16.msra.mxu0 %v4055
        %4226 = vmatprep.subr.bf16.mxu0 0
        %4227 = vmatpush1.bf16.msra.mxu0 0
        %4228 = vmatprep.subr.bf16.mxu0 0
        %4229 = vmatpush1.bf16.msra.mxu0 0
        %4230 = vmatprep.subr.bf16.mxu0 0
        %4231 = vmatpush1.bf16.msra.mxu0 0
        %4232 = vmatprep.subr.bf16.mxu0 0
        %4233 = vmatpush1.bf16.msra.mxu0 0
        %4234 = vmatprep.subr.bf16.mxu0 0
        %4235 = vmatpush1.bf16.msra.mxu0 0
        %4236 = vmatprep.subr.bf16.mxu0 0
        %4237 = vmatpush1.bf16.msra.mxu0 0
        %4238 = vmatprep.subr.bf16.mxu0 0
        %4239 = vmatpush1.bf16.msra.mxu0 0
        %4240 = vmatprep.subr.bf16.mxu0 0
        %4241 = vmatpush1.bf16.msra.mxu0 0
        %4242 = vmatprep.subr.bf16.mxu0 0
        %4243 = vmatpush1.bf16.msra.mxu0 0
        %4244 = vmatprep.subr.bf16.mxu0 0
        %4245 = vmatpush1.bf16.msra.mxu0 0
        %4246 = vmatprep.subr.bf16.mxu0 0
        %4247 = vmatpush1.bf16.msra.mxu0 0
        %4248 = vmatprep.subr.bf16.mxu0 0
        %4249 = vmatpush1.bf16.msra.mxu0 0
        %4250 = vmatprep.subr.bf16.mxu0 0
        %4251 = vmatpush1.bf16.msra.mxu0 0
        %4252 = vmatprep.subr.bf16.mxu0 0
        %4253 = vmatpush1.bf16.msra.mxu0 0
        %4254 = vmatprep.mubr.bf16.mxu0 0
        %4255 = vmatmul.mubr.bf16.gmra.mrb[0].mxu0 %v4175
        %v4256 = vpop.f32.mrb[0].mxu0
        %v4257 = vadd.f32 0.0, %v4256
        %v4258 = vpop.f32.mrb[0].mxu0
        %v4259 = vadd.f32 0.0, %v4258
        %v4260 = vpop.f32.mrb[0].mxu0
        %v4261 = vadd.f32 0.0, %v4260
        %v4262 = vpop.f32.mrb[0].mxu0
        %v4263 = vadd.f32 0.0, %v4262
        %4264 = vmatprep.mubr.bf16.mxu0 0
        %4265 = vmatmul.mubr.bf16.gmra.mrb[0].mxu0 %v4178
        %v4266 = vpop.f32.mrb[0].mxu0
        %v4267 = vadd.f32 0.0, %v4266
        %v4268 = vpop.f32.mrb[0].mxu0
        %v4269 = vadd.f32 0.0, %v4268
        %v4270 = vpop.f32.mrb[0].mxu0
        %v4271 = vadd.f32 0.0, %v4270
        %v4272 = vpop.f32.mrb[0].mxu0
        %v4273 = vadd.f32 0.0, %v4272
        %4274 = vmatprep.mubr.bf16.mxu0 0
        %4275 = vmatmul.mubr.bf16.gmra.mrb[0].mxu0 %v4181
        %v4276 = vpop.f32.mrb[0].mxu0
        %v4277 = vadd.f32 0.0, %v4276
        %v4278 = vpop.f32.mrb[0].mxu0
        %v4279 = vadd.f32 0.0, %v4278
        %v4280 = vpop.f32.mrb[0].mxu0
        %v4281 = vadd.f32 0.0, %v4280
        %v4282 = vpop.f32.mrb[0].mxu0
        %v4283 = vadd.f32 0.0, %v4282
        %4284 = vmatprep.mubr.bf16.mxu0 0
        %4285 = vmatmul.mubr.bf16.gmra.mrb[0].mxu0 %v4184
        %v4286 = vpop.f32.mrb[0].mxu0
        %v4287 = vadd.f32 0.0, %v4286
        %v4288 = vpop.f32.mrb[0].mxu0
        %v4289 = vadd.f32 0.0, %v4288
        %v4290 = vpop.f32.mrb[0].mxu0
        %v4291 = vadd.f32 0.0, %v4290
        %v4292 = vpop.f32.mrb[0].mxu0
        %v4293 = vadd.f32 0.0, %v4292
        %4294 = vmatprep.mubr.bf16.mxu0 0
        %4295 = vmatmul.mubr.bf16.gmra.mrb[0].mxu0 %v4187
        %v4296 = vpop.f32.mrb[0].mxu0
        %v4297 = vadd.f32 0.0, %v4296
        %v4298 = vpop.f32.mrb[0].mxu0
        %v4299 = vadd.f32 0.0, %v4298
        %v4300 = vpop.f32.mrb[0].mxu0
        %v4301 = vadd.f32 0.0, %v4300
        %v4302 = vpop.f32.mrb[0].mxu0
        %v4303 = vadd.f32 0.0, %v4302
        %4304 = vmatprep.mubr.bf16.mxu0 0
        %4305 = vmatmul.mubr.bf16.gmra.mrb[0].mxu0 %v4190
        %v4306 = vpop.f32.mrb[0].mxu0
        %v4307 = vadd.f32 0.0, %v4306
        %v4308 = vpop.f32.mrb[0].mxu0
        %v4309 = vadd.f32 0.0, %v4308
        %v4310 = vpop.f32.mrb[0].mxu0
        %v4311 = vadd.f32 0.0, %v4310
        %v4312 = vpop.f32.mrb[0].mxu0
        %v4313 = vadd.f32 0.0, %v4312
        %4314 = vmatprep.mubr.bf16.mxu0 0
        %4315 = vmatmul.mubr.bf16.gmra.mrb[0].mxu0 %v4193
        %v4316 = vpop.f32.mrb[0].mxu0
        %v4317 = vadd.f32 0.0, %v4316
        %v4318 = vpop.f32.mrb[0].mxu0
        %v4319 = vadd.f32 0.0, %v4318
        %v4320 = vpop.f32.mrb[0].mxu0
        %v4321 = vadd.f32 0.0, %v4320
        %v4322 = vpop.f32.mrb[0].mxu0
        %v4323 = vadd.f32 0.0, %v4322
        %4324 = vmatprep.mubr.bf16.mxu0 0
        %4325 = vmatmul.mubr.bf16.gmra.mrb[0].mxu0 %v4196
        %v4326 = vpop.f32.mrb[0].mxu0
        %v4327 = vadd.f32 0.0, %v4326
        %v4328 = vpop.f32.mrb[0].mxu0
        %v4329 = vadd.f32 0.0, %v4328
        %v4330 = vpop.f32.mrb[0].mxu0
        %v4331 = vadd.f32 0.0, %v4330
        %v4332 = vpop.f32.mrb[0].mxu0
        %v4333 = vadd.f32 0.0, %v4332
        %4334 = vmatprep.mubr.bf16.mxu0 0
        %4335 = vmatmul.mubr.bf16.gmra.mrb[0].mxu0 %v4199
        %v4336 = vpop.f32.mrb[0].mxu0
        %v4337 = vadd.f32 0.0, %v4336
        %v4338 = vpop.f32.mrb[0].mxu0
        %v4339 = vadd.f32 0.0, %v4338
        %v4340 = vpop.f32.mrb[0].mxu0
        %v4341 = vadd.f32 0.0, %v4340
        %v4342 = vpop.f32.mrb[0].mxu0
        %v4343 = vadd.f32 0.0, %v4342
        %4344 = vmatprep.mubr.bf16.mxu0 0
        %4345 = vmatmul.mubr.bf16.gmra.mrb[0].mxu0 %v4202
        %v4346 = vpop.f32.mrb[0].mxu0
        %v4347 = vadd.f32 0.0, %v4346
        %v4348 = vpop.f32.mrb[0].mxu0
        %v4349 = vadd.f32 0.0, %v4348
        %v4350 = vpop.f32.mrb[0].mxu0
        %v4351 = vadd.f32 0.0, %v4350
        %v4352 = vpop.f32.mrb[0].mxu0
        %v4353 = vadd.f32 0.0, %v4352
        %4354 = vmatprep.mubr.bf16.mxu0 0
        %4355 = vmatmul.mubr.bf16.gmra.mrb[0].mxu0 %v4205
        %v4356 = vpop.f32.mrb[0].mxu0
        %v4357 = vadd.f32 0.0, %v4356
        %v4358 = vpop.f32.mrb[0].mxu0
        %v4359 = vadd.f32 0.0, %v4358
        %v4360 = vpop.f32.mrb[0].mxu0
        %v4361 = vadd.f32 0.0, %v4360
        %v4362 = vpop.f32.mrb[0].mxu0
        %v4363 = vadd.f32 0.0, %v4362
        %4364 = vmatprep.mubr.bf16.mxu0 0
        %4365 = vmatmul.mubr.bf16.gmra.mrb[0].mxu0 %v4208
        %v4366 = vpop.f32.mrb[0].mxu0
        %v4367 = vadd.f32 0.0, %v4366
        %v4368 = vpop.f32.mrb[0].mxu0
        %v4369 = vadd.f32 0.0, %v4368
        %v4370 = vpop.f32.mrb[0].mxu0
        %v4371 = vadd.f32 0.0, %v4370
        %v4372 = vpop.f32.mrb[0].mxu0
        %v4373 = vadd.f32 0.0, %v4372
        %4374 = vmatprep.mubr.bf16.mxu0 0
        %4375 = vmatmul.mubr.bf16.gmra.mrb[0].mxu0 %v4211
        %v4376 = vpop.f32.mrb[0].mxu0
        %v4377 = vadd.f32 0.0, %v4376
        %v4378 = vpop.f32.mrb[0].mxu0
        %v4379 = vadd.f32 0.0, %v4378
        %v4380 = vpop.f32.mrb[0].mxu0
        %v4381 = vadd.f32 0.0, %v4380
        %v4382 = vpop.f32.mrb[0].mxu0
        %v4383 = vadd.f32 0.0, %v4382
        %4384 = vmatprep.mubr.bf16.mxu0 0
        %4385 = vmatmul.mubr.bf16.gmra.mrb[0].mxu0 %v4214
        %v4386 = vpop.f32.mrb[0].mxu0
        %v4387 = vadd.f32 0.0, %v4386
        %v4388 = vpop.f32.mrb[0].mxu0
        %v4389 = vadd.f32 0.0, %v4388
        %v4390 = vpop.f32.mrb[0].mxu0
        %v4391 = vadd.f32 0.0, %v4390
        %v4392 = vpop.f32.mrb[0].mxu0
        %v4393 = vadd.f32 0.0, %v4392
        %4394 = vmatprep.mubr.bf16.mxu0 0
        %4395 = vmatmul.mubr.bf16.gmra.mrb[0].mxu0 %v4217
        %v4396 = vpop.f32.mrb[0].mxu0
        %v4397 = vadd.f32 0.0, %v4396
        %v4398 = vpop.f32.mrb[0].mxu0
        %v4399 = vadd.f32 0.0, %v4398
        %v4400 = vpop.f32.mrb[0].mxu0
        %v4401 = vadd.f32 0.0, %v4400
        %v4402 = vpop.f32.mrb[0].mxu0
        %v4403 = vadd.f32 0.0, %v4402
        %4404 = vmatprep.mubr.bf16.mxu0 0
        %4405 = vmatmul.mubr.bf16.gmra.mrb[0].mxu0 %v4220
        %v4406 = vpop.f32.mrb[0].mxu0
        %v4407 = vadd.f32 0.0, %v4406
        %v4408 = vpop.f32.mrb[0].mxu0
        %v4409 = vadd.f32 0.0, %v4408
        %v4410 = vpop.f32.mrb[0].mxu0
        %v4411 = vadd.f32 0.0, %v4410
        %v4412 = vpop.f32.mrb[0].mxu0
        %v4413 = vadd.f32 0.0, %v4412
        %4414 = vdwg.mxu0
        %v4415 = vmax.f32 %v4257, %v4259
        %4416 = vmax.xlane.f32.xlu0 %v4415
        %v4417 = vpop.xlane.xlu0 %4416
        %v4418 = vmax.f32 %v4261, %v4263
        %4419 = vmax.xlane.f32.xlu0 %v4418
        %v4420 = vpop.xlane.xlu0 %4419
        %v4421 = vmax.f32 %v4267, %v4269
        %4422 = vmax.xlane.f32.xlu0 %v4421
        %v4423 = vpop.xlane.xlu0 %4422
        %v4424 = vmax.f32 %v4271, %v4273
        %4425 = vmax.xlane.f32.xlu0 %v4424
        %v4426 = vpop.xlane.xlu0 %4425
        %v4427 = vmax.f32 %v4277, %v4279
        %4428 = vmax.xlane.f32.xlu0 %v4427
        %v4429 = vpop.xlane.xlu0 %4428
        %v4430 = vmax.f32 %v4281, %v4283
        %4431 = vmax.xlane.f32.xlu0 %v4430
        %v4432 = vpop.xlane.xlu0 %4431
        %v4433 = vmax.f32 %v4287, %v4289
        %4434 = vmax.xlane.f32.xlu0 %v4433
        %v4435 = vpop.xlane.xlu0 %4434
        %v4436 = vmax.f32 %v4291, %v4293
        %4437 = vmax.xlane.f32.xlu0 %v4436
        %v4438 = vpop.xlane.xlu0 %4437
        %v4439 = vmax.f32 %v4297, %v4299
        %4440 = vmax.xlane.f32.xlu0 %v4439
        %v4441 = vpop.xlane.xlu0 %4440
        %v4442 = vmax.f32 %v4301, %v4303
        %4443 = vmax.xlane.f32.xlu0 %v4442
        %v4444 = vpop.xlane.xlu0 %4443
        %v4445 = vmax.f32 %v4307, %v4309
        %4446 = vmax.xlane.f32.xlu0 %v4445
        %v4447 = vpop.xlane.xlu0 %4446
        %v4448 = vmax.f32 %v4311, %v4313
        %4449 = vmax.xlane.f32.xlu0 %v4448
        %v4450 = vpop.xlane.xlu0 %4449
        %v4451 = vmax.f32 %v4317, %v4319
        %4452 = vmax.xlane.f32.xlu0 %v4451
        %v4453 = vpop.xlane.xlu0 %4452
        %v4454 = vmax.f32 %v4321, %v4323
        %4455 = vmax.xlane.f32.xlu0 %v4454
        %v4456 = vpop.xlane.xlu0 %4455
        %v4457 = vmax.f32 %v4327, %v4329
        %4458 = vmax.xlane.f32.xlu0 %v4457
        %v4459 = vpop.xlane.xlu0 %4458
        %v4460 = vmax.f32 %v4331, %v4333
        %4461 = vmax.xlane.f32.xlu0 %v4460
        %v4462 = vpop.xlane.xlu0 %4461
        %v4463 = vmax.f32 %v4337, %v4339
        %4464 = vmax.xlane.f32.xlu0 %v4463
        %v4465 = vpop.xlane.xlu0 %4464
        %v4466 = vmax.f32 %v4341, %v4343
        %4467 = vmax.xlane.f32.xlu0 %v4466
        %v4468 = vpop.xlane.xlu0 %4467
        %v4469 = vmax.f32 %v4347, %v4349
        %4470 = vmax.xlane.f32.xlu0 %v4469
        %v4471 = vpop.xlane.xlu0 %4470
        %v4472 = vmax.f32 %v4351, %v4353
        %4473 = vmax.xlane.f32.xlu0 %v4472
        %v4474 = vpop.xlane.xlu0 %4473
        %v4475 = vmax.f32 %v4357, %v4359
        %4476 = vmax.xlane.f32.xlu0 %v4475
        %v4477 = vpop.xlane.xlu0 %4476
        %v4478 = vmax.f32 %v4361, %v4363
        %4479 = vmax.xlane.f32.xlu0 %v4478
        %v4480 = vpop.xlane.xlu0 %4479
        %v4481 = vmax.f32 %v4367, %v4369
        %4482 = vmax.xlane.f32.xlu0 %v4481
        %v4483 = vpop.xlane.xlu0 %4482
        %v4484 = vmax.f32 %v4371, %v4373
        %4485 = vmax.xlane.f32.xlu0 %v4484
        %v4486 = vpop.xlane.xlu0 %4485
        %v4487 = vmax.f32 %v4377, %v4379
        %4488 = vmax.xlane.f32.xlu0 %v4487
        %v4489 = vpop.xlane.xlu0 %4488
        %v4490 = vmax.f32 %v4381, %v4383
        %4491 = vmax.xlane.f32.xlu0 %v4490
        %v4492 = vpop.xlane.xlu0 %4491
        %v4493 = vmax.f32 %v4387, %v4389
        %4494 = vmax.xlane.f32.xlu0 %v4493
        %v4495 = vpop.xlane.xlu0 %4494
        %v4496 = vmax.f32 %v4391, %v4393
        %4497 = vmax.xlane.f32.xlu0 %v4496
        %v4498 = vpop.xlane.xlu0 %4497
        %v4499 = vmax.f32 %v4397, %v4399
        %4500 = vmax.xlane.f32.xlu0 %v4499
        %v4501 = vpop.xlane.xlu0 %4500
        %v4502 = vmax.f32 %v4401, %v4403
        %4503 = vmax.xlane.f32.xlu0 %v4502
        %v4504 = vpop.xlane.xlu0 %4503
        %v4505 = vmax.f32 %v4407, %v4409
        %4506 = vmax.xlane.f32.xlu0 %v4505
        %v4507 = vpop.xlane.xlu0 %4506
        %v4508 = vmax.f32 %v4411, %v4413
        %4509 = vmax.xlane.f32.xlu0 %v4508
        %v4510 = vpop.xlane.xlu0 %4509
        %v4511 = vsub.f32 %v4257, %v4417
        %v4512 = vsub.f32 %v4259, %v4417
        %v4513 = vsub.f32 %v4261, %v4420
        %v4514 = vsub.f32 %v4263, %v4420
        %v4515 = vsub.f32 %v4267, %v4423
        %v4516 = vsub.f32 %v4269, %v4423
        %v4517 = vsub.f32 %v4271, %v4426
        %v4518 = vsub.f32 %v4273, %v4426
        %v4519 = vsub.f32 %v4277, %v4429
        %v4520 = vsub.f32 %v4279, %v4429
        %v4521 = vsub.f32 %v4281, %v4432
        %v4522 = vsub.f32 %v4283, %v4432
        %v4523 = vsub.f32 %v4287, %v4435
        %v4524 = vsub.f32 %v4289, %v4435
        %v4525 = vsub.f32 %v4291, %v4438
        %v4526 = vsub.f32 %v4293, %v4438
        %v4527 = vsub.f32 %v4297, %v4441
        %v4528 = vsub.f32 %v4299, %v4441
        %v4529 = vsub.f32 %v4301, %v4444
        %v4530 = vsub.f32 %v4303, %v4444
        %v4531 = vsub.f32 %v4307, %v4447
        %v4532 = vsub.f32 %v4309, %v4447
        %v4533 = vsub.f32 %v4311, %v4450
        %v4534 = vsub.f32 %v4313, %v4450
        %v4535 = vsub.f32 %v4317, %v4453
        %v4536 = vsub.f32 %v4319, %v4453
        %v4537 = vsub.f32 %v4321, %v4456
        %v4538 = vsub.f32 %v4323, %v4456
        %v4539 = vsub.f32 %v4327, %v4459
        %v4540 = vsub.f32 %v4329, %v4459
        %v4541 = vsub.f32 %v4331, %v4462
        %v4542 = vsub.f32 %v4333, %v4462
        %v4543 = vsub.f32 %v4337, %v4465
        %v4544 = vsub.f32 %v4339, %v4465
        %v4545 = vsub.f32 %v4341, %v4468
        %v4546 = vsub.f32 %v4343, %v4468
        %v4547 = vsub.f32 %v4347, %v4471
        %v4548 = vsub.f32 %v4349, %v4471
        %v4549 = vsub.f32 %v4351, %v4474
        %v4550 = vsub.f32 %v4353, %v4474
        %v4551 = vsub.f32 %v4357, %v4477
        %v4552 = vsub.f32 %v4359, %v4477
        %v4553 = vsub.f32 %v4361, %v4480
        %v4554 = vsub.f32 %v4363, %v4480
        %v4555 = vsub.f32 %v4367, %v4483
        %v4556 = vsub.f32 %v4369, %v4483
        %v4557 = vsub.f32 %v4371, %v4486
        %v4558 = vsub.f32 %v4373, %v4486
        %v4559 = vsub.f32 %v4377, %v4489
        %v4560 = vsub.f32 %v4379, %v4489
        %v4561 = vsub.f32 %v4381, %v4492
        %v4562 = vsub.f32 %v4383, %v4492
        %v4563 = vsub.f32 %v4387, %v4495
        %v4564 = vsub.f32 %v4389, %v4495
        %v4565 = vsub.f32 %v4391, %v4498
        %v4566 = vsub.f32 %v4393, %v4498
        %v4567 = vsub.f32 %v4397, %v4501
        %v4568 = vsub.f32 %v4399, %v4501
        %v4569 = vsub.f32 %v4401, %v4504
        %v4570 = vsub.f32 %v4403, %v4504
        %v4571 = vsub.f32 %v4407, %v4507
        %v4572 = vsub.f32 %v4409, %v4507
        %v4573 = vsub.f32 %v4411, %v4510
        %v4574 = vsub.f32 %v4413, %v4510
        %v4575 = vmul.f32 %v4511, 1.442695
        %v4576 = vpow.pop %v4575
        %v4577 = vmul.f32 %v4512, 1.442695
        %v4578 = vpow.pop %v4577
        %v4579 = vmul.f32 %v4513, 1.442695
        %v4580 = vpow.pop %v4579
        %v4581 = vmul.f32 %v4514, 1.442695
        %v4582 = vpow.pop %v4581
        %v4583 = vmul.f32 %v4515, 1.442695
        %v4584 = vpow.pop %v4583
        %v4585 = vmul.f32 %v4516, 1.442695
        %v4586 = vpow.pop %v4585
        %v4587 = vmul.f32 %v4517, 1.442695
        %v4588 = vpow.pop %v4587
        %v4589 = vmul.f32 %v4518, 1.442695
        %v4590 = vpow.pop %v4589
        %v4591 = vmul.f32 %v4519, 1.442695
        %v4592 = vpow.pop %v4591
        %v4593 = vmul.f32 %v4520, 1.442695
        %v4594 = vpow.pop %v4593
        %v4595 = vmul.f32 %v4521, 1.442695
        %v4596 = vpow.pop %v4595
        %v4597 = vmul.f32 %v4522, 1.442695
        %v4598 = vpow.pop %v4597
        %v4599 = vmul.f32 %v4523, 1.442695
        %v4600 = vpow.pop %v4599
        %v4601 = vmul.f32 %v4524, 1.442695
        %v4602 = vpow.pop %v4601
        %v4603 = vmul.f32 %v4525, 1.442695
        %v4604 = vpow.pop %v4603
        %v4605 = vmul.f32 %v4526, 1.442695
        %v4606 = vpow.pop %v4605
        %v4607 = vmul.f32 %v4527, 1.442695
        %v4608 = vpow.pop %v4607
        %v4609 = vmul.f32 %v4528, 1.442695
        %v4610 = vpow.pop %v4609
        %v4611 = vmul.f32 %v4529, 1.442695
        %v4612 = vpow.pop %v4611
        %v4613 = vmul.f32 %v4530, 1.442695
        %v4614 = vpow.pop %v4613
        %v4615 = vmul.f32 %v4531, 1.442695
        %v4616 = vpow.pop %v4615
        %v4617 = vmul.f32 %v4532, 1.442695
        %v4618 = vpow.pop %v4617
        %v4619 = vmul.f32 %v4533, 1.442695
        %v4620 = vpow.pop %v4619
        %v4621 = vmul.f32 %v4534, 1.442695
        %v4622 = vpow.pop %v4621
        %v4623 = vmul.f32 %v4535, 1.442695
        %v4624 = vpow.pop %v4623
        %v4625 = vmul.f32 %v4536, 1.442695
        %v4626 = vpow.pop %v4625
        %v4627 = vmul.f32 %v4537, 1.442695
        %v4628 = vpow.pop %v4627
        %v4629 = vmul.f32 %v4538, 1.442695
        %v4630 = vpow.pop %v4629
        %v4631 = vmul.f32 %v4539, 1.442695
        %v4632 = vpow.pop %v4631
        %v4633 = vmul.f32 %v4540, 1.442695
        %v4634 = vpow.pop %v4633
        %v4635 = vmul.f32 %v4541, 1.442695
        %v4636 = vpow.pop %v4635
        %v4637 = vmul.f32 %v4542, 1.442695
        %v4638 = vpow.pop %v4637
        %v4639 = vmul.f32 %v4543, 1.442695
        %v4640 = vpow.pop %v4639
        %v4641 = vmul.f32 %v4544, 1.442695
        %v4642 = vpow.pop %v4641
        %v4643 = vmul.f32 %v4545, 1.442695
        %v4644 = vpow.pop %v4643
        %v4645 = vmul.f32 %v4546, 1.442695
        %v4646 = vpow.pop %v4645
        %v4647 = vmul.f32 %v4547, 1.442695
        %v4648 = vpow.pop %v4647
        %v4649 = vmul.f32 %v4548, 1.442695
        %v4650 = vpow.pop %v4649
        %v4651 = vmul.f32 %v4549, 1.442695
        %v4652 = vpow.pop %v4651
        %v4653 = vmul.f32 %v4550, 1.442695
        %v4654 = vpow.pop %v4653
        %v4655 = vmul.f32 %v4551, 1.442695
        %v4656 = vpow.pop %v4655
        %v4657 = vmul.f32 %v4552, 1.442695
        %v4658 = vpow.pop %v4657
        %v4659 = vmul.f32 %v4553, 1.442695
        %v4660 = vpow.pop %v4659
        %v4661 = vmul.f32 %v4554, 1.442695
        %v4662 = vpow.pop %v4661
        %v4663 = vmul.f32 %v4555, 1.442695
        %v4664 = vpow.pop %v4663
        %v4665 = vmul.f32 %v4556, 1.442695
        %v4666 = vpow.pop %v4665
        %v4667 = vmul.f32 %v4557, 1.442695
        %v4668 = vpow.pop %v4667
        %v4669 = vmul.f32 %v4558, 1.442695
        %v4670 = vpow.pop %v4669
        %v4671 = vmul.f32 %v4559, 1.442695
        %v4672 = vpow.pop %v4671
        %v4673 = vmul.f32 %v4560, 1.442695
        %v4674 = vpow.pop %v4673
        %v4675 = vmul.f32 %v4561, 1.442695
        %v4676 = vpow.pop %v4675
        %v4677 = vmul.f32 %v4562, 1.442695
        %v4678 = vpow.pop %v4677
        %v4679 = vmul.f32 %v4563, 1.442695
        %v4680 = vpow.pop %v4679
        %v4681 = vmul.f32 %v4564, 1.442695
        %v4682 = vpow.pop %v4681
        %v4683 = vmul.f32 %v4565, 1.442695
        %v4684 = vpow.pop %v4683
        %v4685 = vmul.f32 %v4566, 1.442695
        %v4686 = vpow.pop %v4685
        %v4687 = vmul.f32 %v4567, 1.442695
        %v4688 = vpow.pop %v4687
        %v4689 = vmul.f32 %v4568, 1.442695
        %v4690 = vpow.pop %v4689
        %v4691 = vmul.f32 %v4569, 1.442695
        %v4692 = vpow.pop %v4691
        %v4693 = vmul.f32 %v4570, 1.442695
        %v4694 = vpow.pop %v4693
        %v4695 = vmul.f32 %v4571, 1.442695
        %v4696 = vpow.pop %v4695
        %v4697 = vmul.f32 %v4572, 1.442695
        %v4698 = vpow.pop %v4697
        %v4699 = vmul.f32 %v4573, 1.442695
        %v4700 = vpow.pop %v4699
        %v4701 = vmul.f32 %v4574, 1.442695
        %v4702 = vpow.pop %v4701
        %v4703 = vadd.f32 %v4576, %v4578
        %4704 = vadd.xlane.f32.xlu0 %v4703
        %v4705 = vpop.xlane.xlu0 %4704
        %v4706 = vadd.f32 %v4580, %v4582
        %4707 = vadd.xlane.f32.xlu0 %v4706
        %v4708 = vpop.xlane.xlu0 %4707
        %v4709 = vadd.f32 %v4584, %v4586
        %4710 = vadd.xlane.f32.xlu0 %v4709
        %v4711 = vpop.xlane.xlu0 %4710
        %v4712 = vadd.f32 %v4588, %v4590
        %4713 = vadd.xlane.f32.xlu0 %v4712
        %v4714 = vpop.xlane.xlu0 %4713
        %v4715 = vadd.f32 %v4592, %v4594
        %4716 = vadd.xlane.f32.xlu0 %v4715
        %v4717 = vpop.xlane.xlu0 %4716
        %v4718 = vadd.f32 %v4596, %v4598
        %4719 = vadd.xlane.f32.xlu0 %v4718
        %v4720 = vpop.xlane.xlu0 %4719
        %v4721 = vadd.f32 %v4600, %v4602
        %4722 = vadd.xlane.f32.xlu0 %v4721
        %v4723 = vpop.xlane.xlu0 %4722
        %v4724 = vadd.f32 %v4604, %v4606
        %4725 = vadd.xlane.f32.xlu0 %v4724
        %v4726 = vpop.xlane.xlu0 %4725
        %v4727 = vadd.f32 %v4608, %v4610
        %4728 = vadd.xlane.f32.xlu0 %v4727
        %v4729 = vpop.xlane.xlu0 %4728
        %v4730 = vadd.f32 %v4612, %v4614
        %4731 = vadd.xlane.f32.xlu0 %v4730
        %v4732 = vpop.xlane.xlu0 %4731
        %v4733 = vadd.f32 %v4616, %v4618
        %4734 = vadd.xlane.f32.xlu0 %v4733
        %v4735 = vpop.xlane.xlu0 %4734
        %v4736 = vadd.f32 %v4620, %v4622
        %4737 = vadd.xlane.f32.xlu0 %v4736
        %v4738 = vpop.xlane.xlu0 %4737
        %v4739 = vadd.f32 %v4624, %v4626
        %4740 = vadd.xlane.f32.xlu0 %v4739
        %v4741 = vpop.xlane.xlu0 %4740
        %v4742 = vadd.f32 %v4628, %v4630
        %4743 = vadd.xlane.f32.xlu0 %v4742
        %v4744 = vpop.xlane.xlu0 %4743
        %v4745 = vadd.f32 %v4632, %v4634
        %4746 = vadd.xlane.f32.xlu0 %v4745
        %v4747 = vpop.xlane.xlu0 %4746
        %v4748 = vadd.f32 %v4636, %v4638
        %4749 = vadd.xlane.f32.xlu0 %v4748
        %v4750 = vpop.xlane.xlu0 %4749
        %v4751 = vadd.f32 %v4640, %v4642
        %4752 = vadd.xlane.f32.xlu0 %v4751
        %v4753 = vpop.xlane.xlu0 %4752
        %v4754 = vadd.f32 %v4644, %v4646
        %4755 = vadd.xlane.f32.xlu0 %v4754
        %v4756 = vpop.xlane.xlu0 %4755
        %v4757 = vadd.f32 %v4648, %v4650
        %4758 = vadd.xlane.f32.xlu0 %v4757
        %v4759 = vpop.xlane.xlu0 %4758
        %v4760 = vadd.f32 %v4652, %v4654
        %4761 = vadd.xlane.f32.xlu0 %v4760
        %v4762 = vpop.xlane.xlu0 %4761
        %v4763 = vadd.f32 %v4656, %v4658
        %4764 = vadd.xlane.f32.xlu0 %v4763
        %v4765 = vpop.xlane.xlu0 %4764
        %v4766 = vadd.f32 %v4660, %v4662
        %4767 = vadd.xlane.f32.xlu0 %v4766
        %v4768 = vpop.xlane.xlu0 %4767
        %v4769 = vadd.f32 %v4664, %v4666
        %4770 = vadd.xlane.f32.xlu0 %v4769
        %v4771 = vpop.xlane.xlu0 %4770
        %v4772 = vadd.f32 %v4668, %v4670
        %4773 = vadd.xlane.f32.xlu0 %v4772
        %v4774 = vpop.xlane.xlu0 %4773
        %v4775 = vadd.f32 %v4672, %v4674
        %4776 = vadd.xlane.f32.xlu0 %v4775
        %v4777 = vpop.xlane.xlu0 %4776
        %v4778 = vadd.f32 %v4676, %v4678
        %4779 = vadd.xlane.f32.xlu0 %v4778
        %v4780 = vpop.xlane.xlu0 %4779
        %v4781 = vadd.f32 %v4680, %v4682
        %4782 = vadd.xlane.f32.xlu0 %v4781
        %v4783 = vpop.xlane.xlu0 %4782
        %v4784 = vadd.f32 %v4684, %v4686
        %4785 = vadd.xlane.f32.xlu0 %v4784
        %v4786 = vpop.xlane.xlu0 %4785
        %v4787 = vadd.f32 %v4688, %v4690
        %4788 = vadd.xlane.f32.xlu0 %v4787
        %v4789 = vpop.xlane.xlu0 %4788
        %v4790 = vadd.f32 %v4692, %v4694
        %4791 = vadd.xlane.f32.xlu0 %v4790
        %v4792 = vpop.xlane.xlu0 %4791
        %v4793 = vadd.f32 %v4696, %v4698
        %4794 = vadd.xlane.f32.xlu0 %v4793
        %v4795 = vpop.xlane.xlu0 %4794
        %v4796 = vadd.f32 %v4700, %v4702
        %4797 = vadd.xlane.f32.xlu0 %v4796
        %v4798 = vpop.xlane.xlu0 %4797
        %v4799 = vrcp.pop %v4705
        %v4800 = vrcp.pop %v4708
        %v4801 = vrcp.pop %v4711
        %v4802 = vrcp.pop %v4714
        %v4803 = vrcp.pop %v4717
        %v4804 = vrcp.pop %v4720
        %v4805 = vrcp.pop %v4723
        %v4806 = vrcp.pop %v4726
        %v4807 = vrcp.pop %v4729
        %v4808 = vrcp.pop %v4732
        %v4809 = vrcp.pop %v4735
        %v4810 = vrcp.pop %v4738
        %v4811 = vrcp.pop %v4741
        %v4812 = vrcp.pop %v4744
        %v4813 = vrcp.pop %v4747
        %v4814 = vrcp.pop %v4750
        %v4815 = vrcp.pop %v4753
        %v4816 = vrcp.pop %v4756
        %v4817 = vrcp.pop %v4759
        %v4818 = vrcp.pop %v4762
        %v4819 = vrcp.pop %v4765
        %v4820 = vrcp.pop %v4768
        %v4821 = vrcp.pop %v4771
        %v4822 = vrcp.pop %v4774
        %v4823 = vrcp.pop %v4777
        %v4824 = vrcp.pop %v4780
        %v4825 = vrcp.pop %v4783
        %v4826 = vrcp.pop %v4786
        %v4827 = vrcp.pop %v4789
        %v4828 = vrcp.pop %v4792
        %v4829 = vrcp.pop %v4795
        %v4830 = vrcp.pop %v4798
        %v4831 = vmul.f32 %v4576, %v4799
        %v4832 = vmul.f32 %v4578, %v4799
        %v4833 = vmul.f32 %v4580, %v4800
        %v4834 = vmul.f32 %v4582, %v4800
        %v4835 = vmul.f32 %v4584, %v4801
        %v4836 = vmul.f32 %v4586, %v4801
        %v4837 = vmul.f32 %v4588, %v4802
        %v4838 = vmul.f32 %v4590, %v4802
        %v4839 = vmul.f32 %v4592, %v4803
        %v4840 = vmul.f32 %v4594, %v4803
        %v4841 = vmul.f32 %v4596, %v4804
        %v4842 = vmul.f32 %v4598, %v4804
        %v4843 = vmul.f32 %v4600, %v4805
        %v4844 = vmul.f32 %v4602, %v4805
        %v4845 = vmul.f32 %v4604, %v4806
        %v4846 = vmul.f32 %v4606, %v4806
        %v4847 = vmul.f32 %v4608, %v4807
        %v4848 = vmul.f32 %v4610, %v4807
        %v4849 = vmul.f32 %v4612, %v4808
        %v4850 = vmul.f32 %v4614, %v4808
        %v4851 = vmul.f32 %v4616, %v4809
        %v4852 = vmul.f32 %v4618, %v4809
        %v4853 = vmul.f32 %v4620, %v4810
        %v4854 = vmul.f32 %v4622, %v4810
        %v4855 = vmul.f32 %v4624, %v4811
        %v4856 = vmul.f32 %v4626, %v4811
        %v4857 = vmul.f32 %v4628, %v4812
        %v4858 = vmul.f32 %v4630, %v4812
        %v4859 = vmul.f32 %v4632, %v4813
        %v4860 = vmul.f32 %v4634, %v4813
        %v4861 = vmul.f32 %v4636, %v4814
        %v4862 = vmul.f32 %v4638, %v4814
        %v4863 = vmul.f32 %v4640, %v4815
        %v4864 = vmul.f32 %v4642, %v4815
        %v4865 = vmul.f32 %v4644, %v4816
        %v4866 = vmul.f32 %v4646, %v4816
        %v4867 = vmul.f32 %v4648, %v4817
        %v4868 = vmul.f32 %v4650, %v4817
        %v4869 = vmul.f32 %v4652, %v4818
        %v4870 = vmul.f32 %v4654, %v4818
        %v4871 = vmul.f32 %v4656, %v4819
        %v4872 = vmul.f32 %v4658, %v4819
        %v4873 = vmul.f32 %v4660, %v4820
        %v4874 = vmul.f32 %v4662, %v4820
        %v4875 = vmul.f32 %v4664, %v4821
        %v4876 = vmul.f32 %v4666, %v4821
        %v4877 = vmul.f32 %v4668, %v4822
        %v4878 = vmul.f32 %v4670, %v4822
        %v4879 = vmul.f32 %v4672, %v4823
        %v4880 = vmul.f32 %v4674, %v4823
        %v4881 = vmul.f32 %v4676, %v4824
        %v4882 = vmul.f32 %v4678, %v4824
        %v4883 = vmul.f32 %v4680, %v4825
        %v4884 = vmul.f32 %v4682, %v4825
        %v4885 = vmul.f32 %v4684, %v4826
        %v4886 = vmul.f32 %v4686, %v4826
        %v4887 = vmul.f32 %v4688, %v4827
        %v4888 = vmul.f32 %v4690, %v4827
        %v4889 = vmul.f32 %v4692, %v4828
        %v4890 = vmul.f32 %v4694, %v4828
        %v4891 = vmul.f32 %v4696, %v4829
        %v4892 = vmul.f32 %v4698, %v4829
        %v4893 = vmul.f32 %v4700, %v4830
        %v4894 = vmul.f32 %v4702, %v4830
        %v4895 = vpack.c.bf16 %v4833, %v4831
        %v4896 = vpack.c.bf16 %v4834, %v4832
        %v4897 = vpack.c.bf16 %v4837, %v4835
        %v4898 = vpack.c.bf16 %v4838, %v4836
        %v4899 = vpack.c.bf16 %v4841, %v4839
        %v4900 = vpack.c.bf16 %v4842, %v4840
        %v4901 = vpack.c.bf16 %v4845, %v4843
        %v4902 = vpack.c.bf16 %v4846, %v4844
        %v4903 = vpack.c.bf16 %v4849, %v4847
        %v4904 = vpack.c.bf16 %v4850, %v4848
        %v4905 = vpack.c.bf16 %v4853, %v4851
        %v4906 = vpack.c.bf16 %v4854, %v4852
        %v4907 = vpack.c.bf16 %v4857, %v4855
        %v4908 = vpack.c.bf16 %v4858, %v4856
        %v4909 = vpack.c.bf16 %v4861, %v4859
        %v4910 = vpack.c.bf16 %v4862, %v4860
        %v4911 = vpack.c.bf16 %v4865, %v4863
        %v4912 = vpack.c.bf16 %v4866, %v4864
        %v4913 = vpack.c.bf16 %v4869, %v4867
        %v4914 = vpack.c.bf16 %v4870, %v4868
        %v4915 = vpack.c.bf16 %v4873, %v4871
        %v4916 = vpack.c.bf16 %v4874, %v4872
        %v4917 = vpack.c.bf16 %v4877, %v4875
        %v4918 = vpack.c.bf16 %v4878, %v4876
        %v4919 = vpack.c.bf16 %v4881, %v4879
        %v4920 = vpack.c.bf16 %v4882, %v4880
        %v4921 = vpack.c.bf16 %v4885, %v4883
        %v4922 = vpack.c.bf16 %v4886, %v4884
        %v4923 = vpack.c.bf16 %v4889, %v4887
        %v4924 = vpack.c.bf16 %v4890, %v4888
        %v4925 = vpack.c.bf16 %v4893, %v4891
        %v4926 = vpack.c.bf16 %v4894, %v4892
        %4927 = vmatprep.subr.bf16.mxu0 %v4896
        %4928 = vmatpush1.bf16.xpose.msra.mxu0 %v4895
        %4929 = vmatprep.subr.bf16.mxu0 %v4898
        %4930 = vmatpush1.bf16.xpose.msra.mxu0 %v4897
        %4931 = vmatprep.subr.bf16.mxu0 %v4900
        %4932 = vmatpush1.bf16.xpose.msra.mxu0 %v4899
        %4933 = vmatprep.subr.bf16.mxu0 %v4902
        %4934 = vmatpush1.bf16.xpose.msra.mxu0 %v4901
        %4935 = vmatprep.subr.bf16.mxu0 %v4904
        %4936 = vmatpush1.bf16.xpose.msra.mxu0 %v4903
        %4937 = vmatprep.subr.bf16.mxu0 %v4906
        %4938 = vmatpush1.bf16.xpose.msra.mxu0 %v4905
        %4939 = vmatprep.subr.bf16.mxu0 %v4908
        %4940 = vmatpush1.bf16.xpose.msra.mxu0 %v4907
        %4941 = vmatprep.subr.bf16.mxu0 %v4910
        %4942 = vmatpush1.bf16.xpose.msra.mxu0 %v4909
        %4943 = vmatprep.subr.bf16.mxu0 %v4912
        %4944 = vmatpush1.bf16.xpose.msra.mxu0 %v4911
        %4945 = vmatprep.subr.bf16.mxu0 %v4914
        %4946 = vmatpush1.bf16.xpose.msra.mxu0 %v4913
        %4947 = vmatprep.subr.bf16.mxu0 %v4916
        %4948 = vmatpush1.bf16.xpose.msra.mxu0 %v4915
        %4949 = vmatprep.subr.bf16.mxu0 %v4918
        %4950 = vmatpush1.bf16.xpose.msra.mxu0 %v4917
        %4951 = vmatprep.subr.bf16.mxu0 %v4920
        %4952 = vmatpush1.bf16.xpose.msra.mxu0 %v4919
        %4953 = vmatprep.subr.bf16.mxu0 %v4922
        %4954 = vmatpush1.bf16.xpose.msra.mxu0 %v4921
        %4955 = vmatprep.subr.bf16.mxu0 %v4924
        %4956 = vmatpush1.bf16.xpose.msra.mxu0 %v4923
        %4957 = vmatprep.subr.bf16.mxu0 %v4926
        %4958 = vmatpush1.bf16.xpose.msra.mxu0 %v4925
        %4959 = vmatprep.mubr.bf16.mxu0 %v4135
        %4960 = vmatmul.mubr.bf16.gmra.mrb[0].mxu0 %v4134
        %v4961 = vpop.f32.mrb[0].mxu0
        %v4962 = vadd.f32 0.0, %v4961
        %v4963 = vpop.f32.mrb[0].mxu0
        %v4964 = vadd.f32 0.0, %v4963
        %v4965 = vpop.f32.mrb[0].mxu0
        %v4966 = vadd.f32 0.0, %v4965
        %v4967 = vpop.f32.mrb[0].mxu0
        %v4968 = vadd.f32 0.0, %v4967
        %4969 = vmatprep.mubr.bf16.mxu0 %v4137
        %4970 = vmatmul.mubr.bf16.gmra.mrb[0].mxu0 %v4136
        %v4971 = vpop.f32.mrb[0].mxu0
        %v4972 = vadd.f32 0.0, %v4971
        %v4973 = vpop.f32.mrb[0].mxu0
        %v4974 = vadd.f32 0.0, %v4973
        %v4975 = vpop.f32.mrb[0].mxu0
        %v4976 = vadd.f32 0.0, %v4975
        %v4977 = vpop.f32.mrb[0].mxu0
        %v4978 = vadd.f32 0.0, %v4977
        %4979 = vdwg.mxu0
        %4980 = vxpose.xlu0.c.b16.start [1/8] %v3976, 128
        %4981 = vxpose.xlu0.c.b16.cont [2/8] %v3978, 128
        %4982 = vxpose.xlu0.c.b16.cont [3/8] 0, 128
        %4983 = vxpose.xlu0.c.b16.cont [4/8] 0, 128
        %4984 = vxpose.xlu0.c.b16.cont [5/8] 0, 128
        %4985 = vxpose.xlu0.c.b16.cont [6/8] 0, 128
        %4986 = vxpose.xlu0.c.b16.cont [7/8] 0, 128
        %4987 = vxpose.xlu0.c.b16.end [8/8] 0, 128
        %v4988 = vpop.trf.xlu0
        %v4989 = vpop.trf.xlu0
        %v4990 = vpop.trf.xlu0
        %v4991 = vpop.trf.xlu0
        %v4992 = vpop.trf.xlu0
        %v4993 = vpop.trf.xlu0
        %v4994 = vpop.trf.xlu0
        %v4995 = vpop.trf.xlu0
        %4996 = vxpose.xlu0.c.b16.start [1/8] %v3977, 128
        %4997 = vxpose.xlu0.c.b16.cont [2/8] %v3979, 128
        %4998 = vxpose.xlu0.c.b16.cont [3/8] 0, 128
        %4999 = vxpose.xlu0.c.b16.cont [4/8] 0, 128
        %5000 = vxpose.xlu0.c.b16.cont [5/8] 0, 128
        %5001 = vxpose.xlu0.c.b16.cont [6/8] 0, 128
        %5002 = vxpose.xlu0.c.b16.cont [7/8] 0, 128
        %5003 = vxpose.xlu0.c.b16.end [8/8] 0, 128
        %v5004 = vpop.trf.xlu0
        %v5005 = vpop.trf.xlu0
        %v5006 = vpop.trf.xlu0
        %v5007 = vpop.trf.xlu0
        %v5008 = vpop.trf.xlu0
        %v5009 = vpop.trf.xlu0
        %v5010 = vpop.trf.xlu0
        %v5011 = vpop.trf.xlu0
        %v5013 = vsel %vm1554, %v4988, 0
        %v5016 = vsel %vm1554, %v4989, 0
        %v5019 = vsel %vm1554, %v4990, 0
        %v5022 = vsel %vm1554, %v4991, 0
        %v5025 = vsel %vm1554, %v4992, 0
        %v5028 = vsel %vm1554, %v4993, 0
        %v5031 = vsel %vm1554, %v4994, 0
        %v5034 = vsel %vm1554, %v4995, 0
        %v5037 = vsel %vm1554, %v5004, 0
        %v5040 = vsel %vm1554, %v5005, 0
        %v5043 = vsel %vm1554, %v5006, 0
        %v5046 = vsel %vm1554, %v5007, 0
        %v5049 = vsel %vm1554, %v5008, 0
        %v5052 = vsel %vm1554, %v5009, 0
        %v5055 = vsel %vm1554, %v5010, 0
        %v5058 = vsel %vm1554, %v5011, 0
        %5060 = vmatprep.subr.bf16.mxu0 %v4058
        %5061 = vmatpush1.bf16.msra.mxu0 %v4057
        %5062 = vmatprep.subr.bf16.mxu0 %v4060
        %5063 = vmatpush1.bf16.msra.mxu0 %v4059
        %5064 = vmatprep.subr.bf16.mxu0 0
        %5065 = vmatpush1.bf16.msra.mxu0 0
        %5066 = vmatprep.subr.bf16.mxu0 0
        %5067 = vmatpush1.bf16.msra.mxu0 0
        %5068 = vmatprep.subr.bf16.mxu0 0
        %5069 = vmatpush1.bf16.msra.mxu0 0
        %5070 = vmatprep.subr.bf16.mxu0 0
        %5071 = vmatpush1.bf16.msra.mxu0 0
        %5072 = vmatprep.subr.bf16.mxu0 0
        %5073 = vmatpush1.bf16.msra.mxu0 0
        %5074 = vmatprep.subr.bf16.mxu0 0
        %5075 = vmatpush1.bf16.msra.mxu0 0
        %5076 = vmatprep.subr.bf16.mxu0 0
        %5077 = vmatpush1.bf16.msra.mxu0 0
        %5078 = vmatprep.subr.bf16.mxu0 0
        %5079 = vmatpush1.bf16.msra.mxu0 0
        %5080 = vmatprep.subr.bf16.mxu0 0
        %5081 = vmatpush1.bf16.msra.mxu0 0
        %5082 = vmatprep.subr.bf16.mxu0 0
        %5083 = vmatpush1.bf16.msra.mxu0 0
        %5084 = vmatprep.subr.bf16.mxu0 0
        %5085 = vmatpush1.bf16.msra.mxu0 0
        %5086 = vmatprep.subr.bf16.mxu0 0
        %5087 = vmatpush1.bf16.msra.mxu0 0
        %5088 = vmatprep.subr.bf16.mxu0 0
        %5089 = vmatpush1.bf16.msra.mxu0 0
        %5090 = vmatprep.subr.bf16.mxu0 0
        %5091 = vmatpush1.bf16.msra.mxu0 0
        %5092 = vmatprep.mubr.bf16.mxu0 0
        %5093 = vmatmul.mubr.bf16.gmra.mrb[0].mxu0 %v5013
        %v5094 = vpop.f32.mrb[0].mxu0
        %v5095 = vadd.f32 0.0, %v5094
        %v5096 = vpop.f32.mrb[0].mxu0
        %v5097 = vadd.f32 0.0, %v5096
        %v5098 = vpop.f32.mrb[0].mxu0
        %v5099 = vadd.f32 0.0, %v5098
        %v5100 = vpop.f32.mrb[0].mxu0
        %v5101 = vadd.f32 0.0, %v5100
        %5102 = vmatprep.mubr.bf16.mxu0 0
        %5103 = vmatmul.mubr.bf16.gmra.mrb[0].mxu0 %v5016
        %v5104 = vpop.f32.mrb[0].mxu0
        %v5105 = vadd.f32 0.0, %v5104
        %v5106 = vpop.f32.mrb[0].mxu0
        %v5107 = vadd.f32 0.0, %v5106
        %v5108 = vpop.f32.mrb[0].mxu0
        %v5109 = vadd.f32 0.0, %v5108
        %v5110 = vpop.f32.mrb[0].mxu0
        %v5111 = vadd.f32 0.0, %v5110
        %5112 = vmatprep.mubr.bf16.mxu0 0
        %5113 = vmatmul.mubr.bf16.gmra.mrb[0].mxu0 %v5019
        %v5114 = vpop.f32.mrb[0].mxu0
        %v5115 = vadd.f32 0.0, %v5114
        %v5116 = vpop.f32.mrb[0].mxu0
        %v5117 = vadd.f32 0.0, %v5116
        %v5118 = vpop.f32.mrb[0].mxu0
        %v5119 = vadd.f32 0.0, %v5118
        %v5120 = vpop.f32.mrb[0].mxu0
        %v5121 = vadd.f32 0.0, %v5120
        %5122 = vmatprep.mubr.bf16.mxu0 0
        %5123 = vmatmul.mubr.bf16.gmra.mrb[0].mxu0 %v5022
        %v5124 = vpop.f32.mrb[0].mxu0
        %v5125 = vadd.f32 0.0, %v5124
        %v5126 = vpop.f32.mrb[0].mxu0
        %v5127 = vadd.f32 0.0, %v5126
        %v5128 = vpop.f32.mrb[0].mxu0
        %v5129 = vadd.f32 0.0, %v5128
        %v5130 = vpop.f32.mrb[0].mxu0
        %v5131 = vadd.f32 0.0, %v5130
        %5132 = vmatprep.mubr.bf16.mxu0 0
        %5133 = vmatmul.mubr.bf16.gmra.mrb[0].mxu0 %v5025
        %v5134 = vpop.f32.mrb[0].mxu0
        %v5135 = vadd.f32 0.0, %v5134
        %v5136 = vpop.f32.mrb[0].mxu0
        %v5137 = vadd.f32 0.0, %v5136
        %v5138 = vpop.f32.mrb[0].mxu0
        %v5139 = vadd.f32 0.0, %v5138
        %v5140 = vpop.f32.mrb[0].mxu0
        %v5141 = vadd.f32 0.0, %v5140
        %5142 = vmatprep.mubr.bf16.mxu0 0
        %5143 = vmatmul.mubr.bf16.gmra.mrb[0].mxu0 %v5028
        %v5144 = vpop.f32.mrb[0].mxu0
        %v5145 = vadd.f32 0.0, %v5144
        %v5146 = vpop.f32.mrb[0].mxu0
        %v5147 = vadd.f32 0.0, %v5146
        %v5148 = vpop.f32.mrb[0].mxu0
        %v5149 = vadd.f32 0.0, %v5148
        %v5150 = vpop.f32.mrb[0].mxu0
        %v5151 = vadd.f32 0.0, %v5150
        %5152 = vmatprep.mubr.bf16.mxu0 0
        %5153 = vmatmul.mubr.bf16.gmra.mrb[0].mxu0 %v5031
        %v5154 = vpop.f32.mrb[0].mxu0
        %v5155 = vadd.f32 0.0, %v5154
        %v5156 = vpop.f32.mrb[0].mxu0
        %v5157 = vadd.f32 0.0, %v5156
        %v5158 = vpop.f32.mrb[0].mxu0
        %v5159 = vadd.f32 0.0, %v5158
        %v5160 = vpop.f32.mrb[0].mxu0
        %v5161 = vadd.f32 0.0, %v5160
        %5162 = vmatprep.mubr.bf16.mxu0 0
        %5163 = vmatmul.mubr.bf16.gmra.mrb[0].mxu0 %v5034
        %v5164 = vpop.f32.mrb[0].mxu0
        %v5165 = vadd.f32 0.0, %v5164
        %v5166 = vpop.f32.mrb[0].mxu0
        %v5167 = vadd.f32 0.0, %v5166
        %v5168 = vpop.f32.mrb[0].mxu0
        %v5169 = vadd.f32 0.0, %v5168
        %v5170 = vpop.f32.mrb[0].mxu0
        %v5171 = vadd.f32 0.0, %v5170
        %5172 = vmatprep.mubr.bf16.mxu0 0
        %5173 = vmatmul.mubr.bf16.gmra.mrb[0].mxu0 %v5037
        %v5174 = vpop.f32.mrb[0].mxu0
        %v5175 = vadd.f32 0.0, %v5174
        %v5176 = vpop.f32.mrb[0].mxu0
        %v5177 = vadd.f32 0.0, %v5176
        %v5178 = vpop.f32.mrb[0].mxu0
        %v5179 = vadd.f32 0.0, %v5178
        %v5180 = vpop.f32.mrb[0].mxu0
        %v5181 = vadd.f32 0.0, %v5180
        %5182 = vmatprep.mubr.bf16.mxu0 0
        %5183 = vmatmul.mubr.bf16.gmra.mrb[0].mxu0 %v5040
        %v5184 = vpop.f32.mrb[0].mxu0
        %v5185 = vadd.f32 0.0, %v5184
        %v5186 = vpop.f32.mrb[0].mxu0
        %v5187 = vadd.f32 0.0, %v5186
        %v5188 = vpop.f32.mrb[0].mxu0
        %v5189 = vadd.f32 0.0, %v5188
        %v5190 = vpop.f32.mrb[0].mxu0
        %v5191 = vadd.f32 0.0, %v5190
        %5192 = vmatprep.mubr.bf16.mxu0 0
        %5193 = vmatmul.mubr.bf16.gmra.mrb[0].mxu0 %v5043
        %v5194 = vpop.f32.mrb[0].mxu0
        %v5195 = vadd.f32 0.0, %v5194
        %v5196 = vpop.f32.mrb[0].mxu0
        %v5197 = vadd.f32 0.0, %v5196
        %v5198 = vpop.f32.mrb[0].mxu0
        %v5199 = vadd.f32 0.0, %v5198
        %v5200 = vpop.f32.mrb[0].mxu0
        %v5201 = vadd.f32 0.0, %v5200
        %5202 = vmatprep.mubr.bf16.mxu0 0
        %5203 = vmatmul.mubr.bf16.gmra.mrb[0].mxu0 %v5046
        %v5204 = vpop.f32.mrb[0].mxu0
        %v5205 = vadd.f32 0.0, %v5204
        %v5206 = vpop.f32.mrb[0].mxu0
        %v5207 = vadd.f32 0.0, %v5206
        %v5208 = vpop.f32.mrb[0].mxu0
        %v5209 = vadd.f32 0.0, %v5208
        %v5210 = vpop.f32.mrb[0].mxu0
        %v5211 = vadd.f32 0.0, %v5210
        %5212 = vmatprep.mubr.bf16.mxu0 0
        %5213 = vmatmul.mubr.bf16.gmra.mrb[0].mxu0 %v5049
        %v5214 = vpop.f32.mrb[0].mxu0
        %v5215 = vadd.f32 0.0, %v5214
        %v5216 = vpop.f32.mrb[0].mxu0
        %v5217 = vadd.f32 0.0, %v5216
        %v5218 = vpop.f32.mrb[0].mxu0
        %v5219 = vadd.f32 0.0, %v5218
        %v5220 = vpop.f32.mrb[0].mxu0
        %v5221 = vadd.f32 0.0, %v5220
        %5222 = vmatprep.mubr.bf16.mxu0 0
        %5223 = vmatmul.mubr.bf16.gmra.mrb[0].mxu0 %v5052
        %v5224 = vpop.f32.mrb[0].mxu0
        %v5225 = vadd.f32 0.0, %v5224
        %v5226 = vpop.f32.mrb[0].mxu0
        %v5227 = vadd.f32 0.0, %v5226
        %v5228 = vpop.f32.mrb[0].mxu0
        %v5229 = vadd.f32 0.0, %v5228
        %v5230 = vpop.f32.mrb[0].mxu0
        %v5231 = vadd.f32 0.0, %v5230
        %5232 = vmatprep.mubr.bf16.mxu0 0
        %5233 = vmatmul.mubr.bf16.gmra.mrb[0].mxu0 %v5055
        %v5234 = vpop.f32.mrb[0].mxu0
        %v5235 = vadd.f32 0.0, %v5234
        %v5236 = vpop.f32.mrb[0].mxu0
        %v5237 = vadd.f32 0.0, %v5236
        %v5238 = vpop.f32.mrb[0].mxu0
        %v5239 = vadd.f32 0.0, %v5238
        %v5240 = vpop.f32.mrb[0].mxu0
        %v5241 = vadd.f32 0.0, %v5240
        %5242 = vmatprep.mubr.bf16.mxu0 0
        %5243 = vmatmul.mubr.bf16.gmra.mrb[0].mxu0 %v5058
        %v5244 = vpop.f32.mrb[0].mxu0
        %v5245 = vadd.f32 0.0, %v5244
        %v5246 = vpop.f32.mrb[0].mxu0
        %v5247 = vadd.f32 0.0, %v5246
        %v5248 = vpop.f32.mrb[0].mxu0
        %v5249 = vadd.f32 0.0, %v5248
        %v5250 = vpop.f32.mrb[0].mxu0
        %v5251 = vadd.f32 0.0, %v5250
        %5252 = vdwg.mxu0
        %v5253 = vmax.f32 %v5095, %v5097
        %5254 = vmax.xlane.f32.xlu0 %v5253
        %v5255 = vpop.xlane.xlu0 %5254
        %v5256 = vmax.f32 %v5099, %v5101
        %5257 = vmax.xlane.f32.xlu0 %v5256
        %v5258 = vpop.xlane.xlu0 %5257
        %v5259 = vmax.f32 %v5105, %v5107
        %5260 = vmax.xlane.f32.xlu0 %v5259
        %v5261 = vpop.xlane.xlu0 %5260
        %v5262 = vmax.f32 %v5109, %v5111
        %5263 = vmax.xlane.f32.xlu0 %v5262
        %v5264 = vpop.xlane.xlu0 %5263
        %v5265 = vmax.f32 %v5115, %v5117
        %5266 = vmax.xlane.f32.xlu0 %v5265
        %v5267 = vpop.xlane.xlu0 %5266
        %v5268 = vmax.f32 %v5119, %v5121
        %5269 = vmax.xlane.f32.xlu0 %v5268
        %v5270 = vpop.xlane.xlu0 %5269
        %v5271 = vmax.f32 %v5125, %v5127
        %5272 = vmax.xlane.f32.xlu0 %v5271
        %v5273 = vpop.xlane.xlu0 %5272
        %v5274 = vmax.f32 %v5129, %v5131
        %5275 = vmax.xlane.f32.xlu0 %v5274
        %v5276 = vpop.xlane.xlu0 %5275
        %v5277 = vmax.f32 %v5135, %v5137
        %5278 = vmax.xlane.f32.xlu0 %v5277
        %v5279 = vpop.xlane.xlu0 %5278
        %v5280 = vmax.f32 %v5139, %v5141
        %5281 = vmax.xlane.f32.xlu0 %v5280
        %v5282 = vpop.xlane.xlu0 %5281
        %v5283 = vmax.f32 %v5145, %v5147
        %5284 = vmax.xlane.f32.xlu0 %v5283
        %v5285 = vpop.xlane.xlu0 %5284
        %v5286 = vmax.f32 %v5149, %v5151
        %5287 = vmax.xlane.f32.xlu0 %v5286
        %v5288 = vpop.xlane.xlu0 %5287
        %v5289 = vmax.f32 %v5155, %v5157
        %5290 = vmax.xlane.f32.xlu0 %v5289
        %v5291 = vpop.xlane.xlu0 %5290
        %v5292 = vmax.f32 %v5159, %v5161
        %5293 = vmax.xlane.f32.xlu0 %v5292
        %v5294 = vpop.xlane.xlu0 %5293
        %v5295 = vmax.f32 %v5165, %v5167
        %5296 = vmax.xlane.f32.xlu0 %v5295
        %v5297 = vpop.xlane.xlu0 %5296
        %v5298 = vmax.f32 %v5169, %v5171
        %5299 = vmax.xlane.f32.xlu0 %v5298
        %v5300 = vpop.xlane.xlu0 %5299
        %v5301 = vmax.f32 %v5175, %v5177
        %5302 = vmax.xlane.f32.xlu0 %v5301
        %v5303 = vpop.xlane.xlu0 %5302
        %v5304 = vmax.f32 %v5179, %v5181
        %5305 = vmax.xlane.f32.xlu0 %v5304
        %v5306 = vpop.xlane.xlu0 %5305
        %v5307 = vmax.f32 %v5185, %v5187
        %5308 = vmax.xlane.f32.xlu0 %v5307
        %v5309 = vpop.xlane.xlu0 %5308
        %v5310 = vmax.f32 %v5189, %v5191
        %5311 = vmax.xlane.f32.xlu0 %v5310
        %v5312 = vpop.xlane.xlu0 %5311
        %v5313 = vmax.f32 %v5195, %v5197
        %5314 = vmax.xlane.f32.xlu0 %v5313
        %v5315 = vpop.xlane.xlu0 %5314
        %v5316 = vmax.f32 %v5199, %v5201
        %5317 = vmax.xlane.f32.xlu0 %v5316
        %v5318 = vpop.xlane.xlu0 %5317
        %v5319 = vmax.f32 %v5205, %v5207
        %5320 = vmax.xlane.f32.xlu0 %v5319
        %v5321 = vpop.xlane.xlu0 %5320
        %v5322 = vmax.f32 %v5209, %v5211
        %5323 = vmax.xlane.f32.xlu0 %v5322
        %v5324 = vpop.xlane.xlu0 %5323
        %v5325 = vmax.f32 %v5215, %v5217
        %5326 = vmax.xlane.f32.xlu0 %v5325
        %v5327 = vpop.xlane.xlu0 %5326
        %v5328 = vmax.f32 %v5219, %v5221
        %5329 = vmax.xlane.f32.xlu0 %v5328
        %v5330 = vpop.xlane.xlu0 %5329
        %v5331 = vmax.f32 %v5225, %v5227
        %5332 = vmax.xlane.f32.xlu0 %v5331
        %v5333 = vpop.xlane.xlu0 %5332
        %v5334 = vmax.f32 %v5229, %v5231
        %5335 = vmax.xlane.f32.xlu0 %v5334
        %v5336 = vpop.xlane.xlu0 %5335
        %v5337 = vmax.f32 %v5235, %v5237
        %5338 = vmax.xlane.f32.xlu0 %v5337
        %v5339 = vpop.xlane.xlu0 %5338
        %v5340 = vmax.f32 %v5239, %v5241
        %5341 = vmax.xlane.f32.xlu0 %v5340
        %v5342 = vpop.xlane.xlu0 %5341
        %v5343 = vmax.f32 %v5245, %v5247
        %5344 = vmax.xlane.f32.xlu0 %v5343
        %v5345 = vpop.xlane.xlu0 %5344
        %v5346 = vmax.f32 %v5249, %v5251
        %5347 = vmax.xlane.f32.xlu0 %v5346
        %v5348 = vpop.xlane.xlu0 %5347
        %v5349 = vsub.f32 %v5095, %v5255
        %v5350 = vsub.f32 %v5097, %v5255
        %v5351 = vsub.f32 %v5099, %v5258
        %v5352 = vsub.f32 %v5101, %v5258
        %v5353 = vsub.f32 %v5105, %v5261
        %v5354 = vsub.f32 %v5107, %v5261
        %v5355 = vsub.f32 %v5109, %v5264
        %v5356 = vsub.f32 %v5111, %v5264
        %v5357 = vsub.f32 %v5115, %v5267
        %v5358 = vsub.f32 %v5117, %v5267
        %v5359 = vsub.f32 %v5119, %v5270
        %v5360 = vsub.f32 %v5121, %v5270
        %v5361 = vsub.f32 %v5125, %v5273
        %v5362 = vsub.f32 %v5127, %v5273
        %v5363 = vsub.f32 %v5129, %v5276
        %v5364 = vsub.f32 %v5131, %v5276
        %v5365 = vsub.f32 %v5135, %v5279
        %v5366 = vsub.f32 %v5137, %v5279
        %v5367 = vsub.f32 %v5139, %v5282
        %v5368 = vsub.f32 %v5141, %v5282
        %v5369 = vsub.f32 %v5145, %v5285
        %v5370 = vsub.f32 %v5147, %v5285
        %v5371 = vsub.f32 %v5149, %v5288
        %v5372 = vsub.f32 %v5151, %v5288
        %v5373 = vsub.f32 %v5155, %v5291
        %v5374 = vsub.f32 %v5157, %v5291
        %v5375 = vsub.f32 %v5159, %v5294
        %v5376 = vsub.f32 %v5161, %v5294
        %v5377 = vsub.f32 %v5165, %v5297
        %v5378 = vsub.f32 %v5167, %v5297
        %v5379 = vsub.f32 %v5169, %v5300
        %v5380 = vsub.f32 %v5171, %v5300
        %v5381 = vsub.f32 %v5175, %v5303
        %v5382 = vsub.f32 %v5177, %v5303
        %v5383 = vsub.f32 %v5179, %v5306
        %v5384 = vsub.f32 %v5181, %v5306
        %v5385 = vsub.f32 %v5185, %v5309
        %v5386 = vsub.f32 %v5187, %v5309
        %v5387 = vsub.f32 %v5189, %v5312
        %v5388 = vsub.f32 %v5191, %v5312
        %v5389 = vsub.f32 %v5195, %v5315
        %v5390 = vsub.f32 %v5197, %v5315
        %v5391 = vsub.f32 %v5199, %v5318
        %v5392 = vsub.f32 %v5201, %v5318
        %v5393 = vsub.f32 %v5205, %v5321
        %v5394 = vsub.f32 %v5207, %v5321
        %v5395 = vsub.f32 %v5209, %v5324
        %v5396 = vsub.f32 %v5211, %v5324
        %v5397 = vsub.f32 %v5215, %v5327
        %v5398 = vsub.f32 %v5217, %v5327
        %v5399 = vsub.f32 %v5219, %v5330
        %v5400 = vsub.f32 %v5221, %v5330
        %v5401 = vsub.f32 %v5225, %v5333
        %v5402 = vsub.f32 %v5227, %v5333
        %v5403 = vsub.f32 %v5229, %v5336
        %v5404 = vsub.f32 %v5231, %v5336
        %v5405 = vsub.f32 %v5235, %v5339
        %v5406 = vsub.f32 %v5237, %v5339
        %v5407 = vsub.f32 %v5239, %v5342
        %v5408 = vsub.f32 %v5241, %v5342
        %v5409 = vsub.f32 %v5245, %v5345
        %v5410 = vsub.f32 %v5247, %v5345
        %v5411 = vsub.f32 %v5249, %v5348
        %v5412 = vsub.f32 %v5251, %v5348
        %v5413 = vmul.f32 %v5349, 1.442695
        %v5414 = vpow.pop %v5413
        %v5415 = vmul.f32 %v5350, 1.442695
        %v5416 = vpow.pop %v5415
        %v5417 = vmul.f32 %v5351, 1.442695
        %v5418 = vpow.pop %v5417
        %v5419 = vmul.f32 %v5352, 1.442695
        %v5420 = vpow.pop %v5419
        %v5421 = vmul.f32 %v5353, 1.442695
        %v5422 = vpow.pop %v5421
        %v5423 = vmul.f32 %v5354, 1.442695
        %v5424 = vpow.pop %v5423
        %v5425 = vmul.f32 %v5355, 1.442695
        %v5426 = vpow.pop %v5425
        %v5427 = vmul.f32 %v5356, 1.442695
        %v5428 = vpow.pop %v5427
        %v5429 = vmul.f32 %v5357, 1.442695
        %v5430 = vpow.pop %v5429
        %v5431 = vmul.f32 %v5358, 1.442695
        %v5432 = vpow.pop %v5431
        %v5433 = vmul.f32 %v5359, 1.442695
        %v5434 = vpow.pop %v5433
        %v5435 = vmul.f32 %v5360, 1.442695
        %v5436 = vpow.pop %v5435
        %v5437 = vmul.f32 %v5361, 1.442695
        %v5438 = vpow.pop %v5437
        %v5439 = vmul.f32 %v5362, 1.442695
        %v5440 = vpow.pop %v5439
        %v5441 = vmul.f32 %v5363, 1.442695
        %v5442 = vpow.pop %v5441
        %v5443 = vmul.f32 %v5364, 1.442695
        %v5444 = vpow.pop %v5443
        %v5445 = vmul.f32 %v5365, 1.442695
        %v5446 = vpow.pop %v5445
        %v5447 = vmul.f32 %v5366, 1.442695
        %v5448 = vpow.pop %v5447
        %v5449 = vmul.f32 %v5367, 1.442695
        %v5450 = vpow.pop %v5449
        %v5451 = vmul.f32 %v5368, 1.442695
        %v5452 = vpow.pop %v5451
        %v5453 = vmul.f32 %v5369, 1.442695
        %v5454 = vpow.pop %v5453
        %v5455 = vmul.f32 %v5370, 1.442695
        %v5456 = vpow.pop %v5455
        %v5457 = vmul.f32 %v5371, 1.442695
        %v5458 = vpow.pop %v5457
        %v5459 = vmul.f32 %v5372, 1.442695
        %v5460 = vpow.pop %v5459
        %v5461 = vmul.f32 %v5373, 1.442695
        %v5462 = vpow.pop %v5461
        %v5463 = vmul.f32 %v5374, 1.442695
        %v5464 = vpow.pop %v5463
        %v5465 = vmul.f32 %v5375, 1.442695
        %v5466 = vpow.pop %v5465
        %v5467 = vmul.f32 %v5376, 1.442695
        %v5468 = vpow.pop %v5467
        %v5469 = vmul.f32 %v5377, 1.442695
        %v5470 = vpow.pop %v5469
        %v5471 = vmul.f32 %v5378, 1.442695
        %v5472 = vpow.pop %v5471
        %v5473 = vmul.f32 %v5379, 1.442695
        %v5474 = vpow.pop %v5473
        %v5475 = vmul.f32 %v5380, 1.442695
        %v5476 = vpow.pop %v5475
        %v5477 = vmul.f32 %v5381, 1.442695
        %v5478 = vpow.pop %v5477
        %v5479 = vmul.f32 %v5382, 1.442695
        %v5480 = vpow.pop %v5479
        %v5481 = vmul.f32 %v5383, 1.442695
        %v5482 = vpow.pop %v5481
        %v5483 = vmul.f32 %v5384, 1.442695
        %v5484 = vpow.pop %v5483
        %v5485 = vmul.f32 %v5385, 1.442695
        %v5486 = vpow.pop %v5485
        %v5487 = vmul.f32 %v5386, 1.442695
        %v5488 = vpow.pop %v5487
        %v5489 = vmul.f32 %v5387, 1.442695
        %v5490 = vpow.pop %v5489
        %v5491 = vmul.f32 %v5388, 1.442695
        %v5492 = vpow.pop %v5491
        %v5493 = vmul.f32 %v5389, 1.442695
        %v5494 = vpow.pop %v5493
        %v5495 = vmul.f32 %v5390, 1.442695
        %v5496 = vpow.pop %v5495
        %v5497 = vmul.f32 %v5391, 1.442695
        %v5498 = vpow.pop %v5497
        %v5499 = vmul.f32 %v5392, 1.442695
        %v5500 = vpow.pop %v5499
        %v5501 = vmul.f32 %v5393, 1.442695
        %v5502 = vpow.pop %v5501
        %v5503 = vmul.f32 %v5394, 1.442695
        %v5504 = vpow.pop %v5503
        %v5505 = vmul.f32 %v5395, 1.442695
        %v5506 = vpow.pop %v5505
        %v5507 = vmul.f32 %v5396, 1.442695
        %v5508 = vpow.pop %v5507
        %v5509 = vmul.f32 %v5397, 1.442695
        %v5510 = vpow.pop %v5509
        %v5511 = vmul.f32 %v5398, 1.442695
        %v5512 = vpow.pop %v5511
        %v5513 = vmul.f32 %v5399, 1.442695
        %v5514 = vpow.pop %v5513
        %v5515 = vmul.f32 %v5400, 1.442695
        %v5516 = vpow.pop %v5515
        %v5517 = vmul.f32 %v5401, 1.442695
        %v5518 = vpow.pop %v5517
        %v5519 = vmul.f32 %v5402, 1.442695
        %v5520 = vpow.pop %v5519
        %v5521 = vmul.f32 %v5403, 1.442695
        %v5522 = vpow.pop %v5521
        %v5523 = vmul.f32 %v5404, 1.442695
        %v5524 = vpow.pop %v5523
        %v5525 = vmul.f32 %v5405, 1.442695
        %v5526 = vpow.pop %v5525
        %v5527 = vmul.f32 %v5406, 1.442695
        %v5528 = vpow.pop %v5527
        %v5529 = vmul.f32 %v5407, 1.442695
        %v5530 = vpow.pop %v5529
        %v5531 = vmul.f32 %v5408, 1.442695
        %v5532 = vpow.pop %v5531
        %v5533 = vmul.f32 %v5409, 1.442695
        %v5534 = vpow.pop %v5533
        %v5535 = vmul.f32 %v5410, 1.442695
        %v5536 = vpow.pop %v5535
        %v5537 = vmul.f32 %v5411, 1.442695
        %v5538 = vpow.pop %v5537
        %v5539 = vmul.f32 %v5412, 1.442695
        %v5540 = vpow.pop %v5539
        %v5541 = vadd.f32 %v5414, %v5416
        %5542 = vadd.xlane.f32.xlu0 %v5541
        %v5543 = vpop.xlane.xlu0 %5542
        %v5544 = vadd.f32 %v5418, %v5420
        %5545 = vadd.xlane.f32.xlu0 %v5544
        %v5546 = vpop.xlane.xlu0 %5545
        %v5547 = vadd.f32 %v5422, %v5424
        %5548 = vadd.xlane.f32.xlu0 %v5547
        %v5549 = vpop.xlane.xlu0 %5548
        %v5550 = vadd.f32 %v5426, %v5428
        %5551 = vadd.xlane.f32.xlu0 %v5550
        %v5552 = vpop.xlane.xlu0 %5551
        %v5553 = vadd.f32 %v5430, %v5432
        %5554 = vadd.xlane.f32.xlu0 %v5553
        %v5555 = vpop.xlane.xlu0 %5554
        %v5556 = vadd.f32 %v5434, %v5436
        %5557 = vadd.xlane.f32.xlu0 %v5556
        %v5558 = vpop.xlane.xlu0 %5557
        %v5559 = vadd.f32 %v5438, %v5440
        %5560 = vadd.xlane.f32.xlu0 %v5559
        %v5561 = vpop.xlane.xlu0 %5560
        %v5562 = vadd.f32 %v5442, %v5444
        %5563 = vadd.xlane.f32.xlu0 %v5562
        %v5564 = vpop.xlane.xlu0 %5563
        %v5565 = vadd.f32 %v5446, %v5448
        %5566 = vadd.xlane.f32.xlu0 %v5565
        %v5567 = vpop.xlane.xlu0 %5566
        %v5568 = vadd.f32 %v5450, %v5452
        %5569 = vadd.xlane.f32.xlu0 %v5568
        %v5570 = vpop.xlane.xlu0 %5569
        %v5571 = vadd.f32 %v5454, %v5456
        %5572 = vadd.xlane.f32.xlu0 %v5571
        %v5573 = vpop.xlane.xlu0 %5572
        %v5574 = vadd.f32 %v5458, %v5460
        %5575 = vadd.xlane.f32.xlu0 %v5574
        %v5576 = vpop.xlane.xlu0 %5575
        %v5577 = vadd.f32 %v5462, %v5464
        %5578 = vadd.xlane.f32.xlu0 %v5577
        %v5579 = vpop.xlane.xlu0 %5578
        %v5580 = vadd.f32 %v5466, %v5468
        %5581 = vadd.xlane.f32.xlu0 %v5580
        %v5582 = vpop.xlane.xlu0 %5581
        %v5583 = vadd.f32 %v5470, %v5472
        %5584 = vadd.xlane.f32.xlu0 %v5583
        %v5585 = vpop.xlane.xlu0 %5584
        %v5586 = vadd.f32 %v5474, %v5476
        %5587 = vadd.xlane.f32.xlu0 %v5586
        %v5588 = vpop.xlane.xlu0 %5587
        %v5589 = vadd.f32 %v5478, %v5480
        %5590 = vadd.xlane.f32.xlu0 %v5589
        %v5591 = vpop.xlane.xlu0 %5590
        %v5592 = vadd.f32 %v5482, %v5484
        %5593 = vadd.xlane.f32.xlu0 %v5592
        %v5594 = vpop.xlane.xlu0 %5593
        %v5595 = vadd.f32 %v5486, %v5488
        %5596 = vadd.xlane.f32.xlu0 %v5595
        %v5597 = vpop.xlane.xlu0 %5596
        %v5598 = vadd.f32 %v5490, %v5492
        %5599 = vadd.xlane.f32.xlu0 %v5598
        %v5600 = vpop.xlane.xlu0 %5599
        %v5601 = vadd.f32 %v5494, %v5496
        %5602 = vadd.xlane.f32.xlu0 %v5601
        %v5603 = vpop.xlane.xlu0 %5602
        %v5604 = vadd.f32 %v5498, %v5500
        %5605 = vadd.xlane.f32.xlu0 %v5604
        %v5606 = vpop.xlane.xlu0 %5605
        %v5607 = vadd.f32 %v5502, %v5504
        %5608 = vadd.xlane.f32.xlu0 %v5607
        %v5609 = vpop.xlane.xlu0 %5608
        %v5610 = vadd.f32 %v5506, %v5508
        %5611 = vadd.xlane.f32.xlu0 %v5610
        %v5612 = vpop.xlane.xlu0 %5611
        %v5613 = vadd.f32 %v5510, %v5512
        %5614 = vadd.xlane.f32.xlu0 %v5613
        %v5615 = vpop.xlane.xlu0 %5614
        %v5616 = vadd.f32 %v5514, %v5516
        %5617 = vadd.xlane.f32.xlu0 %v5616
        %v5618 = vpop.xlane.xlu0 %5617
        %v5619 = vadd.f32 %v5518, %v5520
        %5620 = vadd.xlane.f32.xlu0 %v5619
        %v5621 = vpop.xlane.xlu0 %5620
        %v5622 = vadd.f32 %v5522, %v5524
        %5623 = vadd.xlane.f32.xlu0 %v5622
        %v5624 = vpop.xlane.xlu0 %5623
        %v5625 = vadd.f32 %v5526, %v5528
        %5626 = vadd.xlane.f32.xlu0 %v5625
        %v5627 = vpop.xlane.xlu0 %5626
        %v5628 = vadd.f32 %v5530, %v5532
        %5629 = vadd.xlane.f32.xlu0 %v5628
        %v5630 = vpop.xlane.xlu0 %5629
        %v5631 = vadd.f32 %v5534, %v5536
        %5632 = vadd.xlane.f32.xlu0 %v5631
        %v5633 = vpop.xlane.xlu0 %5632
        %v5634 = vadd.f32 %v5538, %v5540
        %5635 = vadd.xlane.f32.xlu0 %v5634
        %v5636 = vpop.xlane.xlu0 %5635
        %v5637 = vrcp.pop %v5543
        %v5638 = vrcp.pop %v5546
        %v5639 = vrcp.pop %v5549
        %v5640 = vrcp.pop %v5552
        %v5641 = vrcp.pop %v5555
        %v5642 = vrcp.pop %v5558
        %v5643 = vrcp.pop %v5561
        %v5644 = vrcp.pop %v5564
        %v5645 = vrcp.pop %v5567
        %v5646 = vrcp.pop %v5570
        %v5647 = vrcp.pop %v5573
        %v5648 = vrcp.pop %v5576
        %v5649 = vrcp.pop %v5579
        %v5650 = vrcp.pop %v5582
        %v5651 = vrcp.pop %v5585
        %v5652 = vrcp.pop %v5588
        %v5653 = vrcp.pop %v5591
        %v5654 = vrcp.pop %v5594
        %v5655 = vrcp.pop %v5597
        %v5656 = vrcp.pop %v5600
        %v5657 = vrcp.pop %v5603
        %v5658 = vrcp.pop %v5606
        %v5659 = vrcp.pop %v5609
        %v5660 = vrcp.pop %v5612
        %v5661 = vrcp.pop %v5615
        %v5662 = vrcp.pop %v5618
        %v5663 = vrcp.pop %v5621
        %v5664 = vrcp.pop %v5624
        %v5665 = vrcp.pop %v5627
        %v5666 = vrcp.pop %v5630
        %v5667 = vrcp.pop %v5633
        %v5668 = vrcp.pop %v5636
        %v5669 = vmul.f32 %v5414, %v5637
        %v5670 = vmul.f32 %v5416, %v5637
        %v5671 = vmul.f32 %v5418, %v5638
        %v5672 = vmul.f32 %v5420, %v5638
        %v5673 = vmul.f32 %v5422, %v5639
        %v5674 = vmul.f32 %v5424, %v5639
        %v5675 = vmul.f32 %v5426, %v5640
        %v5676 = vmul.f32 %v5428, %v5640
        %v5677 = vmul.f32 %v5430, %v5641
        %v5678 = vmul.f32 %v5432, %v5641
        %v5679 = vmul.f32 %v5434, %v5642
        %v5680 = vmul.f32 %v5436, %v5642
        %v5681 = vmul.f32 %v5438, %v5643
        %v5682 = vmul.f32 %v5440, %v5643
        %v5683 = vmul.f32 %v5442, %v5644
        %v5684 = vmul.f32 %v5444, %v5644
        %v5685 = vmul.f32 %v5446, %v5645
        %v5686 = vmul.f32 %v5448, %v5645
        %v5687 = vmul.f32 %v5450, %v5646
        %v5688 = vmul.f32 %v5452, %v5646
        %v5689 = vmul.f32 %v5454, %v5647
        %v5690 = vmul.f32 %v5456, %v5647
        %v5691 = vmul.f32 %v5458, %v5648
        %v5692 = vmul.f32 %v5460, %v5648
        %v5693 = vmul.f32 %v5462, %v5649
        %v5694 = vmul.f32 %v5464, %v5649
        %v5695 = vmul.f32 %v5466, %v5650
        %v5696 = vmul.f32 %v5468, %v5650
        %v5697 = vmul.f32 %v5470, %v5651
        %v5698 = vmul.f32 %v5472, %v5651
        %v5699 = vmul.f32 %v5474, %v5652
        %v5700 = vmul.f32 %v5476, %v5652
        %v5701 = vmul.f32 %v5478, %v5653
        %v5702 = vmul.f32 %v5480, %v5653
        %v5703 = vmul.f32 %v5482, %v5654
        %v5704 = vmul.f32 %v5484, %v5654
        %v5705 = vmul.f32 %v5486, %v5655
        %v5706 = vmul.f32 %v5488, %v5655
        %v5707 = vmul.f32 %v5490, %v5656
        %v5708 = vmul.f32 %v5492, %v5656
        %v5709 = vmul.f32 %v5494, %v5657
        %v5710 = vmul.f32 %v5496, %v5657
        %v5711 = vmul.f32 %v5498, %v5658
        %v5712 = vmul.f32 %v5500, %v5658
        %v5713 = vmul.f32 %v5502, %v5659
        %v5714 = vmul.f32 %v5504, %v5659
        %v5715 = vmul.f32 %v5506, %v5660
        %v5716 = vmul.f32 %v5508, %v5660
        %v5717 = vmul.f32 %v5510, %v5661
        %v5718 = vmul.f32 %v5512, %v5661
        %v5719 = vmul.f32 %v5514, %v5662
        %v5720 = vmul.f32 %v5516, %v5662
        %v5721 = vmul.f32 %v5518, %v5663
        %v5722 = vmul.f32 %v5520, %v5663
        %v5723 = vmul.f32 %v5522, %v5664
        %v5724 = vmul.f32 %v5524, %v5664
        %v5725 = vmul.f32 %v5526, %v5665
        %v5726 = vmul.f32 %v5528, %v5665
        %v5727 = vmul.f32 %v5530, %v5666
        %v5728 = vmul.f32 %v5532, %v5666
        %v5729 = vmul.f32 %v5534, %v5667
        %v5730 = vmul.f32 %v5536, %v5667
        %v5731 = vmul.f32 %v5538, %v5668
        %v5732 = vmul.f32 %v5540, %v5668
        %v5733 = vpack.c.bf16 %v5671, %v5669
        %v5734 = vpack.c.bf16 %v5672, %v5670
        %v5735 = vpack.c.bf16 %v5675, %v5673
        %v5736 = vpack.c.bf16 %v5676, %v5674
        %v5737 = vpack.c.bf16 %v5679, %v5677
        %v5738 = vpack.c.bf16 %v5680, %v5678
        %v5739 = vpack.c.bf16 %v5683, %v5681
        %v5740 = vpack.c.bf16 %v5684, %v5682
        %v5741 = vpack.c.bf16 %v5687, %v5685
        %v5742 = vpack.c.bf16 %v5688, %v5686
        %v5743 = vpack.c.bf16 %v5691, %v5689
        %v5744 = vpack.c.bf16 %v5692, %v5690
        %v5745 = vpack.c.bf16 %v5695, %v5693
        %v5746 = vpack.c.bf16 %v5696, %v5694
        %v5747 = vpack.c.bf16 %v5699, %v5697
        %v5748 = vpack.c.bf16 %v5700, %v5698
        %v5749 = vpack.c.bf16 %v5703, %v5701
        %v5750 = vpack.c.bf16 %v5704, %v5702
        %v5751 = vpack.c.bf16 %v5707, %v5705
        %v5752 = vpack.c.bf16 %v5708, %v5706
        %v5753 = vpack.c.bf16 %v5711, %v5709
        %v5754 = vpack.c.bf16 %v5712, %v5710
        %v5755 = vpack.c.bf16 %v5715, %v5713
        %v5756 = vpack.c.bf16 %v5716, %v5714
        %v5757 = vpack.c.bf16 %v5719, %v5717
        %v5758 = vpack.c.bf16 %v5720, %v5718
        %v5759 = vpack.c.bf16 %v5723, %v5721
        %v5760 = vpack.c.bf16 %v5724, %v5722
        %v5761 = vpack.c.bf16 %v5727, %v5725
        %v5762 = vpack.c.bf16 %v5728, %v5726
        %v5763 = vpack.c.bf16 %v5731, %v5729
        %v5764 = vpack.c.bf16 %v5732, %v5730
        %5765 = vmatprep.subr.bf16.mxu0 %v5734
        %5766 = vmatpush1.bf16.xpose.msra.mxu0 %v5733
        %5767 = vmatprep.subr.bf16.mxu0 %v5736
        %5768 = vmatpush1.bf16.xpose.msra.mxu0 %v5735
        %5769 = vmatprep.subr.bf16.mxu0 %v5738
        %5770 = vmatpush1.bf16.xpose.msra.mxu0 %v5737
        %5771 = vmatprep.subr.bf16.mxu0 %v5740
        %5772 = vmatpush1.bf16.xpose.msra.mxu0 %v5739
        %5773 = vmatprep.subr.bf16.mxu0 %v5742
        %5774 = vmatpush1.bf16.xpose.msra.mxu0 %v5741
        %5775 = vmatprep.subr.bf16.mxu0 %v5744
        %5776 = vmatpush1.bf16.xpose.msra.mxu0 %v5743
        %5777 = vmatprep.subr.bf16.mxu0 %v5746
        %5778 = vmatpush1.bf16.xpose.msra.mxu0 %v5745
        %5779 = vmatprep.subr.bf16.mxu0 %v5748
        %5780 = vmatpush1.bf16.xpose.msra.mxu0 %v5747
        %5781 = vmatprep.subr.bf16.mxu0 %v5750
        %5782 = vmatpush1.bf16.xpose.msra.mxu0 %v5749
        %5783 = vmatprep.subr.bf16.mxu0 %v5752
        %5784 = vmatpush1.bf16.xpose.msra.mxu0 %v5751
        %5785 = vmatprep.subr.bf16.mxu0 %v5754
        %5786 = vmatpush1.bf16.xpose.msra.mxu0 %v5753
        %5787 = vmatprep.subr.bf16.mxu0 %v5756
        %5788 = vmatpush1.bf16.xpose.msra.mxu0 %v5755
        %5789 = vmatprep.subr.bf16.mxu0 %v5758
        %5790 = vmatpush1.bf16.xpose.msra.mxu0 %v5757
        %5791 = vmatprep.subr.bf16.mxu0 %v5760
        %5792 = vmatpush1.bf16.xpose.msra.mxu0 %v5759
        %5793 = vmatprep.subr.bf16.mxu0 %v5762
        %5794 = vmatpush1.bf16.xpose.msra.mxu0 %v5761
        %5795 = vmatprep.subr.bf16.mxu0 %v5764
        %5796 = vmatpush1.bf16.xpose.msra.mxu0 %v5763
        %5797 = vmatprep.mubr.bf16.mxu0 %v4139
        %5798 = vmatmul.mubr.bf16.gmra.mrb[0].mxu0 %v4138
        %v5799 = vpop.f32.mrb[0].mxu0
        %v5800 = vadd.f32 0.0, %v5799
        %v5801 = vpop.f32.mrb[0].mxu0
        %v5802 = vadd.f32 0.0, %v5801
        %v5803 = vpop.f32.mrb[0].mxu0
        %v5804 = vadd.f32 0.0, %v5803
        %v5805 = vpop.f32.mrb[0].mxu0
        %v5806 = vadd.f32 0.0, %v5805
        %5807 = vmatprep.mubr.bf16.mxu0 %v4141
        %5808 = vmatmul.mubr.bf16.gmra.mrb[0].mxu0 %v4140
        %v5809 = vpop.f32.mrb[0].mxu0
        %v5810 = vadd.f32 0.0, %v5809
        %v5811 = vpop.f32.mrb[0].mxu0
        %v5812 = vadd.f32 0.0, %v5811
        %v5813 = vpop.f32.mrb[0].mxu0
        %v5814 = vadd.f32 0.0, %v5813
        %v5815 = vpop.f32.mrb[0].mxu0
        %v5816 = vadd.f32 0.0, %v5815
        %5817 = vdwg.mxu0
        %v5818 = vpack.c.bf16 %v4966, %v4962
        %v5819 = vpack.c.bf16 %v4968, %v4964
        %v5820 = vpack.c.bf16 %v4976, %v4972
        %v5821 = vpack.c.bf16 %v4978, %v4974
        %v5822 = vpack.c.bf16 %v5804, %v5800
        %v5823 = vpack.c.bf16 %v5806, %v5802
        %v5824 = vpack.c.bf16 %v5814, %v5810
        %v5825 = vpack.c.bf16 %v5816, %v5812
        %5826 = vmatprep.subr.bf16.mxu0 %v5819
        %5827 = vmatpush1.bf16.msra.mxu0 %v5818
        %5828 = vmatprep.subr.bf16.mxu0 %v5821
        %5829 = vmatpush1.bf16.msra.mxu0 %v5820
        %5830 = vmatprep.subr.bf16.mxu0 %v5823
        %5831 = vmatpush1.bf16.msra.mxu0 %v5822
        %5832 = vmatprep.subr.bf16.mxu0 %v5825
        %5833 = vmatpush1.bf16.msra.mxu0 %v5824
        %5834 = vmatprep.subr.bf16.mxu0 0
        %5835 = vmatpush1.bf16.msra.mxu0 0
        %5836 = vmatprep.subr.bf16.mxu0 0
        %5837 = vmatpush1.bf16.msra.mxu0 0
        %5838 = vmatprep.subr.bf16.mxu0 0
        %5839 = vmatpush1.bf16.msra.mxu0 0
        %5840 = vmatprep.subr.bf16.mxu0 0
        %5841 = vmatpush1.bf16.msra.mxu0 0
        %5842 = vmatprep.subr.bf16.mxu0 0
        %5843 = vmatpush1.bf16.msra.mxu0 0
        %5844 = vmatprep.subr.bf16.mxu0 0
        %5845 = vmatpush1.bf16.msra.mxu0 0
        %5846 = vmatprep.subr.bf16.mxu0 0
        %5847 = vmatpush1.bf16.msra.mxu0 0
        %5848 = vmatprep.subr.bf16.mxu0 0
        %5849 = vmatpush1.bf16.msra.mxu0 0
        %5850 = vmatprep.subr.bf16.mxu0 0
        %5851 = vmatpush1.bf16.msra.mxu0 0
        %5852 = vmatprep.subr.bf16.mxu0 0
        %5853 = vmatpush1.bf16.msra.mxu0 0
        %5854 = vmatprep.subr.bf16.mxu0 0
        %5855 = vmatpush1.bf16.msra.mxu0 0
        %5856 = vmatprep.subr.bf16.mxu0 0
        %5857 = vmatpush1.bf16.msra.mxu0 0
        %5858 = vmatprep.mubr.bf16.mxu0 0
        %5859 = vmatmul.mubr.bf16.gmra.mrb[0].mxu0 %v3268
        %v5860 = vpop.f32.mrb[0].mxu0
        %v5861 = vadd.f32 %v3210, %v5860
        %v5862 = vpop.f32.mrb[0].mxu0
        %v5863 = vadd.f32 %v3210, %v5862
        %v5864 = vpop.f32.mrb[0].mxu0
        %v5865 = vadd.f32 %v3215, %v5864
        %v5866 = vpop.f32.mrb[0].mxu0
        %v5867 = vadd.f32 %v3215, %v5866
        %5868 = vmatprep.mubr.bf16.mxu0 0
        %5869 = vmatmul.mubr.bf16.gmra.mrb[0].mxu0 %v3271
        %v5870 = vpop.f32.mrb[0].mxu0
        %v5871 = vadd.f32 %v3220, %v5870
        %v5872 = vpop.f32.mrb[0].mxu0
        %v5873 = vadd.f32 %v3220, %v5872
        %v5874 = vpop.f32.mrb[0].mxu0
        %v5875 = vadd.f32 %v3225, %v5874
        %v5876 = vpop.f32.mrb[0].mxu0
        %v5877 = vadd.f32 %v3225, %v5876
        %5878 = vmatprep.mubr.bf16.mxu0 0
        %5879 = vmatmul.mubr.bf16.gmra.mrb[0].mxu0 %v3274
        %v5880 = vpop.f32.mrb[0].mxu0
        %v5881 = vadd.f32 %v3230, %v5880
        %v5882 = vpop.f32.mrb[0].mxu0
        %v5883 = vadd.f32 %v3230, %v5882
        %v5884 = vpop.f32.mrb[0].mxu0
        %v5885 = vadd.f32 %v3235, %v5884
        %v5886 = vpop.f32.mrb[0].mxu0
        %v5887 = vadd.f32 %v3235, %v5886
        %5888 = vmatprep.mubr.bf16.mxu0 0
        %5889 = vmatmul.mubr.bf16.gmra.mrb[0].mxu0 %v3277
        %v5890 = vpop.f32.mrb[0].mxu0
        %v5891 = vadd.f32 %v3240, %v5890
        %v5892 = vpop.f32.mrb[0].mxu0
        %v5893 = vadd.f32 %v3240, %v5892
        %v5894 = vpop.f32.mrb[0].mxu0
        %v5895 = vadd.f32 %v3245, %v5894
        %v5896 = vpop.f32.mrb[0].mxu0
        %v5897 = vadd.f32 %v3245, %v5896
        %5898 = vdwg.mxu0
        %v5899 = vadd.f32 %v3385, %v5861
        %v5900 = vadd.f32 %v3386, %v5863
        %v5901 = vadd.f32 %v3387, %v5865
        %v5902 = vadd.f32 %v3388, %v5867
        %v5903 = vadd.f32 %v3389, %v5871
        %v5904 = vadd.f32 %v3390, %v5873
        %v5905 = vadd.f32 %v3391, %v5875
        %v5906 = vadd.f32 %v3392, %v5877
        %v5907 = vadd.f32 %v3393, %v5881
        %v5908 = vadd.f32 %v3394, %v5883
        %v5909 = vadd.f32 %v3395, %v5885
        %v5910 = vadd.f32 %v3396, %v5887
        %v5911 = vadd.f32 %v3397, %v5891
        %v5912 = vadd.f32 %v3398, %v5893
        %v5913 = vadd.f32 %v3399, %v5895
        %v5914 = vadd.f32 %v3400, %v5897
        %s5915 = scalar_lea.vmem %s432, 128 [#allocation5]
        %5916 = vst [vmem:[%s5915] sm:$0xff] %v5899
        %5917 = vst [vmem:[%s5915 + $0x8] sm:$0xff] %v5900
        %5918 = vst [vmem:[%s5915 + $0x10] sm:$0xff] %v5901
        %5919 = vst [vmem:[%s5915 + $0x18] sm:$0xff] %v5902
        %5920 = vst [vmem:[%s5915 + $0x20] sm:$0xff] %v5903
        %5921 = vst [vmem:[%s5915 + $0x28] sm:$0xff] %v5904
        %5922 = vst [vmem:[%s5915 + $0x30] sm:$0xff] %v5905
        %5923 = vst [vmem:[%s5915 + $0x38] sm:$0xff] %v5906
        %5924 = vst [vmem:[%s5915 + $0x40] sm:$0xff] %v5907
        %5925 = vst [vmem:[%s5915 + $0x48] sm:$0xff] %v5908
        %5926 = vst [vmem:[%s5915 + $0x50] sm:$0xff] %v5909
        %5927 = vst [vmem:[%s5915 + $0x58] sm:$0xff] %v5910
        %5928 = vst [vmem:[%s5915 + $0x60] sm:$0xff] %v5911
        %5929 = vst [vmem:[%s5915 + $0x68] sm:$0xff] %v5912
        %5930 = vst [vmem:[%s5915 + $0x70] sm:$0xff] %v5913
        %5931 = vst [vmem:[%s5915 + $0x78] sm:$0xff] %v5914
        %s5932 = sand.u32 %s294, 1
        %s5933 = scalar_lea.sflag [#allocation4], %s5932
        %s5934 = sand.u32 %s294, 1
        %s5935 = smul.addr %s5934, 256
        %s5936 = scalar_lea.vmem [#allocation5], %s5935
        // Predicated region
        $region73: #{tpu_custom_call.1} parent=67 // pred_check
          %p5937 = pneg %p304
        $region74: #{tpu_custom_call.1} parent=67 // pred_check_branch
          %5939 = sbr.rel (%p5937) target = $region76
        $region75: #{tpu_custom_call.1} parent=67 // pred_region
          %s5940 = smul.u32 2, %s29
          %s5942 = ssub.s32 4096, 4096
          %5943 = vsyncadd %s5933, %s5942
          %s5944 = smul.addr %s5940, 16
          %s5945 = smul.addr %s5944, 128
          %s5946 = scalar_lea.hbm %s12, %s5945
          %s5947 = sshll.u32 %s5936, 4
          %s5948 = int_to_ptr.vmem [resolvable:$true] %s5947
          %5953 = dma.vmem_to_hbm [thread:$0]  %s5948, 4096, %s5946, %s5933, 256, 256, 16
        $region76: #{tpu_custom_call.1} parent=67 // pred_fallthru
          _
      $region68: #{tpu_custom_call.1} parent=5 // pred_fallthru
        _
      %p5954 = scmp.le.s32.totalorder 2, %s24
      // Predicated region
      $region77: #{tpu_custom_call.1} parent=5 // pred_check
        %p5955 = pneg %p5954
      $region78: #{tpu_custom_call.1} parent=5 // pred_check_branch
        %5957 = sbr.rel (%p5955) target = $region80
      $region79: #{tpu_custom_call.1} parent=5 // pred_region
        %s5958 = ssub.s32 %s24, 2
        // Predicated region
        $region81: #{tpu_custom_call.1} parent=79 // pred_check
          %p5959 = pneg %p310
        $region82: #{tpu_custom_call.1} parent=79 // pred_check_branch
          %5961 = sbr.rel (%p5959) target = $region84
        $region83: #{tpu_custom_call.1} parent=79 // pred_region
          %s5962 = sand.u32 %s295, 1
          %s5963 = scalar_lea.sflag [#allocation4], %s5962
          %s5964 = sand.u32 %s295, 1
          %s5965 = smul.addr %s5964, 256
          %s5966 = scalar_lea.vmem [#allocation5], %s5965
          %5967 = dma.done %s5963, 4096
        $region84: #{tpu_custom_call.1} parent=79 // pred_fallthru
          _
      $region80: #{tpu_custom_call.1} parent=5 // pred_fallthru
        _
    $region6: #{tpu_custom_call.1} parent=1 // loop_footer
      %s28 = sadd.s32 1, %s24
    $region7: #{tpu_custom_call.1} parent=1 // loop_footer_branch
      %23 = sbr.rel target = $region3
    $region8: #{tpu_custom_call.1} parent=1 // loop_exit
      _
    %5968 = vsyncpa [#allocation3], 1
    %s5969 = scalar_lea.sflag [#allocation3], 1
    %5970 = vsyncpa %s5969, 1
    %5971 = vsyncpa [#allocation4], 1
    %s5972 = scalar_lea.sflag [#allocation4], 1
    %5973 = vsyncpa %s5972, 1

</llo_original>
